<compile_context>
chip_gen: v5e
topology: v5e:2x2
jax: 0.10.0
libtpu: 0.0.40
codegen_flags: <defaults>
</compile_context>

<pallas_src>
import jax
import jax.numpy as jnp
from jax.experimental import pallas as pl
from jax.experimental.pallas import tpu as pltpu

B_VALS = 8            # len(bvalues)
WIDTH  = 32           # net_pars.width (hidden width per encoder)
N_ENC  = 4            # 4 parallel encoders -> Dp, Dt, Fp, S0
FUSED  = N_ENC * WIDTH   # 128 fused hidden sublanes
TM_MAX = 8192         # max voxels per grid step (lane axis)

# sigmoid-constraint bounds, order [D, f, D*, S0]  (net_pars.cons_min / cons_max)
CONS_MIN = (0.0,   0.0, 0.005, 0.8)
CONS_MAX = (0.005, 0.7, 0.3,   2.0)


def _elu(x):
    # nn.ELU(alpha=1), overflow-safe
    return jnp.where(x > 0, x, jnp.exp(jnp.minimum(x, 0.0)) - 1.0)


def _sigmoid(x):
    return 1.0 / (1.0 + jnp.exp(-x))


def ivim_net_kernel(bv_ref,
                    w0t_ref, b0_ref,
                    w1t_ref, b1_ref,
                    wft_ref, bf_ref,
                    x_ref, out_ref):
    # x is (8, TM): features in sublanes, voxels in lanes (fully lane-dense).
    x = x_ref[...]

    # Fused 4-encoder MLP (BN already folded into the weights):
    h = jnp.dot(w0t_ref[...], x, preferred_element_type=jnp.float32) + b0_ref[...]
    h = _elu(h)                                                          # (128, TM)
    h = jnp.dot(w1t_ref[...], h, preferred_element_type=jnp.float32) + b1_ref[...]
    h = _elu(h)                                                          # (128, TM)
    p = jnp.dot(wft_ref[...], h, preferred_element_type=jnp.float32) + bf_ref[...]  # (4, TM)

    # sigmoid constraint; rows are in encoder order [Dp, Dt, Fp, S0].
    # Bounds are compile-time Python scalars (no operand arrays needed).
    sp = _sigmoid(p)
    Dmin, fmin, Dpmin, S0min = CONS_MIN
    Dmax, fmax, Dpmax, S0max = CONS_MAX
    Dp = Dpmin + sp[0:1, :] * (Dpmax - Dpmin)                            # (1, TM)
    Dt = Dmin  + sp[1:2, :] * (Dmax  - Dmin)
    Fp = fmin  + sp[2:3, :] * (fmax  - fmin)
    S0 = S0min + sp[3:4, :] * (S0max - S0min)

    bv = bv_ref[...]                                                     # (8, 1)
    sig = S0 * (Fp * jnp.exp(-bv * Dp) + (1.0 - Fp) * jnp.exp(-bv * Dt))  # (8, TM)

    # single merged lane-dense output slab: rows [signal(8); Dp; Dt; Fp; S0]
    out_ref[0:B_VALS, :] = sig
    out_ref[B_VALS + 0:B_VALS + 1, :] = Dp
    out_ref[B_VALS + 1:B_VALS + 2, :] = Dt
    out_ref[B_VALS + 2:B_VALS + 3, :] = Fp
    out_ref[B_VALS + 3:B_VALS + 4, :] = S0


def pack_params(params):
    """Fold eval-mode BN into the linears and pack into the fused, transposed
    (hidden-in-sublanes, voxels-in-lanes) layout. Done once, outside the kernel."""
    (w0, b0, s0, h0, w1, b1, s1, h1, wf, bf) = params
    W = WIDTH

    # fold BN: y = (x@W + b)*s + h  ==  x@(W*s) + (b*s + h)
    w0f = w0 * s0                       # (E, B, W)
    b0f = b0 * s0 + h0                  # (E, 1, W)
    w1f = w1 * s1                       # (E, W, W)
    b1f = b1 * s1 + h1                  # (E, 1, W)

    w0t = jnp.concatenate([w0f[e] for e in range(N_ENC)], axis=1).T      # (128, 8)
    b0p = jnp.concatenate([b0f[e] for e in range(N_ENC)], axis=1).T      # (128, 1)
    b1p = jnp.concatenate([b1f[e] for e in range(N_ENC)], axis=1).T      # (128, 1)

    w1blk = jnp.zeros((FUSED, FUSED), jnp.float32)                       # block-diag
    wft   = jnp.zeros((N_ENC, FUSED), jnp.float32)                       # (4, 128)
    for e in range(N_ENC):
        w1blk = w1blk.at[e * W:(e + 1) * W, e * W:(e + 1) * W].set(w1f[e])
        wft   = wft.at[e, e * W:(e + 1) * W].set(wf[e][:, 0])
    w1t = w1blk.T                                                        # (128, 128)
    bfp = bf[:, 0, 0].reshape(N_ENC, 1)                                  # (4, 1)

    return (w0t, b0p, w1t, b1p, wft, bfp)


def ivim_net_forward(x, bvalues, packed, tm_max=TM_MAX):
    N, B = x.shape
    assert B == B_VALS

    # lane-dense tile: multiple of 128, >=128, sized so the grid has >=2 steps
    # when possible (keeps both v7x TensorCores busy), capped to amortize the
    # per-step overhead on v5e/v6e.
    half = (N + 1) // 2
    tm = ((half + 127) // 128) * 128
    tm = max(128, min(tm, tm_max))
    grid = (pl.cdiv(N, tm),)          # ragged last block handled by Pallas

    xT = x.T                                           # (8, N) voxels-in-lanes
    bv = bvalues.reshape(B, 1).astype(jnp.float32)

    def full(shape):
        return pl.BlockSpec(shape, lambda i: (0,) * len(shape))

    in_specs = [
        full((B, 1)),                                  # bvalues (8,1)
        full((FUSED, B)), full((FUSED, 1)),            # W0^T (BN-folded), b0
        full((FUSED, FUSED)), full((FUSED, 1)),        # W1^T block-diag (BN-folded), b1
        full((N_ENC, FUSED)), full((N_ENC, 1)),        # Wf^T, bf
        pl.BlockSpec((B, tm), lambda i: (0, i)),       # X (8, TM)
    ]
    out_specs = pl.BlockSpec((B_VALS + N_ENC, tm), lambda i: (0, i))
    out_shape = jax.ShapeDtypeStruct((B_VALS + N_ENC, N), jnp.float32)

    out = pl.pallas_call(
        ivim_net_kernel,
        out_shape=out_shape,
        grid_spec=pltpu.PrefetchScalarGridSpec(
            num_scalar_prefetch=0, grid=grid,
            in_specs=in_specs, out_specs=out_specs),
        compiler_params=pltpu.CompilerParams(dimension_semantics=("parallel",)),
    )(bv, *packed, xT)

    sig = out[:B_VALS, :].T                            # (N, 8)
    Dp = out[B_VALS + 0, :].reshape(N, 1)
    Dt = out[B_VALS + 1, :].reshape(N, 1)
    Fp = out[B_VALS + 2, :].reshape(N, 1)
    S0 = out[B_VALS + 3, :].reshape(N, 1)
    # same return order as the PyTorch forward: (X, Dt, Fp, Dp, S0)
    return sig, Dt, Fp, Dp, S0


def init_params(key):
    """Deterministic, PyTorch-like uniform init; eval BatchNorm as scale/shift."""
    ks = jax.random.split(key, 5)

    def lin(k, fan_in, fan_out):
        bound = 1.0 / (fan_in ** 0.5)
        kw, kb = jax.random.split(k)
        w = jax.random.uniform(kw, (N_ENC, fan_in, fan_out), jnp.float32, -bound, bound)
        b = jax.random.uniform(kb, (N_ENC, 1, fan_out), jnp.float32, -bound, bound)
        return w, b

    def bn(k):
        kg, kb, km, kv = jax.random.split(k, 4)
        gamma = 1.0 + 0.1 * jax.random.normal(kg, (N_ENC, 1, WIDTH), jnp.float32)
        beta  = 0.1 * jax.random.normal(kb, (N_ENC, 1, WIDTH), jnp.float32)
        mean  = 0.1 * jax.random.normal(km, (N_ENC, 1, WIDTH), jnp.float32)
        var   = 1.0 + 0.1 * jax.random.uniform(kv, (N_ENC, 1, WIDTH), jnp.float32)
        scale = gamma / jnp.sqrt(var + 1e-5)
        shift = beta - mean * scale
        return scale, shift

    w0, b0 = lin(ks[0], B_VALS, WIDTH)
    w1, b1 = lin(ks[1], WIDTH, WIDTH)
    wf, bf = lin(ks[2], WIDTH, 1)
    s0, h0 = bn(ks[3])
    s1, h1 = bn(ks[4])
    return (w0, b0, s0, h0, w1, b1, s1, h1, wf, bf)


def reference_forward(x, bvalues, params):
    """Pure-JAX reference mirroring the PyTorch forward (for verification)."""
    (w0, b0, s0, h0, w1, b1, s1, h1, wf, bf) = params
    outs = []
    for e in range(N_ENC):
        a = x @ w0[e] + b0[e]
        a = _elu(a * s0[e] + h0[e])
        a = a @ w1[e] + b1[e]
        a = _elu(a * s1[e] + h1[e])
        outs.append(a @ wf[e] + bf[e])
    Dmin, fmin, Dpmin, S0min = CONS_MIN
    Dmax, fmax, Dpmax, S0max = CONS_MAX
    Dp = Dpmin + _sigmoid(outs[0]) * (Dpmax - Dpmin)
    Dt = Dmin  + _sigmoid(outs[1]) * (Dmax  - Dmin)
    Fp = fmin  + _sigmoid(outs[2]) * (fmax  - fmin)
    S0 = S0min + _sigmoid(outs[3]) * (S0max - S0min)
    bv = bvalues.reshape(1, -1)
    sig = S0 * (Fp * jnp.exp(-bv * Dp) + (1.0 - Fp) * jnp.exp(-bv * Dt))
    return sig, Dt, Fp, Dp, S0


if __name__ == "__main__":
    key = jax.random.PRNGKey(0)
    kx, kp = jax.random.split(key)

    N = 3000   # exercises the ragged last block and a 2-step parallel grid
    bvalues = jnp.array([0.0, 5.0, 10.0, 20.0, 50.0, 100.0, 200.0, 500.0], jnp.float32)
    # synthetic normalized DWI signals per voxel
    x = 1.0 + 0.1 * jax.random.normal(kx, (N, B_VALS), jnp.float32)

    params = init_params(kp)
    packed = pack_params(params)

    outs = ivim_net_forward(x, bvalues, packed)
    outs = jax.block_until_ready(outs)

    refs = reference_forward(x, bvalues, params)
    for o, r in zip(outs, refs):
        assert o.shape == r.shape
        assert jnp.allclose(o, r, atol=1e-5, rtol=1e-5), "mismatch vs pure-JAX reference"

    print("KERNEL_OK")
</pallas_src>

<mosaic_0001>
module attributes {stable_mosaic.version = 11 : i64} {
  func.func @ivim_net_kernel(%arg0: i32, %arg1: memref<8x1xf32, #tpu.memory_space<vmem>>, %arg2: memref<128x8xf32, #tpu.memory_space<vmem>>, %arg3: memref<128x1xf32, #tpu.memory_space<vmem>>, %arg4: memref<128x128xf32, #tpu.memory_space<vmem>>, %arg5: memref<128x1xf32, #tpu.memory_space<vmem>>, %arg6: memref<4x128xf32, #tpu.memory_space<vmem>>, %arg7: memref<4x1xf32, #tpu.memory_space<vmem>>, %arg8: memref<8x1536xf32, #tpu.memory_space<vmem>>, %arg9: memref<12x1536xf32, #tpu.memory_space<vmem>>) attributes {dimension_semantics = [#tpu.dimension_semantics<parallel>], iteration_bounds = array<i64: 2>, scalar_prefetch = 0 : i64, scratch_operands = 0 : i64, tpu.core_type = #tpu.core_type<tc>, window_params = [{pipeline_mode = #tpu.pipeline_mode<synchronous>, transform_indices = @transform_0, window_bounds = array<i64: 8, 1>}, {pipeline_mode = #tpu.pipeline_mode<synchronous>, transform_indices = @transform_1, window_bounds = array<i64: 128, 8>}, {pipeline_mode = #tpu.pipeline_mode<synchronous>, transform_indices = @transform_2, window_bounds = array<i64: 128, 1>}, {pipeline_mode = #tpu.pipeline_mode<synchronous>, transform_indices = @transform_3, window_bounds = array<i64: 128, 128>}, {pipeline_mode = #tpu.pipeline_mode<synchronous>, transform_indices = @transform_4, window_bounds = array<i64: 128, 1>}, {pipeline_mode = #tpu.pipeline_mode<synchronous>, transform_indices = @transform_5, window_bounds = array<i64: 4, 128>}, {pipeline_mode = #tpu.pipeline_mode<synchronous>, transform_indices = @transform_6, window_bounds = array<i64: 4, 1>}, {transform_indices = @transform_7, window_bounds = array<i64: 8, 1536>}, {transform_indices = @transform_8, window_bounds = array<i64: 12, 1536>}]} {
    %c0 = arith.constant 0 : index
    %c0_0 = arith.constant 0 : index
    %0 = vector.load %arg8[%c0, %c0_0] : memref<8x1536xf32, #tpu.memory_space<vmem>>, vector<8x1536xf32>
    %c0_1 = arith.constant 0 : index
    %c0_2 = arith.constant 0 : index
    %1 = vector.load %arg2[%c0_1, %c0_2] : memref<128x8xf32, #tpu.memory_space<vmem>>, vector<128x8xf32>
    %cst = arith.constant dense<0.000000e+00> : vector<128x1536xf32>
    %2 = tpu.matmul %1, %0, %cst {dimension_numbers = #tpu.dot_dimension_numbers<[1], [0], [0], [1], [0, 0, 1, 1], [], []>} : vector<128x8xf32>, vector<8x1536xf32>, vector<128x1536xf32> -> vector<128x1536xf32>
    %c0_3 = arith.constant 0 : index
    %c0_4 = arith.constant 0 : index
    %3 = vector.load %arg3[%c0_3, %c0_4] : memref<128x1xf32, #tpu.memory_space<vmem>>, vector<128x1xf32>
    %4 = vector.broadcast %3 : vector<128x1xf32> to vector<128x1536xf32>
    %5 = arith.addf %2, %4 : vector<128x1536xf32>
    %cst_5 = arith.constant 0.000000e+00 : f32
    %6 = vector.broadcast %cst_5 : f32 to vector<128x1536xf32>
    %7 = arith.cmpf ogt, %5, %6 : vector<128x1536xf32>
    %cst_6 = arith.constant 0.000000e+00 : f32
    %8 = vector.broadcast %cst_6 : f32 to vector<128x1536xf32>
    %9 = arith.minimumf %5, %8 : vector<128x1536xf32>
    %10 = math.exp %9 : vector<128x1536xf32>
    %cst_7 = arith.constant 1.000000e+00 : f32
    %11 = vector.broadcast %cst_7 : f32 to vector<128x1536xf32>
    %12 = arith.subf %10, %11 : vector<128x1536xf32>
    %13 = arith.select %7, %5, %12 : vector<128x1536xi1>, vector<128x1536xf32>
    %c0_8 = arith.constant 0 : index
    %c0_9 = arith.constant 0 : index
    %14 = vector.load %arg4[%c0_8, %c0_9] : memref<128x128xf32, #tpu.memory_space<vmem>>, vector<128x128xf32>
    %cst_10 = arith.constant dense<0.000000e+00> : vector<128x1536xf32>
    %15 = tpu.matmul %14, %13, %cst_10 {dimension_numbers = #tpu.dot_dimension_numbers<[1], [0], [0], [1], [0, 0, 1, 1], [], []>} : vector<128x128xf32>, vector<128x1536xf32>, vector<128x1536xf32> -> vector<128x1536xf32>
    %c0_11 = arith.constant 0 : index
    %c0_12 = arith.constant 0 : index
    %16 = vector.load %arg5[%c0_11, %c0_12] : memref<128x1xf32, #tpu.memory_space<vmem>>, vector<128x1xf32>
    %17 = vector.broadcast %16 : vector<128x1xf32> to vector<128x1536xf32>
    %18 = arith.addf %15, %17 : vector<128x1536xf32>
    %cst_13 = arith.constant 0.000000e+00 : f32
    %19 = vector.broadcast %cst_13 : f32 to vector<128x1536xf32>
    %20 = arith.cmpf ogt, %18, %19 : vector<128x1536xf32>
    %cst_14 = arith.constant 0.000000e+00 : f32
    %21 = vector.broadcast %cst_14 : f32 to vector<128x1536xf32>
    %22 = arith.minimumf %18, %21 : vector<128x1536xf32>
    %23 = math.exp %22 : vector<128x1536xf32>
    %cst_15 = arith.constant 1.000000e+00 : f32
    %24 = vector.broadcast %cst_15 : f32 to vector<128x1536xf32>
    %25 = arith.subf %23, %24 : vector<128x1536xf32>
    %26 = arith.select %20, %18, %25 : vector<128x1536xi1>, vector<128x1536xf32>
    %c0_16 = arith.constant 0 : index
    %c0_17 = arith.constant 0 : index
    %27 = vector.load %arg6[%c0_16, %c0_17] : memref<4x128xf32, #tpu.memory_space<vmem>>, vector<4x128xf32>
    %cst_18 = arith.constant dense<0.000000e+00> : vector<4x1536xf32>
    %28 = tpu.matmul %27, %26, %cst_18 {dimension_numbers = #tpu.dot_dimension_numbers<[1], [0], [0], [1], [0, 0, 1, 1], [], []>} : vector<4x128xf32>, vector<128x1536xf32>, vector<4x1536xf32> -> vector<4x1536xf32>
    %c0_19 = arith.constant 0 : index
    %c0_20 = arith.constant 0 : index
    %29 = vector.load %arg7[%c0_19, %c0_20] : memref<4x1xf32, #tpu.memory_space<vmem>>, vector<4x1xf32>
    %30 = vector.broadcast %29 : vector<4x1xf32> to vector<4x1536xf32>
    %31 = arith.addf %28, %30 : vector<4x1536xf32>
    %cst_21 = arith.constant 0.000000e+00 : f32
    %32 = vector.broadcast %cst_21 : f32 to vector<4x1536xf32>
    %33 = arith.subf %32, %31 : vector<4x1536xf32>
    %34 = math.exp %33 : vector<4x1536xf32>
    %cst_22 = arith.constant 1.000000e+00 : f32
    %35 = vector.broadcast %cst_22 : f32 to vector<4x1536xf32>
    %36 = arith.addf %35, %34 : vector<4x1536xf32>
    %cst_23 = arith.constant 1.000000e+00 : f32
    %37 = vector.broadcast %cst_23 : f32 to vector<4x1536xf32>
    %38 = arith.divf %37, %36 : vector<4x1536xf32>
    %39 = vector.extract_strided_slice %38 {offsets = [0, 0], sizes = [1, 1536], strides = [1, 1]} : vector<4x1536xf32> to vector<1x1536xf32>
    %cst_24 = arith.constant 2.950000e-01 : f32
    %40 = vector.broadcast %cst_24 : f32 to vector<1x1536xf32>
    %41 = arith.mulf %39, %40 : vector<1x1536xf32>
    %cst_25 = arith.constant 5.000000e-03 : f32
    %42 = vector.broadcast %cst_25 : f32 to vector<1x1536xf32>
    %43 = arith.addf %42, %41 : vector<1x1536xf32>
    %44 = vector.extract_strided_slice %38 {offsets = [1, 0], sizes = [1, 1536], strides = [1, 1]} : vector<4x1536xf32> to vector<1x1536xf32>
    %cst_26 = arith.constant 5.000000e-03 : f32
    %45 = vector.broadcast %cst_26 : f32 to vector<1x1536xf32>
    %46 = arith.mulf %44, %45 : vector<1x1536xf32>
    %cst_27 = arith.constant 0.000000e+00 : f32
    %47 = vector.broadcast %cst_27 : f32 to vector<1x1536xf32>
    %48 = arith.addf %47, %46 : vector<1x1536xf32>
    %49 = vector.extract_strided_slice %38 {offsets = [2, 0], sizes = [1, 1536], strides = [1, 1]} : vector<4x1536xf32> to vector<1x1536xf32>
    %cst_28 = arith.constant 0.699999988 : f32
    %50 = vector.broadcast %cst_28 : f32 to vector<1x1536xf32>
    %51 = arith.mulf %49, %50 : vector<1x1536xf32>
    %cst_29 = arith.constant 0.000000e+00 : f32
    %52 = vector.broadcast %cst_29 : f32 to vector<1x1536xf32>
    %53 = arith.addf %52, %51 : vector<1x1536xf32>
    %54 = vector.extract_strided_slice %38 {offsets = [3, 0], sizes = [1, 1536], strides = [1, 1]} : vector<4x1536xf32> to vector<1x1536xf32>
    %cst_30 = arith.constant 1.200000e+00 : f32
    %55 = vector.broadcast %cst_30 : f32 to vector<1x1536xf32>
    %56 = arith.mulf %54, %55 : vector<1x1536xf32>
    %cst_31 = arith.constant 8.000000e-01 : f32
    %57 = vector.broadcast %cst_31 : f32 to vector<1x1536xf32>
    %58 = arith.addf %57, %56 : vector<1x1536xf32>
    %c0_32 = arith.constant 0 : index
    %c0_33 = arith.constant 0 : index
    %59 = vector.load %arg1[%c0_32, %c0_33] : memref<8x1xf32, #tpu.memory_space<vmem>>, vector<8x1xf32>
    %cst_34 = arith.constant 0.000000e+00 : f32
    %60 = vector.broadcast %cst_34 : f32 to vector<8x1xf32>
    %61 = arith.subf %60, %59 : vector<8x1xf32>
    %62 = vector.broadcast %61 : vector<8x1xf32> to vector<8x1536xf32>
    %63 = vector.broadcast %43 : vector<1x1536xf32> to vector<8x1536xf32>
    %64 = arith.mulf %62, %63 : vector<8x1536xf32>
    %65 = math.exp %64 : vector<8x1536xf32>
    %66 = vector.broadcast %53 : vector<1x1536xf32> to vector<8x1536xf32>
    %67 = arith.mulf %66, %65 : vector<8x1536xf32>
    %cst_35 = arith.constant 1.000000e+00 : f32
    %68 = vector.broadcast %cst_35 : f32 to vector<1x1536xf32>
    %69 = arith.subf %68, %53 : vector<1x1536xf32>
    %cst_36 = arith.constant 0.000000e+00 : f32
    %70 = vector.broadcast %cst_36 : f32 to vector<8x1xf32>
    %71 = arith.subf %70, %59 : vector<8x1xf32>
    %72 = vector.broadcast %71 : vector<8x1xf32> to vector<8x1536xf32>
    %73 = vector.broadcast %48 : vector<1x1536xf32> to vector<8x1536xf32>
    %74 = arith.mulf %72, %73 : vector<8x1536xf32>
    %75 = math.exp %74 : vector<8x1536xf32>
    %76 = vector.broadcast %69 : vector<1x1536xf32> to vector<8x1536xf32>
    %77 = arith.mulf %76, %75 : vector<8x1536xf32>
    %78 = arith.addf %67, %77 : vector<8x1536xf32>
    %79 = vector.broadcast %58 : vector<1x1536xf32> to vector<8x1536xf32>
    %80 = arith.mulf %79, %78 : vector<8x1536xf32>
    %c0_37 = arith.constant 0 : index
    %c0_38 = arith.constant 0 : index
    %81 = vector.load %arg9[%c0_37, %c0_38] : memref<12x1536xf32, #tpu.memory_space<vmem>>, vector<8x1536xf32>
    tpu.vector_store %arg9[%c0_37, %c0_38], %80 {strides = array<i32>} : memref<12x1536xf32, #tpu.memory_space<vmem>>, vector<8x1536xf32>,
    %c8 = arith.constant 8 : index
    %c0_39 = arith.constant 0 : index
    %82 = vector.load %arg9[%c8, %c0_39] : memref<12x1536xf32, #tpu.memory_space<vmem>>, vector<1x1536xf32>
    tpu.vector_store %arg9[%c8, %c0_39], %43 {strides = array<i32>} : memref<12x1536xf32, #tpu.memory_space<vmem>>, vector<1x1536xf32>,
    %c9 = arith.constant 9 : index
    %c0_40 = arith.constant 0 : index
    %83 = vector.load %arg9[%c9, %c0_40] : memref<12x1536xf32, #tpu.memory_space<vmem>>, vector<1x1536xf32>
    tpu.vector_store %arg9[%c9, %c0_40], %48 {strides = array<i32>} : memref<12x1536xf32, #tpu.memory_space<vmem>>, vector<1x1536xf32>,
    %c10 = arith.constant 10 : index
    %c0_41 = arith.constant 0 : index
    %84 = vector.load %arg9[%c10, %c0_41] : memref<12x1536xf32, #tpu.memory_space<vmem>>, vector<1x1536xf32>
    tpu.vector_store %arg9[%c10, %c0_41], %53 {strides = array<i32>} : memref<12x1536xf32, #tpu.memory_space<vmem>>, vector<1x1536xf32>,
    %c11 = arith.constant 11 : index
    %c0_42 = arith.constant 0 : index
    %85 = vector.load %arg9[%c11, %c0_42] : memref<12x1536xf32, #tpu.memory_space<vmem>>, vector<1x1536xf32>
    tpu.vector_store %arg9[%c11, %c0_42], %58 {strides = array<i32>} : memref<12x1536xf32, #tpu.memory_space<vmem>>, vector<1x1536xf32>,
    return
  }
  func.func @transform_0(%arg0: i32) -> (i32, i32) {
    %c0_i32 = arith.constant 0 : i32
    %c0_i32_0 = arith.constant 0 : i32
    %c0_i32_1 = arith.constant 0 : i32
    return %c0_i32, %c0_i32_0 : i32, i32
  }
  func.func @transform_1(%arg0: i32) -> (i32, i32) {
    %c0_i32 = arith.constant 0 : i32
    %c0_i32_0 = arith.constant 0 : i32
    %c0_i32_1 = arith.constant 0 : i32
    return %c0_i32, %c0_i32_0 : i32, i32
  }
  func.func @transform_2(%arg0: i32) -> (i32, i32) {
    %c0_i32 = arith.constant 0 : i32
    %c0_i32_0 = arith.constant 0 : i32
    %c0_i32_1 = arith.constant 0 : i32
    return %c0_i32, %c0_i32_0 : i32, i32
  }
  func.func @transform_3(%arg0: i32) -> (i32, i32) {
    %c0_i32 = arith.constant 0 : i32
    %c0_i32_0 = arith.constant 0 : i32
    %c0_i32_1 = arith.constant 0 : i32
    return %c0_i32, %c0_i32_0 : i32, i32
  }
  func.func @transform_4(%arg0: i32) -> (i32, i32) {
    %c0_i32 = arith.constant 0 : i32
    %c0_i32_0 = arith.constant 0 : i32
    %c0_i32_1 = arith.constant 0 : i32
    return %c0_i32, %c0_i32_0 : i32, i32
  }
  func.func @transform_5(%arg0: i32) -> (i32, i32) {
    %c0_i32 = arith.constant 0 : i32
    %c0_i32_0 = arith.constant 0 : i32
    %c0_i32_1 = arith.constant 0 : i32
    return %c0_i32, %c0_i32_0 : i32, i32
  }
  func.func @transform_6(%arg0: i32) -> (i32, i32) {
    %c0_i32 = arith.constant 0 : i32
    %c0_i32_0 = arith.constant 0 : i32
    %c0_i32_1 = arith.constant 0 : i32
    return %c0_i32, %c0_i32_0 : i32, i32
  }
  func.func @transform_7(%arg0: i32) -> (i32, i32) {
    %c0_i32 = arith.constant 0 : i32
    %c0_i32_0 = arith.constant 0 : i32
    return %c0_i32, %arg0 : i32, i32
  }
  func.func @transform_8(%arg0: i32) -> (i32, i32) {
    %c0_i32 = arith.constant 0 : i32
    %c0_i32_0 = arith.constant 0 : i32
    return %c0_i32, %arg0 : i32, i32
  }
}

</mosaic_0001>

<llo_original>
// kernel: tpu_custom_call.1
$region0: #{tpu_custom_call.1}
  #allocation0 [shape = 'u32[]', space=smem, size = 0x4, offset = 0x4, fixed_abs, tag = 'smem constant byte address 0x4 - core index']
  #allocation1 [shape = 'u32[72,128]{1,0:T(1,128)}', space=vmem, size = 0x9000, scoped, tag = 'internal scratch']
  %s0 = inlined_call_operand.vmem [shape: f32[8,1], index: 0, kind: input, shape index: {}]
  %s1 = inlined_call_operand.vmem [shape: f32[128,8], index: 1, kind: input, shape index: {}]
  %s2 = inlined_call_operand.vmem [shape: f32[128,1], index: 2, kind: input, shape index: {}]
  %s3 = inlined_call_operand.vmem [shape: f32[128,128], index: 3, kind: input, shape index: {}]
  %s4 = inlined_call_operand.vmem [shape: f32[128,1], index: 4, kind: input, shape index: {}]
  %s5 = inlined_call_operand.vmem [shape: f32[4,128], index: 5, kind: input, shape index: {}]
  %s6 = inlined_call_operand.vmem [shape: f32[4,1], index: 6, kind: input, shape index: {}]
  %s7 = inlined_call_operand.vmem [shape: f32[8,3000], index: 7, kind: input, shape index: {}]
  %s8 = inlined_call_operand.hbm [shape: f32[12,3000], index: 8, kind: output, shape index: {}]
  %s9 = sld [smem:[#allocation0]]
  $region65: #{tpu_custom_call.1} parent=0
    _
  %s11 = ssub.s32 1, %s9
  %s12 = scalar_select 0, %s11, %s9
  $region1: #{tpu_custom_call.1} parent=0
    #allocation2 [shape = 'u8[196608]{0}', space=vmem, size = 0x30000, scoped, tag = 'output window, operand 0']
    #allocation3 [shape = 's32[2]{0}', space=sflag, size = 0x8, scoped, tag = 'scoped memory for tpu_custom_call.1']
    %13 = vsyncpa [#allocation3], 0
    %s14 = scalar_lea.sflag [#allocation3], 1
    %15 = vsyncpa %s14, 0
    loop: start=0, step=1, limit=4
    $region2: #{tpu_custom_call.1} parent=1 // loop_pre_header
      _
    $region3: #{tpu_custom_call.1} parent=1 // loop_header
      %s17 = sphi 0, %s21
      %p18 = scmp.ge.s32.totalorder %s17, 4
      %s25 = sphi 0, %s25
      %s27 = sphi 0, %s25
      %s28 = sphi 0, %s27
      %s42 = sphi 0, %s28
      %s46 = sphi 0, %s46
      %s48 = sphi 0, %s46
      %s49 = sphi 0, %s48
      %s63 = sphi 0, %s49
      %s67 = sphi 0, %s67
      %s69 = sphi 0, %s67
      %s70 = sphi 0, %s69
      %s84 = sphi 0, %s70
      %s88 = sphi 0, %s88
      %s90 = sphi 0, %s88
      %s91 = sphi 0, %s90
      %s105 = sphi 0, %s91
      %s109 = sphi 0, %s109
      %s111 = sphi 0, %s109
      %s112 = sphi 0, %s111
      %s126 = sphi 0, %s112
      %s130 = sphi 0, %s130
      %s132 = sphi 0, %s130
      %s133 = sphi 0, %s132
      %s147 = sphi 0, %s133
      %s151 = sphi 0, %s151
      %s153 = sphi 0, %s151
      %s154 = sphi 0, %s153
      %s168 = sphi 0, %s154
      %s174 = sphi 0, %s176
      %s177 = sphi 0, %s174
      %s178 = sphi 0, %s177
      %s194 = sphi 0, %s178
      %s200 = sphi 0, %s202
      %s203 = sphi 0, %s200
      %s204 = sphi 0, %s203
      %s220 = sphi 0, %s204
    $region4: #{tpu_custom_call.1} parent=1 // loop_header_branch
      %20 = sbr.rel (%p18) target = $region8
    $region5: #{tpu_custom_call.1} parent=1 // loop_body
      %s22 = ssub.s32 %s17, 1
      %s23 = ssub.s32 %s17, 2
      %s24 = sadd.s32 %s17, 1
      %s26 = sadd.s32 %s25, 1
      %p29 = scmp.eq.s32.totalorder %s17, 1
      %p30 = scmp.ne.s32.totalorder %s25, %s27
      %p31 = scmp.eq.s32.totalorder %s17, 0
      %p32 = por %p30, %p31
      %p33 = scmp.ne.s32.totalorder %s25, %s27
      %p34 = scmp.eq.s32.totalorder %s22, 1
      %p35 = por %p33, %p34
      %p36 = scmp.ne.s32.totalorder %s27, %s28
      %p37 = scmp.eq.s32.totalorder %s22, 0
      %p38 = por %p36, %p37
      %p39 = scmp.ne.s32.totalorder %s27, %s28
      %p40 = scmp.eq.s32.totalorder %s23, 1
      %p41 = por %p39, %p40
      %p43 = scmp.ne.s32.totalorder %s28, %s42
      %p44 = scmp.eq.s32.totalorder %s23, 0
      %p45 = por %p43, %p44
      %s47 = sadd.s32 %s46, 1
      %p50 = scmp.eq.s32.totalorder %s17, 1
      %p51 = scmp.ne.s32.totalorder %s46, %s48
      %p52 = scmp.eq.s32.totalorder %s17, 0
      %p53 = por %p51, %p52
      %p54 = scmp.ne.s32.totalorder %s46, %s48
      %p55 = scmp.eq.s32.totalorder %s22, 1
      %p56 = por %p54, %p55
      %p57 = scmp.ne.s32.totalorder %s48, %s49
      %p58 = scmp.eq.s32.totalorder %s22, 0
      %p59 = por %p57, %p58
      %p60 = scmp.ne.s32.totalorder %s48, %s49
      %p61 = scmp.eq.s32.totalorder %s23, 1
      %p62 = por %p60, %p61
      %p64 = scmp.ne.s32.totalorder %s49, %s63
      %p65 = scmp.eq.s32.totalorder %s23, 0
      %p66 = por %p64, %p65
      %s68 = sadd.s32 %s67, 1
      %p71 = scmp.eq.s32.totalorder %s17, 1
      %p72 = scmp.ne.s32.totalorder %s67, %s69
      %p73 = scmp.eq.s32.totalorder %s17, 0
      %p74 = por %p72, %p73
      %p75 = scmp.ne.s32.totalorder %s67, %s69
      %p76 = scmp.eq.s32.totalorder %s22, 1
      %p77 = por %p75, %p76
      %p78 = scmp.ne.s32.totalorder %s69, %s70
      %p79 = scmp.eq.s32.totalorder %s22, 0
      %p80 = por %p78, %p79
      %p81 = scmp.ne.s32.totalorder %s69, %s70
      %p82 = scmp.eq.s32.totalorder %s23, 1
      %p83 = por %p81, %p82
      %p85 = scmp.ne.s32.totalorder %s70, %s84
      %p86 = scmp.eq.s32.totalorder %s23, 0
      %p87 = por %p85, %p86
      %s89 = sadd.s32 %s88, 1
      %p92 = scmp.eq.s32.totalorder %s17, 1
      %p93 = scmp.ne.s32.totalorder %s88, %s90
      %p94 = scmp.eq.s32.totalorder %s17, 0
      %p95 = por %p93, %p94
      %p96 = scmp.ne.s32.totalorder %s88, %s90
      %p97 = scmp.eq.s32.totalorder %s22, 1
      %p98 = por %p96, %p97
      %p99 = scmp.ne.s32.totalorder %s90, %s91
      %p100 = scmp.eq.s32.totalorder %s22, 0
      %p101 = por %p99, %p100
      %p102 = scmp.ne.s32.totalorder %s90, %s91
      %p103 = scmp.eq.s32.totalorder %s23, 1
      %p104 = por %p102, %p103
      %p106 = scmp.ne.s32.totalorder %s91, %s105
      %p107 = scmp.eq.s32.totalorder %s23, 0
      %p108 = por %p106, %p107
      %s110 = sadd.s32 %s109, 1
      %p113 = scmp.eq.s32.totalorder %s17, 1
      %p114 = scmp.ne.s32.totalorder %s109, %s111
      %p115 = scmp.eq.s32.totalorder %s17, 0
      %p116 = por %p114, %p115
      %p117 = scmp.ne.s32.totalorder %s109, %s111
      %p118 = scmp.eq.s32.totalorder %s22, 1
      %p119 = por %p117, %p118
      %p120 = scmp.ne.s32.totalorder %s111, %s112
      %p121 = scmp.eq.s32.totalorder %s22, 0
      %p122 = por %p120, %p121
      %p123 = scmp.ne.s32.totalorder %s111, %s112
      %p124 = scmp.eq.s32.totalorder %s23, 1
      %p125 = por %p123, %p124
      %p127 = scmp.ne.s32.totalorder %s112, %s126
      %p128 = scmp.eq.s32.totalorder %s23, 0
      %p129 = por %p127, %p128
      %s131 = sadd.s32 %s130, 1
      %p134 = scmp.eq.s32.totalorder %s17, 1
      %p135 = scmp.ne.s32.totalorder %s130, %s132
      %p136 = scmp.eq.s32.totalorder %s17, 0
      %p137 = por %p135, %p136
      %p138 = scmp.ne.s32.totalorder %s130, %s132
      %p139 = scmp.eq.s32.totalorder %s22, 1
      %p140 = por %p138, %p139
      %p141 = scmp.ne.s32.totalorder %s132, %s133
      %p142 = scmp.eq.s32.totalorder %s22, 0
      %p143 = por %p141, %p142
      %p144 = scmp.ne.s32.totalorder %s132, %s133
      %p145 = scmp.eq.s32.totalorder %s23, 1
      %p146 = por %p144, %p145
      %p148 = scmp.ne.s32.totalorder %s133, %s147
      %p149 = scmp.eq.s32.totalorder %s23, 0
      %p150 = por %p148, %p149
      %s152 = sadd.s32 %s151, 1
      %p155 = scmp.eq.s32.totalorder %s17, 1
      %p156 = scmp.ne.s32.totalorder %s151, %s153
      %p157 = scmp.eq.s32.totalorder %s17, 0
      %p158 = por %p156, %p157
      %p159 = scmp.ne.s32.totalorder %s151, %s153
      %p160 = scmp.eq.s32.totalorder %s22, 1
      %p161 = por %p159, %p160
      %p162 = scmp.ne.s32.totalorder %s153, %s154
      %p163 = scmp.eq.s32.totalorder %s22, 0
      %p164 = por %p162, %p163
      %p165 = scmp.ne.s32.totalorder %s153, %s154
      %p166 = scmp.eq.s32.totalorder %s23, 1
      %p167 = por %p165, %p166
      %p169 = scmp.ne.s32.totalorder %s154, %s168
      %p170 = scmp.eq.s32.totalorder %s23, 0
      %p171 = por %p169, %p170
      %s172 = ssub.s32 %s17, %s24
      %p173 = scmp.eq.s32.totalorder %s172, 0
      %s175 = sadd.s32 %s174, 1
      %s176 = scalar_select %p173, %s174, %s175
      %p179 = pneg %p173
      %p180 = scmp.eq.s32.totalorder %s17, 1
      %p181 = por %p179, %p180
      %p182 = scmp.ne.s32.totalorder %s174, %s177
      %p183 = scmp.eq.s32.totalorder %s17, 0
      %p184 = por %p182, %p183
      %p185 = scmp.ne.s32.totalorder %s174, %s177
      %p186 = scmp.eq.s32.totalorder %s22, 1
      %p187 = por %p185, %p186
      %p188 = scmp.ne.s32.totalorder %s177, %s178
      %p189 = scmp.eq.s32.totalorder %s22, 0
      %p190 = por %p188, %p189
      %p191 = scmp.ne.s32.totalorder %s177, %s178
      %p192 = scmp.eq.s32.totalorder %s23, 1
      %p193 = por %p191, %p192
      %p195 = scmp.ne.s32.totalorder %s178, %s194
      %p196 = scmp.eq.s32.totalorder %s23, 0
      %p197 = por %p195, %p196
      %s198 = ssub.s32 %s17, %s24
      %p199 = scmp.eq.s32.totalorder %s198, 0
      %s201 = sadd.s32 %s200, 1
      %s202 = scalar_select %p199, %s200, %s201
      %p205 = pneg %p199
      %p206 = scmp.eq.s32.totalorder %s17, 1
      %p207 = por %p205, %p206
      %p208 = scmp.ne.s32.totalorder %s200, %s203
      %p209 = scmp.eq.s32.totalorder %s17, 0
      %p210 = por %p208, %p209
      %p211 = scmp.ne.s32.totalorder %s200, %s203
      %p212 = scmp.eq.s32.totalorder %s22, 1
      %p213 = por %p211, %p212
      %p214 = scmp.ne.s32.totalorder %s203, %s204
      %p215 = scmp.eq.s32.totalorder %s22, 0
      %p216 = por %p214, %p215
      %p217 = scmp.ne.s32.totalorder %s203, %s204
      %p218 = scmp.eq.s32.totalorder %s23, 1
      %p219 = por %p217, %p218
      %p221 = scmp.ne.s32.totalorder %s204, %s220
      %p222 = scmp.eq.s32.totalorder %s23, 0
      %p223 = por %p221, %p222
      %p224 = scmp.le.s32.totalorder 1, %s17
      %p225 = scmp.lt.s32.totalorder %s17, 3
      %p226 = pnand %p224, %p225
      %p227 = pneg %p226
      // Predicated region
      $region9: #{tpu_custom_call.1} parent=5 // pred_check
        _
      $region10: #{tpu_custom_call.1} parent=5 // pred_check_branch
        %229 = sbr.rel (%p226) target = $region12
      $region11: #{tpu_custom_call.1} parent=5 // pred_region
        %s230 = ssub.s32 %s17, 1
        // Predicated region
        $region13: #{tpu_custom_call.1} parent=11 // pred_check
          %p231 = pneg %p38
        $region14: #{tpu_custom_call.1} parent=11 // pred_check_branch
          %233 = sbr.rel (%p231) target = $region16
        $region15: #{tpu_custom_call.1} parent=11 // pred_region
          _
        $region16: #{tpu_custom_call.1} parent=11 // pred_fallthru
          _
        // Predicated region
        $region17: #{tpu_custom_call.1} parent=11 // pred_check
          %p234 = pneg %p59
        $region18: #{tpu_custom_call.1} parent=11 // pred_check_branch
          %236 = sbr.rel (%p234) target = $region20
        $region19: #{tpu_custom_call.1} parent=11 // pred_region
          _
        $region20: #{tpu_custom_call.1} parent=11 // pred_fallthru
          _
        // Predicated region
        $region21: #{tpu_custom_call.1} parent=11 // pred_check
          %p237 = pneg %p80
        $region22: #{tpu_custom_call.1} parent=11 // pred_check_branch
          %239 = sbr.rel (%p237) target = $region24
        $region23: #{tpu_custom_call.1} parent=11 // pred_region
          _
        $region24: #{tpu_custom_call.1} parent=11 // pred_fallthru
          _
        // Predicated region
        $region25: #{tpu_custom_call.1} parent=11 // pred_check
          %p240 = pneg %p101
        $region26: #{tpu_custom_call.1} parent=11 // pred_check_branch
          %242 = sbr.rel (%p240) target = $region28
        $region27: #{tpu_custom_call.1} parent=11 // pred_region
          _
        $region28: #{tpu_custom_call.1} parent=11 // pred_fallthru
          _
        // Predicated region
        $region29: #{tpu_custom_call.1} parent=11 // pred_check
          %p243 = pneg %p122
        $region30: #{tpu_custom_call.1} parent=11 // pred_check_branch
          %245 = sbr.rel (%p243) target = $region32
        $region31: #{tpu_custom_call.1} parent=11 // pred_region
          _
        $region32: #{tpu_custom_call.1} parent=11 // pred_fallthru
          _
        // Predicated region
        $region33: #{tpu_custom_call.1} parent=11 // pred_check
          %p246 = pneg %p143
        $region34: #{tpu_custom_call.1} parent=11 // pred_check_branch
          %248 = sbr.rel (%p246) target = $region36
        $region35: #{tpu_custom_call.1} parent=11 // pred_region
          _
        $region36: #{tpu_custom_call.1} parent=11 // pred_fallthru
          _
        // Predicated region
        $region37: #{tpu_custom_call.1} parent=11 // pred_check
          %p249 = pneg %p164
        $region38: #{tpu_custom_call.1} parent=11 // pred_check_branch
          %251 = sbr.rel (%p249) target = $region40
        $region39: #{tpu_custom_call.1} parent=11 // pred_region
          _
        $region40: #{tpu_custom_call.1} parent=11 // pred_fallthru
          _
      $region12: #{tpu_custom_call.1} parent=5 // pred_fallthru
        _
      %p252 = scmp.lt.s32.totalorder %s17, 2
      // Predicated region
      $region41: #{tpu_custom_call.1} parent=5 // pred_check
        %p253 = pneg %p252
      $region42: #{tpu_custom_call.1} parent=5 // pred_check_branch
        %255 = sbr.rel (%p253) target = $region44
      $region43: #{tpu_custom_call.1} parent=5 // pred_region
        // Predicated region
        $region45: #{tpu_custom_call.1} parent=43 // pred_check
          %p256 = pneg %p184
        $region46: #{tpu_custom_call.1} parent=43 // pred_check_branch
          %258 = sbr.rel (%p256) target = $region48
        $region47: #{tpu_custom_call.1} parent=43 // pred_region
          %s259 = smul.u32 12, %s17
          %p260 = scmp.lt.s32.totalorder %s259, 23
          %s261 = scalar_select %p260, %s259, 23
          %s262 = smul.addr %s261, 8
          %s263 = scalar_lea.vmem %s7, %s262
          %s264 = smul.u32 12, %s17
        $region48: #{tpu_custom_call.1} parent=43 // pred_fallthru
          _
      $region44: #{tpu_custom_call.1} parent=5 // pred_fallthru
        _
      %p265 = scmp.le.s32.totalorder 1, %s17
      %p266 = scmp.lt.s32.totalorder %s17, 3
      %p267 = pnand %p265, %p266
      %p268 = pneg %p267
      // Predicated region
      $region49: #{tpu_custom_call.1} parent=5 // pred_check
        _
      $region50: #{tpu_custom_call.1} parent=5 // pred_check_branch
        %270 = sbr.rel (%p267) target = $region52
      $region51: #{tpu_custom_call.1} parent=5 // pred_region
        %s271 = ssub.s32 %s17, 1
        %p272 = pneg %p38
        %p273 = pneg %p35
        %p274 = pneg %p59
        %p275 = pneg %p56
        %p276 = pneg %p80
        %p277 = pneg %p77
        %p278 = pneg %p101
        %p279 = pneg %p98
        %p280 = pneg %p122
        %p281 = pneg %p119
        %p282 = pneg %p143
        %p283 = pneg %p140
        %p284 = pneg %p164
        %p285 = pneg %p161
        %s286 = smul.u32 12, %s22
        %p287 = scmp.lt.s32.totalorder %s286, 23
        %s288 = scalar_select %p287, %s286, 23
        %s289 = smul.addr %s288, 8
        %s290 = scalar_lea.vmem %s7, %s289
        %p291 = pneg %p190
        %p292 = pneg %p187
        %p293 = pneg %p216
        %p294 = pneg %p213
        %s295 = sand.u32 %s203, 1
        %s296 = scalar_lea.sflag [#allocation3], %s295
        %s297 = sand.u32 %s203, 1
        %s298 = smul.addr %s297, 192
        %s299 = scalar_lea.vmem [#allocation2], %s298
        %s300 = smul.u32 12, %s22
        %p301 = scmp.lt.s32.totalorder %s300, 23
        %s302 = scalar_select %p301, %s300, 23
        %s303 = smul.addr %s302, 8
        %s304 = scalar_lea.vmem %s7, %s303
        %s305 = smul.u32 12, %s22
        %s306 = smul.u32 12, %s22
        %v307 = vld [vmem:[%s304] sm:$0xff]
        %v308 = vld [vmem:[%s304 + $0x8] sm:$0xff]
        %v309 = vld [vmem:[%s304 + $0x10] sm:$0xff]
        %v310 = vld [vmem:[%s304 + $0x18] sm:$0xff]
        %v311 = vld [vmem:[%s304 + $0x20] sm:$0xff]
        %v312 = vld [vmem:[%s304 + $0x28] sm:$0xff]
        %v313 = vld [vmem:[%s304 + $0x30] sm:$0xff]
        %v314 = vld [vmem:[%s304 + $0x38] sm:$0xff]
        %v315 = vld [vmem:[%s304 + $0x40] sm:$0xff]
        %v316 = vld [vmem:[%s304 + $0x48] sm:$0xff]
        %v317 = vld [vmem:[%s304 + $0x50] sm:$0xff]
        %v318 = vld [vmem:[%s304 + $0x58] sm:$0xff]
        %v319 = vld [vmem:[%s1] sm:$0xff]
        %v320 = vld [vmem:[%s1 + $0x8] sm:$0xff]
        %v321 = vld [vmem:[%s1 + $0x10] sm:$0xff]
        %v322 = vld [vmem:[%s1 + $0x18] sm:$0xff]
        %v323 = vld [vmem:[%s1 + $0x20] sm:$0xff]
        %v324 = vld [vmem:[%s1 + $0x28] sm:$0xff]
        %v325 = vld [vmem:[%s1 + $0x30] sm:$0xff]
        %v326 = vld [vmem:[%s1 + $0x38] sm:$0xff]
        %v327 = vld [vmem:[%s1 + $0x40] sm:$0xff]
        %v328 = vld [vmem:[%s1 + $0x48] sm:$0xff]
        %v329 = vld [vmem:[%s1 + $0x50] sm:$0xff]
        %v330 = vld [vmem:[%s1 + $0x58] sm:$0xff]
        %v331 = vld [vmem:[%s1 + $0x60] sm:$0xff]
        %v332 = vld [vmem:[%s1 + $0x68] sm:$0xff]
        %v333 = vld [vmem:[%s1 + $0x70] sm:$0xff]
        %v334 = vld [vmem:[%s1 + $0x78] sm:$0xff]
        %v335 = vld [vmem:[%s2] sm:$0xff]
        %v336 = vld [vmem:[%s2 + $0x8] sm:$0xff]
        %v337 = vld [vmem:[%s2 + $0x10] sm:$0xff]
        %v338 = vld [vmem:[%s2 + $0x18] sm:$0xff]
        %v339 = vld [vmem:[%s2 + $0x20] sm:$0xff]
        %v340 = vld [vmem:[%s2 + $0x28] sm:$0xff]
        %v341 = vld [vmem:[%s2 + $0x30] sm:$0xff]
        %v342 = vld [vmem:[%s2 + $0x38] sm:$0xff]
        %v343 = vld [vmem:[%s2 + $0x40] sm:$0xff]
        %v344 = vld [vmem:[%s2 + $0x48] sm:$0xff]
        %v345 = vld [vmem:[%s2 + $0x50] sm:$0xff]
        %v346 = vld [vmem:[%s2 + $0x58] sm:$0xff]
        %v347 = vld [vmem:[%s2 + $0x60] sm:$0xff]
        %v348 = vld [vmem:[%s2 + $0x68] sm:$0xff]
        %v349 = vld [vmem:[%s2 + $0x70] sm:$0xff]
        %v350 = vld [vmem:[%s2 + $0x78] sm:$0xff]
        %352 = vset.pattern.permute.xlu0 0
        %353 = vperm.xlu0 %352, %v335
        %v354 = vpop.permute.xlu0 %353
        %357 = vset.pattern.permute.xlu0 0
        %358 = vperm.xlu0 %357, %v336
        %v359 = vpop.permute.xlu0 %358
        %362 = vset.pattern.permute.xlu0 0
        %363 = vperm.xlu0 %362, %v337
        %v364 = vpop.permute.xlu0 %363
        %367 = vset.pattern.permute.xlu0 0
        %368 = vperm.xlu0 %367, %v338
        %v369 = vpop.permute.xlu0 %368
        %372 = vset.pattern.permute.xlu0 0
        %373 = vperm.xlu0 %372, %v339
        %v374 = vpop.permute.xlu0 %373
        %377 = vset.pattern.permute.xlu0 0
        %378 = vperm.xlu0 %377, %v340
        %v379 = vpop.permute.xlu0 %378
        %382 = vset.pattern.permute.xlu0 0
        %383 = vperm.xlu0 %382, %v341
        %v384 = vpop.permute.xlu0 %383
        %387 = vset.pattern.permute.xlu0 0
        %388 = vperm.xlu0 %387, %v342
        %v389 = vpop.permute.xlu0 %388
        %392 = vset.pattern.permute.xlu0 0
        %393 = vperm.xlu0 %392, %v343
        %v394 = vpop.permute.xlu0 %393
        %397 = vset.pattern.permute.xlu0 0
        %398 = vperm.xlu0 %397, %v344
        %v399 = vpop.permute.xlu0 %398
        %402 = vset.pattern.permute.xlu0 0
        %403 = vperm.xlu0 %402, %v345
        %v404 = vpop.permute.xlu0 %403
        %407 = vset.pattern.permute.xlu0 0
        %408 = vperm.xlu0 %407, %v346
        %v409 = vpop.permute.xlu0 %408
        %412 = vset.pattern.permute.xlu0 0
        %413 = vperm.xlu0 %412, %v347
        %v414 = vpop.permute.xlu0 %413
        %417 = vset.pattern.permute.xlu0 0
        %418 = vperm.xlu0 %417, %v348
        %v419 = vpop.permute.xlu0 %418
        %422 = vset.pattern.permute.xlu0 0
        %423 = vperm.xlu0 %422, %v349
        %v424 = vpop.permute.xlu0 %423
        %427 = vset.pattern.permute.xlu0 0
        %428 = vperm.xlu0 %427, %v350
        %v429 = vpop.permute.xlu0 %428
        %vm431 = vcmask 64512
        %v433 = vsel %vm431, %v319, 0
        %v436 = vsel %vm431, %v320, 0
        %v439 = vsel %vm431, %v321, 0
        %v442 = vsel %vm431, %v322, 0
        %v445 = vsel %vm431, %v323, 0
        %v448 = vsel %vm431, %v324, 0
        %v451 = vsel %vm431, %v325, 0
        %v454 = vsel %vm431, %v326, 0
        %v457 = vsel %vm431, %v327, 0
        %v460 = vsel %vm431, %v328, 0
        %v463 = vsel %vm431, %v329, 0
        %v466 = vsel %vm431, %v330, 0
        %v469 = vsel %vm431, %v331, 0
        %v472 = vsel %vm431, %v332, 0
        %v475 = vsel %vm431, %v333, 0
        %v478 = vsel %vm431, %v334, 0
        %480 = vmatpush.msra.mxu0 0.0
        %481 = vmatpush.msra.mxu0 0.0
        %482 = vmatpush.msra.mxu0 0.0
        %483 = vmatpush.msra.mxu0 0.0
        %484 = vmatpush.msra.mxu0 0.0
        %485 = vmatpush.msra.mxu0 0.0
        %486 = vmatpush.msra.mxu0 0.0
        %487 = vmatpush.msra.mxu0 0.0
        %488 = vmatpush.msra.mxu0 0.0
        %489 = vmatpush.msra.mxu0 0.0
        %490 = vmatpush.msra.mxu0 0.0
        %491 = vmatpush.msra.mxu0 0.0
        %492 = vmatpush.msra.mxu0 0.0
        %493 = vmatpush.msra.mxu0 0.0
        %494 = vmatpush.msra.mxu0 0.0
        %495 = vmatpush.msra.mxu0 %v307
        %496 = vmatmul.f32.gmra.mxu0 %v433
        %v497 = vpop.f32.mrf.mxu0
        %v498 = vadd.f32 %v354, %v497
        %499 = vmatmul.f32.gmra.mxu0 %v436
        %v500 = vpop.f32.mrf.mxu0
        %v501 = vadd.f32 %v359, %v500
        %502 = vmatmul.f32.gmra.mxu0 %v439
        %v503 = vpop.f32.mrf.mxu0
        %v504 = vadd.f32 %v364, %v503
        %505 = vmatmul.f32.gmra.mxu0 %v442
        %v506 = vpop.f32.mrf.mxu0
        %v507 = vadd.f32 %v369, %v506
        %508 = vmatmul.f32.gmra.mxu0 %v445
        %v509 = vpop.f32.mrf.mxu0
        %v510 = vadd.f32 %v374, %v509
        %511 = vmatmul.f32.gmra.mxu0 %v448
        %v512 = vpop.f32.mrf.mxu0
        %v513 = vadd.f32 %v379, %v512
        %514 = vmatmul.f32.gmra.mxu0 %v451
        %v515 = vpop.f32.mrf.mxu0
        %v516 = vadd.f32 %v384, %v515
        %517 = vmatmul.f32.gmra.mxu0 %v454
        %v518 = vpop.f32.mrf.mxu0
        %v519 = vadd.f32 %v389, %v518
        %520 = vmatmul.f32.gmra.mxu0 %v457
        %v521 = vpop.f32.mrf.mxu0
        %v522 = vadd.f32 %v394, %v521
        %523 = vmatmul.f32.gmra.mxu0 %v460
        %v524 = vpop.f32.mrf.mxu0
        %v525 = vadd.f32 %v399, %v524
        %526 = vmatmul.f32.gmra.mxu0 %v463
        %v527 = vpop.f32.mrf.mxu0
        %v528 = vadd.f32 %v404, %v527
        %529 = vmatmul.f32.gmra.mxu0 %v466
        %v530 = vpop.f32.mrf.mxu0
        %v531 = vadd.f32 %v409, %v530
        %532 = vmatmul.f32.gmra.mxu0 %v469
        %v533 = vpop.f32.mrf.mxu0
        %v534 = vadd.f32 %v414, %v533
        %535 = vmatmul.f32.gmra.mxu0 %v472
        %v536 = vpop.f32.mrf.mxu0
        %v537 = vadd.f32 %v419, %v536
        %538 = vmatmul.f32.gmra.mxu0 %v475
        %v539 = vpop.f32.mrf.mxu0
        %v540 = vadd.f32 %v424, %v539
        %541 = vmatmul.f32.gmra.mxu0 %v478
        %v542 = vpop.f32.mrf.mxu0
        %v543 = vadd.f32 %v429, %v542
        %544 = vdwg.mxu0
        %545 = vmatpush.msra.mxu0 0.0
        %546 = vmatpush.msra.mxu0 0.0
        %547 = vmatpush.msra.mxu0 0.0
        %548 = vmatpush.msra.mxu0 0.0
        %549 = vmatpush.msra.mxu0 0.0
        %550 = vmatpush.msra.mxu0 0.0
        %551 = vmatpush.msra.mxu0 0.0
        %552 = vmatpush.msra.mxu0 0.0
        %553 = vmatpush.msra.mxu0 0.0
        %554 = vmatpush.msra.mxu0 0.0
        %555 = vmatpush.msra.mxu0 0.0
        %556 = vmatpush.msra.mxu0 0.0
        %557 = vmatpush.msra.mxu0 0.0
        %558 = vmatpush.msra.mxu0 0.0
        %559 = vmatpush.msra.mxu0 0.0
        %560 = vmatpush.msra.mxu0 %v308
        %561 = vmatmul.f32.gmra.mxu0 %v433
        %v562 = vpop.f32.mrf.mxu0
        %v563 = vadd.f32 %v354, %v562
        %564 = vmatmul.f32.gmra.mxu0 %v436
        %v565 = vpop.f32.mrf.mxu0
        %v566 = vadd.f32 %v359, %v565
        %567 = vmatmul.f32.gmra.mxu0 %v439
        %v568 = vpop.f32.mrf.mxu0
        %v569 = vadd.f32 %v364, %v568
        %570 = vmatmul.f32.gmra.mxu0 %v442
        %v571 = vpop.f32.mrf.mxu0
        %v572 = vadd.f32 %v369, %v571
        %573 = vmatmul.f32.gmra.mxu0 %v445
        %v574 = vpop.f32.mrf.mxu0
        %v575 = vadd.f32 %v374, %v574
        %576 = vmatmul.f32.gmra.mxu0 %v448
        %v577 = vpop.f32.mrf.mxu0
        %v578 = vadd.f32 %v379, %v577
        %579 = vmatmul.f32.gmra.mxu0 %v451
        %v580 = vpop.f32.mrf.mxu0
        %v581 = vadd.f32 %v384, %v580
        %582 = vmatmul.f32.gmra.mxu0 %v454
        %v583 = vpop.f32.mrf.mxu0
        %v584 = vadd.f32 %v389, %v583
        %585 = vmatmul.f32.gmra.mxu0 %v457
        %v586 = vpop.f32.mrf.mxu0
        %v587 = vadd.f32 %v394, %v586
        %588 = vmatmul.f32.gmra.mxu0 %v460
        %v589 = vpop.f32.mrf.mxu0
        %v590 = vadd.f32 %v399, %v589
        %591 = vmatmul.f32.gmra.mxu0 %v463
        %v592 = vpop.f32.mrf.mxu0
        %v593 = vadd.f32 %v404, %v592
        %594 = vmatmul.f32.gmra.mxu0 %v466
        %v595 = vpop.f32.mrf.mxu0
        %v596 = vadd.f32 %v409, %v595
        %597 = vmatmul.f32.gmra.mxu0 %v469
        %v598 = vpop.f32.mrf.mxu0
        %v599 = vadd.f32 %v414, %v598
        %600 = vmatmul.f32.gmra.mxu0 %v472
        %v601 = vpop.f32.mrf.mxu0
        %v602 = vadd.f32 %v419, %v601
        %603 = vmatmul.f32.gmra.mxu0 %v475
        %v604 = vpop.f32.mrf.mxu0
        %v605 = vadd.f32 %v424, %v604
        %606 = vmatmul.f32.gmra.mxu0 %v478
        %v607 = vpop.f32.mrf.mxu0
        %v608 = vadd.f32 %v429, %v607
        %609 = vdwg.mxu0
        %610 = vmatpush.msra.mxu0 0.0
        %611 = vmatpush.msra.mxu0 0.0
        %612 = vmatpush.msra.mxu0 0.0
        %613 = vmatpush.msra.mxu0 0.0
        %614 = vmatpush.msra.mxu0 0.0
        %615 = vmatpush.msra.mxu0 0.0
        %616 = vmatpush.msra.mxu0 0.0
        %617 = vmatpush.msra.mxu0 0.0
        %618 = vmatpush.msra.mxu0 0.0
        %619 = vmatpush.msra.mxu0 0.0
        %620 = vmatpush.msra.mxu0 0.0
        %621 = vmatpush.msra.mxu0 0.0
        %622 = vmatpush.msra.mxu0 0.0
        %623 = vmatpush.msra.mxu0 0.0
        %624 = vmatpush.msra.mxu0 0.0
        %625 = vmatpush.msra.mxu0 %v309
        %626 = vmatmul.f32.gmra.mxu0 %v433
        %v627 = vpop.f32.mrf.mxu0
        %v628 = vadd.f32 %v354, %v627
        %629 = vmatmul.f32.gmra.mxu0 %v436
        %v630 = vpop.f32.mrf.mxu0
        %v631 = vadd.f32 %v359, %v630
        %632 = vmatmul.f32.gmra.mxu0 %v439
        %v633 = vpop.f32.mrf.mxu0
        %v634 = vadd.f32 %v364, %v633
        %635 = vmatmul.f32.gmra.mxu0 %v442
        %v636 = vpop.f32.mrf.mxu0
        %v637 = vadd.f32 %v369, %v636
        %638 = vmatmul.f32.gmra.mxu0 %v445
        %v639 = vpop.f32.mrf.mxu0
        %v640 = vadd.f32 %v374, %v639
        %641 = vmatmul.f32.gmra.mxu0 %v448
        %v642 = vpop.f32.mrf.mxu0
        %v643 = vadd.f32 %v379, %v642
        %644 = vmatmul.f32.gmra.mxu0 %v451
        %v645 = vpop.f32.mrf.mxu0
        %v646 = vadd.f32 %v384, %v645
        %647 = vmatmul.f32.gmra.mxu0 %v454
        %v648 = vpop.f32.mrf.mxu0
        %v649 = vadd.f32 %v389, %v648
        %650 = vmatmul.f32.gmra.mxu0 %v457
        %v651 = vpop.f32.mrf.mxu0
        %v652 = vadd.f32 %v394, %v651
        %653 = vmatmul.f32.gmra.mxu0 %v460
        %v654 = vpop.f32.mrf.mxu0
        %v655 = vadd.f32 %v399, %v654
        %656 = vmatmul.f32.gmra.mxu0 %v463
        %v657 = vpop.f32.mrf.mxu0
        %v658 = vadd.f32 %v404, %v657
        %659 = vmatmul.f32.gmra.mxu0 %v466
        %v660 = vpop.f32.mrf.mxu0
        %v661 = vadd.f32 %v409, %v660
        %662 = vmatmul.f32.gmra.mxu0 %v469
        %v663 = vpop.f32.mrf.mxu0
        %v664 = vadd.f32 %v414, %v663
        %665 = vmatmul.f32.gmra.mxu0 %v472
        %v666 = vpop.f32.mrf.mxu0
        %v667 = vadd.f32 %v419, %v666
        %668 = vmatmul.f32.gmra.mxu0 %v475
        %v669 = vpop.f32.mrf.mxu0
        %v670 = vadd.f32 %v424, %v669
        %671 = vmatmul.f32.gmra.mxu0 %v478
        %v672 = vpop.f32.mrf.mxu0
        %v673 = vadd.f32 %v429, %v672
        %674 = vdwg.mxu0
        %675 = vmatpush.msra.mxu0 0.0
        %676 = vmatpush.msra.mxu0 0.0
        %677 = vmatpush.msra.mxu0 0.0
        %678 = vmatpush.msra.mxu0 0.0
        %679 = vmatpush.msra.mxu0 0.0
        %680 = vmatpush.msra.mxu0 0.0
        %681 = vmatpush.msra.mxu0 0.0
        %682 = vmatpush.msra.mxu0 0.0
        %683 = vmatpush.msra.mxu0 0.0
        %684 = vmatpush.msra.mxu0 0.0
        %685 = vmatpush.msra.mxu0 0.0
        %686 = vmatpush.msra.mxu0 0.0
        %687 = vmatpush.msra.mxu0 0.0
        %688 = vmatpush.msra.mxu0 0.0
        %689 = vmatpush.msra.mxu0 0.0
        %690 = vmatpush.msra.mxu0 %v310
        %691 = vmatmul.f32.gmra.mxu0 %v433
        %v692 = vpop.f32.mrf.mxu0
        %v693 = vadd.f32 %v354, %v692
        %694 = vmatmul.f32.gmra.mxu0 %v436
        %v695 = vpop.f32.mrf.mxu0
        %v696 = vadd.f32 %v359, %v695
        %697 = vmatmul.f32.gmra.mxu0 %v439
        %v698 = vpop.f32.mrf.mxu0
        %v699 = vadd.f32 %v364, %v698
        %700 = vmatmul.f32.gmra.mxu0 %v442
        %v701 = vpop.f32.mrf.mxu0
        %v702 = vadd.f32 %v369, %v701
        %703 = vmatmul.f32.gmra.mxu0 %v445
        %v704 = vpop.f32.mrf.mxu0
        %v705 = vadd.f32 %v374, %v704
        %706 = vmatmul.f32.gmra.mxu0 %v448
        %v707 = vpop.f32.mrf.mxu0
        %v708 = vadd.f32 %v379, %v707
        %709 = vmatmul.f32.gmra.mxu0 %v451
        %v710 = vpop.f32.mrf.mxu0
        %v711 = vadd.f32 %v384, %v710
        %712 = vmatmul.f32.gmra.mxu0 %v454
        %v713 = vpop.f32.mrf.mxu0
        %v714 = vadd.f32 %v389, %v713
        %715 = vmatmul.f32.gmra.mxu0 %v457
        %v716 = vpop.f32.mrf.mxu0
        %v717 = vadd.f32 %v394, %v716
        %718 = vmatmul.f32.gmra.mxu0 %v460
        %v719 = vpop.f32.mrf.mxu0
        %v720 = vadd.f32 %v399, %v719
        %721 = vmatmul.f32.gmra.mxu0 %v463
        %v722 = vpop.f32.mrf.mxu0
        %v723 = vadd.f32 %v404, %v722
        %724 = vmatmul.f32.gmra.mxu0 %v466
        %v725 = vpop.f32.mrf.mxu0
        %v726 = vadd.f32 %v409, %v725
        %727 = vmatmul.f32.gmra.mxu0 %v469
        %v728 = vpop.f32.mrf.mxu0
        %v729 = vadd.f32 %v414, %v728
        %730 = vmatmul.f32.gmra.mxu0 %v472
        %v731 = vpop.f32.mrf.mxu0
        %v732 = vadd.f32 %v419, %v731
        %733 = vmatmul.f32.gmra.mxu0 %v475
        %v734 = vpop.f32.mrf.mxu0
        %v735 = vadd.f32 %v424, %v734
        %736 = vmatmul.f32.gmra.mxu0 %v478
        %v737 = vpop.f32.mrf.mxu0
        %v738 = vadd.f32 %v429, %v737
        %739 = vdwg.mxu0
        %740 = vmatpush.msra.mxu0 0.0
        %741 = vmatpush.msra.mxu0 0.0
        %742 = vmatpush.msra.mxu0 0.0
        %743 = vmatpush.msra.mxu0 0.0
        %744 = vmatpush.msra.mxu0 0.0
        %745 = vmatpush.msra.mxu0 0.0
        %746 = vmatpush.msra.mxu0 0.0
        %747 = vmatpush.msra.mxu0 0.0
        %748 = vmatpush.msra.mxu0 0.0
        %749 = vmatpush.msra.mxu0 0.0
        %750 = vmatpush.msra.mxu0 0.0
        %751 = vmatpush.msra.mxu0 0.0
        %752 = vmatpush.msra.mxu0 0.0
        %753 = vmatpush.msra.mxu0 0.0
        %754 = vmatpush.msra.mxu0 0.0
        %755 = vmatpush.msra.mxu0 %v311
        %756 = vmatmul.f32.gmra.mxu0 %v433
        %v757 = vpop.f32.mrf.mxu0
        %v758 = vadd.f32 %v354, %v757
        %759 = vmatmul.f32.gmra.mxu0 %v436
        %v760 = vpop.f32.mrf.mxu0
        %v761 = vadd.f32 %v359, %v760
        %762 = vmatmul.f32.gmra.mxu0 %v439
        %v763 = vpop.f32.mrf.mxu0
        %v764 = vadd.f32 %v364, %v763
        %765 = vmatmul.f32.gmra.mxu0 %v442
        %v766 = vpop.f32.mrf.mxu0
        %v767 = vadd.f32 %v369, %v766
        %768 = vmatmul.f32.gmra.mxu0 %v445
        %v769 = vpop.f32.mrf.mxu0
        %v770 = vadd.f32 %v374, %v769
        %771 = vmatmul.f32.gmra.mxu0 %v448
        %v772 = vpop.f32.mrf.mxu0
        %v773 = vadd.f32 %v379, %v772
        %774 = vmatmul.f32.gmra.mxu0 %v451
        %v775 = vpop.f32.mrf.mxu0
        %v776 = vadd.f32 %v384, %v775
        %777 = vmatmul.f32.gmra.mxu0 %v454
        %v778 = vpop.f32.mrf.mxu0
        %v779 = vadd.f32 %v389, %v778
        %780 = vmatmul.f32.gmra.mxu0 %v457
        %v781 = vpop.f32.mrf.mxu0
        %v782 = vadd.f32 %v394, %v781
        %783 = vmatmul.f32.gmra.mxu0 %v460
        %v784 = vpop.f32.mrf.mxu0
        %v785 = vadd.f32 %v399, %v784
        %786 = vmatmul.f32.gmra.mxu0 %v463
        %v787 = vpop.f32.mrf.mxu0
        %v788 = vadd.f32 %v404, %v787
        %789 = vmatmul.f32.gmra.mxu0 %v466
        %v790 = vpop.f32.mrf.mxu0
        %v791 = vadd.f32 %v409, %v790
        %792 = vmatmul.f32.gmra.mxu0 %v469
        %v793 = vpop.f32.mrf.mxu0
        %v794 = vadd.f32 %v414, %v793
        %795 = vmatmul.f32.gmra.mxu0 %v472
        %v796 = vpop.f32.mrf.mxu0
        %v797 = vadd.f32 %v419, %v796
        %798 = vmatmul.f32.gmra.mxu0 %v475
        %v799 = vpop.f32.mrf.mxu0
        %v800 = vadd.f32 %v424, %v799
        %801 = vmatmul.f32.gmra.mxu0 %v478
        %v802 = vpop.f32.mrf.mxu0
        %v803 = vadd.f32 %v429, %v802
        %804 = vdwg.mxu0
        %805 = vmatpush.msra.mxu0 0.0
        %806 = vmatpush.msra.mxu0 0.0
        %807 = vmatpush.msra.mxu0 0.0
        %808 = vmatpush.msra.mxu0 0.0
        %809 = vmatpush.msra.mxu0 0.0
        %810 = vmatpush.msra.mxu0 0.0
        %811 = vmatpush.msra.mxu0 0.0
        %812 = vmatpush.msra.mxu0 0.0
        %813 = vmatpush.msra.mxu0 0.0
        %814 = vmatpush.msra.mxu0 0.0
        %815 = vmatpush.msra.mxu0 0.0
        %816 = vmatpush.msra.mxu0 0.0
        %817 = vmatpush.msra.mxu0 0.0
        %818 = vmatpush.msra.mxu0 0.0
        %819 = vmatpush.msra.mxu0 0.0
        %820 = vmatpush.msra.mxu0 %v312
        %821 = vmatmul.f32.gmra.mxu0 %v433
        %v822 = vpop.f32.mrf.mxu0
        %v823 = vadd.f32 %v354, %v822
        %824 = vmatmul.f32.gmra.mxu0 %v436
        %v825 = vpop.f32.mrf.mxu0
        %v826 = vadd.f32 %v359, %v825
        %827 = vmatmul.f32.gmra.mxu0 %v439
        %v828 = vpop.f32.mrf.mxu0
        %v829 = vadd.f32 %v364, %v828
        %830 = vmatmul.f32.gmra.mxu0 %v442
        %v831 = vpop.f32.mrf.mxu0
        %v832 = vadd.f32 %v369, %v831
        %833 = vmatmul.f32.gmra.mxu0 %v445
        %v834 = vpop.f32.mrf.mxu0
        %v835 = vadd.f32 %v374, %v834
        %836 = vmatmul.f32.gmra.mxu0 %v448
        %v837 = vpop.f32.mrf.mxu0
        %v838 = vadd.f32 %v379, %v837
        %839 = vmatmul.f32.gmra.mxu0 %v451
        %v840 = vpop.f32.mrf.mxu0
        %v841 = vadd.f32 %v384, %v840
        %842 = vmatmul.f32.gmra.mxu0 %v454
        %v843 = vpop.f32.mrf.mxu0
        %v844 = vadd.f32 %v389, %v843
        %845 = vmatmul.f32.gmra.mxu0 %v457
        %v846 = vpop.f32.mrf.mxu0
        %v847 = vadd.f32 %v394, %v846
        %848 = vmatmul.f32.gmra.mxu0 %v460
        %v849 = vpop.f32.mrf.mxu0
        %v850 = vadd.f32 %v399, %v849
        %851 = vmatmul.f32.gmra.mxu0 %v463
        %v852 = vpop.f32.mrf.mxu0
        %v853 = vadd.f32 %v404, %v852
        %854 = vmatmul.f32.gmra.mxu0 %v466
        %v855 = vpop.f32.mrf.mxu0
        %v856 = vadd.f32 %v409, %v855
        %857 = vmatmul.f32.gmra.mxu0 %v469
        %v858 = vpop.f32.mrf.mxu0
        %v859 = vadd.f32 %v414, %v858
        %860 = vmatmul.f32.gmra.mxu0 %v472
        %v861 = vpop.f32.mrf.mxu0
        %v862 = vadd.f32 %v419, %v861
        %863 = vmatmul.f32.gmra.mxu0 %v475
        %v864 = vpop.f32.mrf.mxu0
        %v865 = vadd.f32 %v424, %v864
        %866 = vmatmul.f32.gmra.mxu0 %v478
        %v867 = vpop.f32.mrf.mxu0
        %v868 = vadd.f32 %v429, %v867
        %869 = vdwg.mxu0
        %870 = vmatpush.msra.mxu0 0.0
        %871 = vmatpush.msra.mxu0 0.0
        %872 = vmatpush.msra.mxu0 0.0
        %873 = vmatpush.msra.mxu0 0.0
        %874 = vmatpush.msra.mxu0 0.0
        %875 = vmatpush.msra.mxu0 0.0
        %876 = vmatpush.msra.mxu0 0.0
        %877 = vmatpush.msra.mxu0 0.0
        %878 = vmatpush.msra.mxu0 0.0
        %879 = vmatpush.msra.mxu0 0.0
        %880 = vmatpush.msra.mxu0 0.0
        %881 = vmatpush.msra.mxu0 0.0
        %882 = vmatpush.msra.mxu0 0.0
        %883 = vmatpush.msra.mxu0 0.0
        %884 = vmatpush.msra.mxu0 0.0
        %885 = vmatpush.msra.mxu0 %v313
        %886 = vmatmul.f32.gmra.mxu0 %v433
        %v887 = vpop.f32.mrf.mxu0
        %v888 = vadd.f32 %v354, %v887
        %889 = vmatmul.f32.gmra.mxu0 %v436
        %v890 = vpop.f32.mrf.mxu0
        %v891 = vadd.f32 %v359, %v890
        %892 = vmatmul.f32.gmra.mxu0 %v439
        %v893 = vpop.f32.mrf.mxu0
        %v894 = vadd.f32 %v364, %v893
        %895 = vmatmul.f32.gmra.mxu0 %v442
        %v896 = vpop.f32.mrf.mxu0
        %v897 = vadd.f32 %v369, %v896
        %898 = vmatmul.f32.gmra.mxu0 %v445
        %v899 = vpop.f32.mrf.mxu0
        %v900 = vadd.f32 %v374, %v899
        %901 = vmatmul.f32.gmra.mxu0 %v448
        %v902 = vpop.f32.mrf.mxu0
        %v903 = vadd.f32 %v379, %v902
        %904 = vmatmul.f32.gmra.mxu0 %v451
        %v905 = vpop.f32.mrf.mxu0
        %v906 = vadd.f32 %v384, %v905
        %907 = vmatmul.f32.gmra.mxu0 %v454
        %v908 = vpop.f32.mrf.mxu0
        %v909 = vadd.f32 %v389, %v908
        %910 = vmatmul.f32.gmra.mxu0 %v457
        %v911 = vpop.f32.mrf.mxu0
        %v912 = vadd.f32 %v394, %v911
        %913 = vmatmul.f32.gmra.mxu0 %v460
        %v914 = vpop.f32.mrf.mxu0
        %v915 = vadd.f32 %v399, %v914
        %916 = vmatmul.f32.gmra.mxu0 %v463
        %v917 = vpop.f32.mrf.mxu0
        %v918 = vadd.f32 %v404, %v917
        %919 = vmatmul.f32.gmra.mxu0 %v466
        %v920 = vpop.f32.mrf.mxu0
        %v921 = vadd.f32 %v409, %v920
        %922 = vmatmul.f32.gmra.mxu0 %v469
        %v923 = vpop.f32.mrf.mxu0
        %v924 = vadd.f32 %v414, %v923
        %925 = vmatmul.f32.gmra.mxu0 %v472
        %v926 = vpop.f32.mrf.mxu0
        %v927 = vadd.f32 %v419, %v926
        %928 = vmatmul.f32.gmra.mxu0 %v475
        %v929 = vpop.f32.mrf.mxu0
        %v930 = vadd.f32 %v424, %v929
        %931 = vmatmul.f32.gmra.mxu0 %v478
        %v932 = vpop.f32.mrf.mxu0
        %v933 = vadd.f32 %v429, %v932
        %934 = vdwg.mxu0
        %935 = vmatpush.msra.mxu0 0.0
        %936 = vmatpush.msra.mxu0 0.0
        %937 = vmatpush.msra.mxu0 0.0
        %938 = vmatpush.msra.mxu0 0.0
        %939 = vmatpush.msra.mxu0 0.0
        %940 = vmatpush.msra.mxu0 0.0
        %941 = vmatpush.msra.mxu0 0.0
        %942 = vmatpush.msra.mxu0 0.0
        %943 = vmatpush.msra.mxu0 0.0
        %944 = vmatpush.msra.mxu0 0.0
        %945 = vmatpush.msra.mxu0 0.0
        %946 = vmatpush.msra.mxu0 0.0
        %947 = vmatpush.msra.mxu0 0.0
        %948 = vmatpush.msra.mxu0 0.0
        %949 = vmatpush.msra.mxu0 0.0
        %950 = vmatpush.msra.mxu0 %v314
        %951 = vmatmul.f32.gmra.mxu0 %v433
        %v952 = vpop.f32.mrf.mxu0
        %v953 = vadd.f32 %v354, %v952
        %954 = vmatmul.f32.gmra.mxu0 %v436
        %v955 = vpop.f32.mrf.mxu0
        %v956 = vadd.f32 %v359, %v955
        %957 = vmatmul.f32.gmra.mxu0 %v439
        %v958 = vpop.f32.mrf.mxu0
        %v959 = vadd.f32 %v364, %v958
        %960 = vmatmul.f32.gmra.mxu0 %v442
        %v961 = vpop.f32.mrf.mxu0
        %v962 = vadd.f32 %v369, %v961
        %963 = vmatmul.f32.gmra.mxu0 %v445
        %v964 = vpop.f32.mrf.mxu0
        %v965 = vadd.f32 %v374, %v964
        %966 = vmatmul.f32.gmra.mxu0 %v448
        %v967 = vpop.f32.mrf.mxu0
        %v968 = vadd.f32 %v379, %v967
        %969 = vmatmul.f32.gmra.mxu0 %v451
        %v970 = vpop.f32.mrf.mxu0
        %v971 = vadd.f32 %v384, %v970
        %972 = vmatmul.f32.gmra.mxu0 %v454
        %v973 = vpop.f32.mrf.mxu0
        %v974 = vadd.f32 %v389, %v973
        %975 = vmatmul.f32.gmra.mxu0 %v457
        %v976 = vpop.f32.mrf.mxu0
        %v977 = vadd.f32 %v394, %v976
        %978 = vmatmul.f32.gmra.mxu0 %v460
        %v979 = vpop.f32.mrf.mxu0
        %v980 = vadd.f32 %v399, %v979
        %981 = vmatmul.f32.gmra.mxu0 %v463
        %v982 = vpop.f32.mrf.mxu0
        %v983 = vadd.f32 %v404, %v982
        %984 = vmatmul.f32.gmra.mxu0 %v466
        %v985 = vpop.f32.mrf.mxu0
        %v986 = vadd.f32 %v409, %v985
        %987 = vmatmul.f32.gmra.mxu0 %v469
        %v988 = vpop.f32.mrf.mxu0
        %v989 = vadd.f32 %v414, %v988
        %990 = vmatmul.f32.gmra.mxu0 %v472
        %v991 = vpop.f32.mrf.mxu0
        %v992 = vadd.f32 %v419, %v991
        %993 = vmatmul.f32.gmra.mxu0 %v475
        %v994 = vpop.f32.mrf.mxu0
        %v995 = vadd.f32 %v424, %v994
        %996 = vmatmul.f32.gmra.mxu0 %v478
        %v997 = vpop.f32.mrf.mxu0
        %v998 = vadd.f32 %v429, %v997
        %999 = vdwg.mxu0
        %1000 = vmatpush.msra.mxu0 0.0
        %1001 = vmatpush.msra.mxu0 0.0
        %1002 = vmatpush.msra.mxu0 0.0
        %1003 = vmatpush.msra.mxu0 0.0
        %1004 = vmatpush.msra.mxu0 0.0
        %1005 = vmatpush.msra.mxu0 0.0
        %1006 = vmatpush.msra.mxu0 0.0
        %1007 = vmatpush.msra.mxu0 0.0
        %1008 = vmatpush.msra.mxu0 0.0
        %1009 = vmatpush.msra.mxu0 0.0
        %1010 = vmatpush.msra.mxu0 0.0
        %1011 = vmatpush.msra.mxu0 0.0
        %1012 = vmatpush.msra.mxu0 0.0
        %1013 = vmatpush.msra.mxu0 0.0
        %1014 = vmatpush.msra.mxu0 0.0
        %1015 = vmatpush.msra.mxu0 %v315
        %1016 = vmatmul.f32.gmra.mxu0 %v433
        %v1017 = vpop.f32.mrf.mxu0
        %v1018 = vadd.f32 %v354, %v1017
        %1019 = vmatmul.f32.gmra.mxu0 %v436
        %v1020 = vpop.f32.mrf.mxu0
        %v1021 = vadd.f32 %v359, %v1020
        %1022 = vmatmul.f32.gmra.mxu0 %v439
        %v1023 = vpop.f32.mrf.mxu0
        %v1024 = vadd.f32 %v364, %v1023
        %1025 = vmatmul.f32.gmra.mxu0 %v442
        %v1026 = vpop.f32.mrf.mxu0
        %v1027 = vadd.f32 %v369, %v1026
        %1028 = vmatmul.f32.gmra.mxu0 %v445
        %v1029 = vpop.f32.mrf.mxu0
        %v1030 = vadd.f32 %v374, %v1029
        %1031 = vmatmul.f32.gmra.mxu0 %v448
        %v1032 = vpop.f32.mrf.mxu0
        %v1033 = vadd.f32 %v379, %v1032
        %1034 = vmatmul.f32.gmra.mxu0 %v451
        %v1035 = vpop.f32.mrf.mxu0
        %v1036 = vadd.f32 %v384, %v1035
        %1037 = vmatmul.f32.gmra.mxu0 %v454
        %v1038 = vpop.f32.mrf.mxu0
        %v1039 = vadd.f32 %v389, %v1038
        %1040 = vmatmul.f32.gmra.mxu0 %v457
        %v1041 = vpop.f32.mrf.mxu0
        %v1042 = vadd.f32 %v394, %v1041
        %1043 = vmatmul.f32.gmra.mxu0 %v460
        %v1044 = vpop.f32.mrf.mxu0
        %v1045 = vadd.f32 %v399, %v1044
        %1046 = vmatmul.f32.gmra.mxu0 %v463
        %v1047 = vpop.f32.mrf.mxu0
        %v1048 = vadd.f32 %v404, %v1047
        %1049 = vmatmul.f32.gmra.mxu0 %v466
        %v1050 = vpop.f32.mrf.mxu0
        %v1051 = vadd.f32 %v409, %v1050
        %1052 = vmatmul.f32.gmra.mxu0 %v469
        %v1053 = vpop.f32.mrf.mxu0
        %v1054 = vadd.f32 %v414, %v1053
        %1055 = vmatmul.f32.gmra.mxu0 %v472
        %v1056 = vpop.f32.mrf.mxu0
        %v1057 = vadd.f32 %v419, %v1056
        %1058 = vmatmul.f32.gmra.mxu0 %v475
        %v1059 = vpop.f32.mrf.mxu0
        %v1060 = vadd.f32 %v424, %v1059
        %1061 = vmatmul.f32.gmra.mxu0 %v478
        %v1062 = vpop.f32.mrf.mxu0
        %v1063 = vadd.f32 %v429, %v1062
        %1064 = vdwg.mxu0
        %1065 = vmatpush.msra.mxu0 0.0
        %1066 = vmatpush.msra.mxu0 0.0
        %1067 = vmatpush.msra.mxu0 0.0
        %1068 = vmatpush.msra.mxu0 0.0
        %1069 = vmatpush.msra.mxu0 0.0
        %1070 = vmatpush.msra.mxu0 0.0
        %1071 = vmatpush.msra.mxu0 0.0
        %1072 = vmatpush.msra.mxu0 0.0
        %1073 = vmatpush.msra.mxu0 0.0
        %1074 = vmatpush.msra.mxu0 0.0
        %1075 = vmatpush.msra.mxu0 0.0
        %1076 = vmatpush.msra.mxu0 0.0
        %1077 = vmatpush.msra.mxu0 0.0
        %1078 = vmatpush.msra.mxu0 0.0
        %1079 = vmatpush.msra.mxu0 0.0
        %1080 = vmatpush.msra.mxu0 %v316
        %1081 = vmatmul.f32.gmra.mxu0 %v433
        %v1082 = vpop.f32.mrf.mxu0
        %v1083 = vadd.f32 %v354, %v1082
        %1084 = vmatmul.f32.gmra.mxu0 %v436
        %v1085 = vpop.f32.mrf.mxu0
        %v1086 = vadd.f32 %v359, %v1085
        %1087 = vmatmul.f32.gmra.mxu0 %v439
        %v1088 = vpop.f32.mrf.mxu0
        %v1089 = vadd.f32 %v364, %v1088
        %1090 = vmatmul.f32.gmra.mxu0 %v442
        %v1091 = vpop.f32.mrf.mxu0
        %v1092 = vadd.f32 %v369, %v1091
        %1093 = vmatmul.f32.gmra.mxu0 %v445
        %v1094 = vpop.f32.mrf.mxu0
        %v1095 = vadd.f32 %v374, %v1094
        %1096 = vmatmul.f32.gmra.mxu0 %v448
        %v1097 = vpop.f32.mrf.mxu0
        %v1098 = vadd.f32 %v379, %v1097
        %1099 = vmatmul.f32.gmra.mxu0 %v451
        %v1100 = vpop.f32.mrf.mxu0
        %v1101 = vadd.f32 %v384, %v1100
        %1102 = vmatmul.f32.gmra.mxu0 %v454
        %v1103 = vpop.f32.mrf.mxu0
        %v1104 = vadd.f32 %v389, %v1103
        %1105 = vmatmul.f32.gmra.mxu0 %v457
        %v1106 = vpop.f32.mrf.mxu0
        %v1107 = vadd.f32 %v394, %v1106
        %1108 = vmatmul.f32.gmra.mxu0 %v460
        %v1109 = vpop.f32.mrf.mxu0
        %v1110 = vadd.f32 %v399, %v1109
        %1111 = vmatmul.f32.gmra.mxu0 %v463
        %v1112 = vpop.f32.mrf.mxu0
        %v1113 = vadd.f32 %v404, %v1112
        %1114 = vmatmul.f32.gmra.mxu0 %v466
        %v1115 = vpop.f32.mrf.mxu0
        %v1116 = vadd.f32 %v409, %v1115
        %1117 = vmatmul.f32.gmra.mxu0 %v469
        %v1118 = vpop.f32.mrf.mxu0
        %v1119 = vadd.f32 %v414, %v1118
        %1120 = vmatmul.f32.gmra.mxu0 %v472
        %v1121 = vpop.f32.mrf.mxu0
        %v1122 = vadd.f32 %v419, %v1121
        %1123 = vmatmul.f32.gmra.mxu0 %v475
        %v1124 = vpop.f32.mrf.mxu0
        %v1125 = vadd.f32 %v424, %v1124
        %1126 = vmatmul.f32.gmra.mxu0 %v478
        %v1127 = vpop.f32.mrf.mxu0
        %v1128 = vadd.f32 %v429, %v1127
        %1129 = vdwg.mxu0
        %1130 = vmatpush.msra.mxu0 0.0
        %1131 = vmatpush.msra.mxu0 0.0
        %1132 = vmatpush.msra.mxu0 0.0
        %1133 = vmatpush.msra.mxu0 0.0
        %1134 = vmatpush.msra.mxu0 0.0
        %1135 = vmatpush.msra.mxu0 0.0
        %1136 = vmatpush.msra.mxu0 0.0
        %1137 = vmatpush.msra.mxu0 0.0
        %1138 = vmatpush.msra.mxu0 0.0
        %1139 = vmatpush.msra.mxu0 0.0
        %1140 = vmatpush.msra.mxu0 0.0
        %1141 = vmatpush.msra.mxu0 0.0
        %1142 = vmatpush.msra.mxu0 0.0
        %1143 = vmatpush.msra.mxu0 0.0
        %1144 = vmatpush.msra.mxu0 0.0
        %1145 = vmatpush.msra.mxu0 %v317
        %1146 = vmatmul.f32.gmra.mxu0 %v433
        %v1147 = vpop.f32.mrf.mxu0
        %v1148 = vadd.f32 %v354, %v1147
        %1149 = vmatmul.f32.gmra.mxu0 %v436
        %v1150 = vpop.f32.mrf.mxu0
        %v1151 = vadd.f32 %v359, %v1150
        %1152 = vmatmul.f32.gmra.mxu0 %v439
        %v1153 = vpop.f32.mrf.mxu0
        %v1154 = vadd.f32 %v364, %v1153
        %1155 = vmatmul.f32.gmra.mxu0 %v442
        %v1156 = vpop.f32.mrf.mxu0
        %v1157 = vadd.f32 %v369, %v1156
        %1158 = vmatmul.f32.gmra.mxu0 %v445
        %v1159 = vpop.f32.mrf.mxu0
        %v1160 = vadd.f32 %v374, %v1159
        %1161 = vmatmul.f32.gmra.mxu0 %v448
        %v1162 = vpop.f32.mrf.mxu0
        %v1163 = vadd.f32 %v379, %v1162
        %1164 = vmatmul.f32.gmra.mxu0 %v451
        %v1165 = vpop.f32.mrf.mxu0
        %v1166 = vadd.f32 %v384, %v1165
        %1167 = vmatmul.f32.gmra.mxu0 %v454
        %v1168 = vpop.f32.mrf.mxu0
        %v1169 = vadd.f32 %v389, %v1168
        %1170 = vmatmul.f32.gmra.mxu0 %v457
        %v1171 = vpop.f32.mrf.mxu0
        %v1172 = vadd.f32 %v394, %v1171
        %1173 = vmatmul.f32.gmra.mxu0 %v460
        %v1174 = vpop.f32.mrf.mxu0
        %v1175 = vadd.f32 %v399, %v1174
        %1176 = vmatmul.f32.gmra.mxu0 %v463
        %v1177 = vpop.f32.mrf.mxu0
        %v1178 = vadd.f32 %v404, %v1177
        %1179 = vmatmul.f32.gmra.mxu0 %v466
        %v1180 = vpop.f32.mrf.mxu0
        %v1181 = vadd.f32 %v409, %v1180
        %1182 = vmatmul.f32.gmra.mxu0 %v469
        %v1183 = vpop.f32.mrf.mxu0
        %v1184 = vadd.f32 %v414, %v1183
        %1185 = vmatmul.f32.gmra.mxu0 %v472
        %v1186 = vpop.f32.mrf.mxu0
        %v1187 = vadd.f32 %v419, %v1186
        %1188 = vmatmul.f32.gmra.mxu0 %v475
        %v1189 = vpop.f32.mrf.mxu0
        %v1190 = vadd.f32 %v424, %v1189
        %1191 = vmatmul.f32.gmra.mxu0 %v478
        %v1192 = vpop.f32.mrf.mxu0
        %v1193 = vadd.f32 %v429, %v1192
        %1194 = vdwg.mxu0
        %1195 = vmatpush.msra.mxu0 0.0
        %1196 = vmatpush.msra.mxu0 0.0
        %1197 = vmatpush.msra.mxu0 0.0
        %1198 = vmatpush.msra.mxu0 0.0
        %1199 = vmatpush.msra.mxu0 0.0
        %1200 = vmatpush.msra.mxu0 0.0
        %1201 = vmatpush.msra.mxu0 0.0
        %1202 = vmatpush.msra.mxu0 0.0
        %1203 = vmatpush.msra.mxu0 0.0
        %1204 = vmatpush.msra.mxu0 0.0
        %1205 = vmatpush.msra.mxu0 0.0
        %1206 = vmatpush.msra.mxu0 0.0
        %1207 = vmatpush.msra.mxu0 0.0
        %1208 = vmatpush.msra.mxu0 0.0
        %1209 = vmatpush.msra.mxu0 0.0
        %1210 = vmatpush.msra.mxu0 %v318
        %1211 = vmatmul.f32.gmra.mxu0 %v433
        %v1212 = vpop.f32.mrf.mxu0
        %v1213 = vadd.f32 %v354, %v1212
        %1214 = vmatmul.f32.gmra.mxu0 %v436
        %v1215 = vpop.f32.mrf.mxu0
        %v1216 = vadd.f32 %v359, %v1215
        %1217 = vmatmul.f32.gmra.mxu0 %v439
        %v1218 = vpop.f32.mrf.mxu0
        %v1219 = vadd.f32 %v364, %v1218
        %1220 = vmatmul.f32.gmra.mxu0 %v442
        %v1221 = vpop.f32.mrf.mxu0
        %v1222 = vadd.f32 %v369, %v1221
        %1223 = vmatmul.f32.gmra.mxu0 %v445
        %v1224 = vpop.f32.mrf.mxu0
        %v1225 = vadd.f32 %v374, %v1224
        %1226 = vmatmul.f32.gmra.mxu0 %v448
        %v1227 = vpop.f32.mrf.mxu0
        %v1228 = vadd.f32 %v379, %v1227
        %1229 = vmatmul.f32.gmra.mxu0 %v451
        %v1230 = vpop.f32.mrf.mxu0
        %v1231 = vadd.f32 %v384, %v1230
        %1232 = vmatmul.f32.gmra.mxu0 %v454
        %v1233 = vpop.f32.mrf.mxu0
        %v1234 = vadd.f32 %v389, %v1233
        %1235 = vmatmul.f32.gmra.mxu0 %v457
        %v1236 = vpop.f32.mrf.mxu0
        %v1237 = vadd.f32 %v394, %v1236
        %1238 = vmatmul.f32.gmra.mxu0 %v460
        %v1239 = vpop.f32.mrf.mxu0
        %v1240 = vadd.f32 %v399, %v1239
        %1241 = vmatmul.f32.gmra.mxu0 %v463
        %v1242 = vpop.f32.mrf.mxu0
        %v1243 = vadd.f32 %v404, %v1242
        %1244 = vmatmul.f32.gmra.mxu0 %v466
        %v1245 = vpop.f32.mrf.mxu0
        %v1246 = vadd.f32 %v409, %v1245
        %1247 = vmatmul.f32.gmra.mxu0 %v469
        %v1248 = vpop.f32.mrf.mxu0
        %v1249 = vadd.f32 %v414, %v1248
        %1250 = vmatmul.f32.gmra.mxu0 %v472
        %v1251 = vpop.f32.mrf.mxu0
        %v1252 = vadd.f32 %v419, %v1251
        %1253 = vmatmul.f32.gmra.mxu0 %v475
        %v1254 = vpop.f32.mrf.mxu0
        %v1255 = vadd.f32 %v424, %v1254
        %1256 = vmatmul.f32.gmra.mxu0 %v478
        %v1257 = vpop.f32.mrf.mxu0
        %v1258 = vadd.f32 %v429, %v1257
        %1259 = vdwg.mxu0
        %vm1260 = vcmp.gt.f32.partialorder %v498, 0.0
        %vm1261 = vcmp.gt.f32.partialorder %v563, 0.0
        %vm1262 = vcmp.gt.f32.partialorder %v628, 0.0
        %vm1263 = vcmp.gt.f32.partialorder %v693, 0.0
        %vm1264 = vcmp.gt.f32.partialorder %v758, 0.0
        %vm1265 = vcmp.gt.f32.partialorder %v823, 0.0
        %vm1266 = vcmp.gt.f32.partialorder %v888, 0.0
        %vm1267 = vcmp.gt.f32.partialorder %v953, 0.0
        %vm1268 = vcmp.gt.f32.partialorder %v1018, 0.0
        %vm1269 = vcmp.gt.f32.partialorder %v1083, 0.0
        %vm1270 = vcmp.gt.f32.partialorder %v1148, 0.0
        %vm1271 = vcmp.gt.f32.partialorder %v1213, 0.0
        %vm1272 = vcmp.gt.f32.partialorder %v501, 0.0
        %vm1273 = vcmp.gt.f32.partialorder %v566, 0.0
        %vm1274 = vcmp.gt.f32.partialorder %v631, 0.0
        %vm1275 = vcmp.gt.f32.partialorder %v696, 0.0
        %vm1276 = vcmp.gt.f32.partialorder %v761, 0.0
        %vm1277 = vcmp.gt.f32.partialorder %v826, 0.0
        %vm1278 = vcmp.gt.f32.partialorder %v891, 0.0
        %vm1279 = vcmp.gt.f32.partialorder %v956, 0.0
        %vm1280 = vcmp.gt.f32.partialorder %v1021, 0.0
        %vm1281 = vcmp.gt.f32.partialorder %v1086, 0.0
        %vm1282 = vcmp.gt.f32.partialorder %v1151, 0.0
        %vm1283 = vcmp.gt.f32.partialorder %v1216, 0.0
        %vm1284 = vcmp.gt.f32.partialorder %v504, 0.0
        %vm1285 = vcmp.gt.f32.partialorder %v569, 0.0
        %vm1286 = vcmp.gt.f32.partialorder %v634, 0.0
        %vm1287 = vcmp.gt.f32.partialorder %v699, 0.0
        %vm1288 = vcmp.gt.f32.partialorder %v764, 0.0
        %vm1289 = vcmp.gt.f32.partialorder %v829, 0.0
        %vm1290 = vcmp.gt.f32.partialorder %v894, 0.0
        %vm1291 = vcmp.gt.f32.partialorder %v959, 0.0
        %vm1292 = vcmp.gt.f32.partialorder %v1024, 0.0
        %vm1293 = vcmp.gt.f32.partialorder %v1089, 0.0
        %vm1294 = vcmp.gt.f32.partialorder %v1154, 0.0
        %vm1295 = vcmp.gt.f32.partialorder %v1219, 0.0
        %vm1296 = vcmp.gt.f32.partialorder %v507, 0.0
        %vm1297 = vcmp.gt.f32.partialorder %v572, 0.0
        %vm1298 = vcmp.gt.f32.partialorder %v637, 0.0
        %vm1299 = vcmp.gt.f32.partialorder %v702, 0.0
        %vm1300 = vcmp.gt.f32.partialorder %v767, 0.0
        %vm1301 = vcmp.gt.f32.partialorder %v832, 0.0
        %vm1302 = vcmp.gt.f32.partialorder %v897, 0.0
        %vm1303 = vcmp.gt.f32.partialorder %v962, 0.0
        %vm1304 = vcmp.gt.f32.partialorder %v1027, 0.0
        %vm1305 = vcmp.gt.f32.partialorder %v1092, 0.0
        %vm1306 = vcmp.gt.f32.partialorder %v1157, 0.0
        %vm1307 = vcmp.gt.f32.partialorder %v1222, 0.0
        %vm1308 = vcmp.gt.f32.partialorder %v510, 0.0
        %vm1309 = vcmp.gt.f32.partialorder %v575, 0.0
        %vm1310 = vcmp.gt.f32.partialorder %v640, 0.0
        %vm1311 = vcmp.gt.f32.partialorder %v705, 0.0
        %vm1312 = vcmp.gt.f32.partialorder %v770, 0.0
        %vm1313 = vcmp.gt.f32.partialorder %v835, 0.0
        %vm1314 = vcmp.gt.f32.partialorder %v900, 0.0
        %vm1315 = vcmp.gt.f32.partialorder %v965, 0.0
        %vm1316 = vcmp.gt.f32.partialorder %v1030, 0.0
        %vm1317 = vcmp.gt.f32.partialorder %v1095, 0.0
        %vm1318 = vcmp.gt.f32.partialorder %v1160, 0.0
        %vm1319 = vcmp.gt.f32.partialorder %v1225, 0.0
        %vm1320 = vcmp.gt.f32.partialorder %v513, 0.0
        %vm1321 = vcmp.gt.f32.partialorder %v578, 0.0
        %vm1322 = vcmp.gt.f32.partialorder %v643, 0.0
        %vm1323 = vcmp.gt.f32.partialorder %v708, 0.0
        %vm1324 = vcmp.gt.f32.partialorder %v773, 0.0
        %vm1325 = vcmp.gt.f32.partialorder %v838, 0.0
        %vm1326 = vcmp.gt.f32.partialorder %v903, 0.0
        %vm1327 = vcmp.gt.f32.partialorder %v968, 0.0
        %vm1328 = vcmp.gt.f32.partialorder %v1033, 0.0
        %vm1329 = vcmp.gt.f32.partialorder %v1098, 0.0
        %vm1330 = vcmp.gt.f32.partialorder %v1163, 0.0
        %vm1331 = vcmp.gt.f32.partialorder %v1228, 0.0
        %vm1332 = vcmp.gt.f32.partialorder %v516, 0.0
        %vm1333 = vcmp.gt.f32.partialorder %v581, 0.0
        %vm1334 = vcmp.gt.f32.partialorder %v646, 0.0
        %vm1335 = vcmp.gt.f32.partialorder %v711, 0.0
        %vm1336 = vcmp.gt.f32.partialorder %v776, 0.0
        %vm1337 = vcmp.gt.f32.partialorder %v841, 0.0
        %vm1338 = vcmp.gt.f32.partialorder %v906, 0.0
        %vm1339 = vcmp.gt.f32.partialorder %v971, 0.0
        %vm1340 = vcmp.gt.f32.partialorder %v1036, 0.0
        %vm1341 = vcmp.gt.f32.partialorder %v1101, 0.0
        %vm1342 = vcmp.gt.f32.partialorder %v1166, 0.0
        %vm1343 = vcmp.gt.f32.partialorder %v1231, 0.0
        %vm1344 = vcmp.gt.f32.partialorder %v519, 0.0
        %vm1345 = vcmp.gt.f32.partialorder %v584, 0.0
        %vm1346 = vcmp.gt.f32.partialorder %v649, 0.0
        %vm1347 = vcmp.gt.f32.partialorder %v714, 0.0
        %vm1348 = vcmp.gt.f32.partialorder %v779, 0.0
        %vm1349 = vcmp.gt.f32.partialorder %v844, 0.0
        %vm1350 = vcmp.gt.f32.partialorder %v909, 0.0
        %vm1351 = vcmp.gt.f32.partialorder %v974, 0.0
        %vm1352 = vcmp.gt.f32.partialorder %v1039, 0.0
        %vm1353 = vcmp.gt.f32.partialorder %v1104, 0.0
        %vm1354 = vcmp.gt.f32.partialorder %v1169, 0.0
        %vm1355 = vcmp.gt.f32.partialorder %v1234, 0.0
        %vm1356 = vcmp.gt.f32.partialorder %v522, 0.0
        %vm1357 = vcmp.gt.f32.partialorder %v587, 0.0
        %vm1358 = vcmp.gt.f32.partialorder %v652, 0.0
        %vm1359 = vcmp.gt.f32.partialorder %v717, 0.0
        %vm1360 = vcmp.gt.f32.partialorder %v782, 0.0
        %vm1361 = vcmp.gt.f32.partialorder %v847, 0.0
        %vm1362 = vcmp.gt.f32.partialorder %v912, 0.0
        %vm1363 = vcmp.gt.f32.partialorder %v977, 0.0
        %vm1364 = vcmp.gt.f32.partialorder %v1042, 0.0
        %vm1365 = vcmp.gt.f32.partialorder %v1107, 0.0
        %vm1366 = vcmp.gt.f32.partialorder %v1172, 0.0
        %vm1367 = vcmp.gt.f32.partialorder %v1237, 0.0
        %vm1368 = vcmp.gt.f32.partialorder %v525, 0.0
        %vm1369 = vcmp.gt.f32.partialorder %v590, 0.0
        %vm1370 = vcmp.gt.f32.partialorder %v655, 0.0
        %vm1371 = vcmp.gt.f32.partialorder %v720, 0.0
        %vm1372 = vcmp.gt.f32.partialorder %v785, 0.0
        %vm1373 = vcmp.gt.f32.partialorder %v850, 0.0
        %vm1374 = vcmp.gt.f32.partialorder %v915, 0.0
        %vm1375 = vcmp.gt.f32.partialorder %v980, 0.0
        %vm1376 = vcmp.gt.f32.partialorder %v1045, 0.0
        %vm1377 = vcmp.gt.f32.partialorder %v1110, 0.0
        %vm1378 = vcmp.gt.f32.partialorder %v1175, 0.0
        %vm1379 = vcmp.gt.f32.partialorder %v1240, 0.0
        %vm1380 = vcmp.gt.f32.partialorder %v528, 0.0
        %vm1381 = vcmp.gt.f32.partialorder %v593, 0.0
        %vm1382 = vcmp.gt.f32.partialorder %v658, 0.0
        %vm1383 = vcmp.gt.f32.partialorder %v723, 0.0
        %vm1384 = vcmp.gt.f32.partialorder %v788, 0.0
        %vm1385 = vcmp.gt.f32.partialorder %v853, 0.0
        %vm1386 = vcmp.gt.f32.partialorder %v918, 0.0
        %vm1387 = vcmp.gt.f32.partialorder %v983, 0.0
        %vm1388 = vcmp.gt.f32.partialorder %v1048, 0.0
        %vm1389 = vcmp.gt.f32.partialorder %v1113, 0.0
        %vm1390 = vcmp.gt.f32.partialorder %v1178, 0.0
        %vm1391 = vcmp.gt.f32.partialorder %v1243, 0.0
        %vm1392 = vcmp.gt.f32.partialorder %v531, 0.0
        %vm1393 = vcmp.gt.f32.partialorder %v596, 0.0
        %vm1394 = vcmp.gt.f32.partialorder %v661, 0.0
        %vm1395 = vcmp.gt.f32.partialorder %v726, 0.0
        %vm1396 = vcmp.gt.f32.partialorder %v791, 0.0
        %vm1397 = vcmp.gt.f32.partialorder %v856, 0.0
        %vm1398 = vcmp.gt.f32.partialorder %v921, 0.0
        %vm1399 = vcmp.gt.f32.partialorder %v986, 0.0
        %vm1400 = vcmp.gt.f32.partialorder %v1051, 0.0
        %vm1401 = vcmp.gt.f32.partialorder %v1116, 0.0
        %vm1402 = vcmp.gt.f32.partialorder %v1181, 0.0
        %vm1403 = vcmp.gt.f32.partialorder %v1246, 0.0
        %vm1404 = vcmp.gt.f32.partialorder %v534, 0.0
        %vm1405 = vcmp.gt.f32.partialorder %v599, 0.0
        %vm1406 = vcmp.gt.f32.partialorder %v664, 0.0
        %vm1407 = vcmp.gt.f32.partialorder %v729, 0.0
        %vm1408 = vcmp.gt.f32.partialorder %v794, 0.0
        %vm1409 = vcmp.gt.f32.partialorder %v859, 0.0
        %vm1410 = vcmp.gt.f32.partialorder %v924, 0.0
        %vm1411 = vcmp.gt.f32.partialorder %v989, 0.0
        %vm1412 = vcmp.gt.f32.partialorder %v1054, 0.0
        %vm1413 = vcmp.gt.f32.partialorder %v1119, 0.0
        %vm1414 = vcmp.gt.f32.partialorder %v1184, 0.0
        %vm1415 = vcmp.gt.f32.partialorder %v1249, 0.0
        %vm1416 = vcmp.gt.f32.partialorder %v537, 0.0
        %vm1417 = vcmp.gt.f32.partialorder %v602, 0.0
        %vm1418 = vcmp.gt.f32.partialorder %v667, 0.0
        %vm1419 = vcmp.gt.f32.partialorder %v732, 0.0
        %vm1420 = vcmp.gt.f32.partialorder %v797, 0.0
        %vm1421 = vcmp.gt.f32.partialorder %v862, 0.0
        %vm1422 = vcmp.gt.f32.partialorder %v927, 0.0
        %vm1423 = vcmp.gt.f32.partialorder %v992, 0.0
        %vm1424 = vcmp.gt.f32.partialorder %v1057, 0.0
        %vm1425 = vcmp.gt.f32.partialorder %v1122, 0.0
        %vm1426 = vcmp.gt.f32.partialorder %v1187, 0.0
        %vm1427 = vcmp.gt.f32.partialorder %v1252, 0.0
        %vm1428 = vcmp.gt.f32.partialorder %v540, 0.0
        %vm1429 = vcmp.gt.f32.partialorder %v605, 0.0
        %vm1430 = vcmp.gt.f32.partialorder %v670, 0.0
        %vm1431 = vcmp.gt.f32.partialorder %v735, 0.0
        %vm1432 = vcmp.gt.f32.partialorder %v800, 0.0
        %vm1433 = vcmp.gt.f32.partialorder %v865, 0.0
        %vm1434 = vcmp.gt.f32.partialorder %v930, 0.0
        %vm1435 = vcmp.gt.f32.partialorder %v995, 0.0
        %vm1436 = vcmp.gt.f32.partialorder %v1060, 0.0
        %vm1437 = vcmp.gt.f32.partialorder %v1125, 0.0
        %vm1438 = vcmp.gt.f32.partialorder %v1190, 0.0
        %vm1439 = vcmp.gt.f32.partialorder %v1255, 0.0
        %vm1440 = vcmp.gt.f32.partialorder %v543, 0.0
        %vm1441 = vcmp.gt.f32.partialorder %v608, 0.0
        %vm1442 = vcmp.gt.f32.partialorder %v673, 0.0
        %vm1443 = vcmp.gt.f32.partialorder %v738, 0.0
        %vm1444 = vcmp.gt.f32.partialorder %v803, 0.0
        %vm1445 = vcmp.gt.f32.partialorder %v868, 0.0
        %vm1446 = vcmp.gt.f32.partialorder %v933, 0.0
        %vm1447 = vcmp.gt.f32.partialorder %v998, 0.0
        %vm1448 = vcmp.gt.f32.partialorder %v1063, 0.0
        %vm1449 = vcmp.gt.f32.partialorder %v1128, 0.0
        %vm1450 = vcmp.gt.f32.partialorder %v1193, 0.0
        %vm1451 = vcmp.gt.f32.partialorder %v1258, 0.0
        %v1452 = vmin.f32 %v498, 0.0
        %v1453 = vmin.f32 %v563, 0.0
        %v1454 = vmin.f32 %v628, 0.0
        %v1455 = vmin.f32 %v693, 0.0
        %v1456 = vmin.f32 %v758, 0.0
        %v1457 = vmin.f32 %v823, 0.0
        %v1458 = vmin.f32 %v888, 0.0
        %v1459 = vmin.f32 %v953, 0.0
        %v1460 = vmin.f32 %v1018, 0.0
        %v1461 = vmin.f32 %v1083, 0.0
        %v1462 = vmin.f32 %v1148, 0.0
        %v1463 = vmin.f32 %v1213, 0.0
        %v1464 = vmin.f32 %v501, 0.0
        %v1465 = vmin.f32 %v566, 0.0
        %v1466 = vmin.f32 %v631, 0.0
        %v1467 = vmin.f32 %v696, 0.0
        %v1468 = vmin.f32 %v761, 0.0
        %v1469 = vmin.f32 %v826, 0.0
        %v1470 = vmin.f32 %v891, 0.0
        %v1471 = vmin.f32 %v956, 0.0
        %v1472 = vmin.f32 %v1021, 0.0
        %v1473 = vmin.f32 %v1086, 0.0
        %v1474 = vmin.f32 %v1151, 0.0
        %v1475 = vmin.f32 %v1216, 0.0
        %v1476 = vmin.f32 %v504, 0.0
        %v1477 = vmin.f32 %v569, 0.0
        %v1478 = vmin.f32 %v634, 0.0
        %v1479 = vmin.f32 %v699, 0.0
        %v1480 = vmin.f32 %v764, 0.0
        %v1481 = vmin.f32 %v829, 0.0
        %v1482 = vmin.f32 %v894, 0.0
        %v1483 = vmin.f32 %v959, 0.0
        %v1484 = vmin.f32 %v1024, 0.0
        %v1485 = vmin.f32 %v1089, 0.0
        %v1486 = vmin.f32 %v1154, 0.0
        %v1487 = vmin.f32 %v1219, 0.0
        %v1488 = vmin.f32 %v507, 0.0
        %v1489 = vmin.f32 %v572, 0.0
        %v1490 = vmin.f32 %v637, 0.0
        %v1491 = vmin.f32 %v702, 0.0
        %v1492 = vmin.f32 %v767, 0.0
        %v1493 = vmin.f32 %v832, 0.0
        %v1494 = vmin.f32 %v897, 0.0
        %v1495 = vmin.f32 %v962, 0.0
        %v1496 = vmin.f32 %v1027, 0.0
        %v1497 = vmin.f32 %v1092, 0.0
        %v1498 = vmin.f32 %v1157, 0.0
        %v1499 = vmin.f32 %v1222, 0.0
        %v1500 = vmin.f32 %v510, 0.0
        %v1501 = vmin.f32 %v575, 0.0
        %v1502 = vmin.f32 %v640, 0.0
        %v1503 = vmin.f32 %v705, 0.0
        %v1504 = vmin.f32 %v770, 0.0
        %v1505 = vmin.f32 %v835, 0.0
        %v1506 = vmin.f32 %v900, 0.0
        %v1507 = vmin.f32 %v965, 0.0
        %v1508 = vmin.f32 %v1030, 0.0
        %v1509 = vmin.f32 %v1095, 0.0
        %v1510 = vmin.f32 %v1160, 0.0
        %v1511 = vmin.f32 %v1225, 0.0
        %v1512 = vmin.f32 %v513, 0.0
        %v1513 = vmin.f32 %v578, 0.0
        %v1514 = vmin.f32 %v643, 0.0
        %v1515 = vmin.f32 %v708, 0.0
        %v1516 = vmin.f32 %v773, 0.0
        %v1517 = vmin.f32 %v838, 0.0
        %v1518 = vmin.f32 %v903, 0.0
        %v1519 = vmin.f32 %v968, 0.0
        %v1520 = vmin.f32 %v1033, 0.0
        %v1521 = vmin.f32 %v1098, 0.0
        %v1522 = vmin.f32 %v1163, 0.0
        %v1523 = vmin.f32 %v1228, 0.0
        %v1524 = vmin.f32 %v516, 0.0
        %v1525 = vmin.f32 %v581, 0.0
        %v1526 = vmin.f32 %v646, 0.0
        %v1527 = vmin.f32 %v711, 0.0
        %v1528 = vmin.f32 %v776, 0.0
        %v1529 = vmin.f32 %v841, 0.0
        %v1530 = vmin.f32 %v906, 0.0
        %v1531 = vmin.f32 %v971, 0.0
        %v1532 = vmin.f32 %v1036, 0.0
        %v1533 = vmin.f32 %v1101, 0.0
        %v1534 = vmin.f32 %v1166, 0.0
        %v1535 = vmin.f32 %v1231, 0.0
        %v1536 = vmin.f32 %v519, 0.0
        %v1537 = vmin.f32 %v584, 0.0
        %v1538 = vmin.f32 %v649, 0.0
        %v1539 = vmin.f32 %v714, 0.0
        %v1540 = vmin.f32 %v779, 0.0
        %v1541 = vmin.f32 %v844, 0.0
        %v1542 = vmin.f32 %v909, 0.0
        %v1543 = vmin.f32 %v974, 0.0
        %v1544 = vmin.f32 %v1039, 0.0
        %v1545 = vmin.f32 %v1104, 0.0
        %v1546 = vmin.f32 %v1169, 0.0
        %v1547 = vmin.f32 %v1234, 0.0
        %v1548 = vmin.f32 %v522, 0.0
        %v1549 = vmin.f32 %v587, 0.0
        %v1550 = vmin.f32 %v652, 0.0
        %v1551 = vmin.f32 %v717, 0.0
        %v1552 = vmin.f32 %v782, 0.0
        %v1553 = vmin.f32 %v847, 0.0
        %v1554 = vmin.f32 %v912, 0.0
        %v1555 = vmin.f32 %v977, 0.0
        %v1556 = vmin.f32 %v1042, 0.0
        %v1557 = vmin.f32 %v1107, 0.0
        %v1558 = vmin.f32 %v1172, 0.0
        %v1559 = vmin.f32 %v1237, 0.0
        %v1560 = vmin.f32 %v525, 0.0
        %v1561 = vmin.f32 %v590, 0.0
        %v1562 = vmin.f32 %v655, 0.0
        %v1563 = vmin.f32 %v720, 0.0
        %v1564 = vmin.f32 %v785, 0.0
        %v1565 = vmin.f32 %v850, 0.0
        %v1566 = vmin.f32 %v915, 0.0
        %v1567 = vmin.f32 %v980, 0.0
        %v1568 = vmin.f32 %v1045, 0.0
        %v1569 = vmin.f32 %v1110, 0.0
        %v1570 = vmin.f32 %v1175, 0.0
        %v1571 = vmin.f32 %v1240, 0.0
        %v1572 = vmin.f32 %v528, 0.0
        %v1573 = vmin.f32 %v593, 0.0
        %v1574 = vmin.f32 %v658, 0.0
        %v1575 = vmin.f32 %v723, 0.0
        %v1576 = vmin.f32 %v788, 0.0
        %v1577 = vmin.f32 %v853, 0.0
        %v1578 = vmin.f32 %v918, 0.0
        %v1579 = vmin.f32 %v983, 0.0
        %v1580 = vmin.f32 %v1048, 0.0
        %v1581 = vmin.f32 %v1113, 0.0
        %v1582 = vmin.f32 %v1178, 0.0
        %v1583 = vmin.f32 %v1243, 0.0
        %v1584 = vmin.f32 %v531, 0.0
        %v1585 = vmin.f32 %v596, 0.0
        %v1586 = vmin.f32 %v661, 0.0
        %v1587 = vmin.f32 %v726, 0.0
        %v1588 = vmin.f32 %v791, 0.0
        %v1589 = vmin.f32 %v856, 0.0
        %v1590 = vmin.f32 %v921, 0.0
        %v1591 = vmin.f32 %v986, 0.0
        %v1592 = vmin.f32 %v1051, 0.0
        %v1593 = vmin.f32 %v1116, 0.0
        %v1594 = vmin.f32 %v1181, 0.0
        %v1595 = vmin.f32 %v1246, 0.0
        %v1596 = vmin.f32 %v534, 0.0
        %v1597 = vmin.f32 %v599, 0.0
        %v1598 = vmin.f32 %v664, 0.0
        %v1599 = vmin.f32 %v729, 0.0
        %v1600 = vmin.f32 %v794, 0.0
        %v1601 = vmin.f32 %v859, 0.0
        %v1602 = vmin.f32 %v924, 0.0
        %v1603 = vmin.f32 %v989, 0.0
        %v1604 = vmin.f32 %v1054, 0.0
        %v1605 = vmin.f32 %v1119, 0.0
        %v1606 = vmin.f32 %v1184, 0.0
        %v1607 = vmin.f32 %v1249, 0.0
        %v1608 = vmin.f32 %v537, 0.0
        %v1609 = vmin.f32 %v602, 0.0
        %v1610 = vmin.f32 %v667, 0.0
        %v1611 = vmin.f32 %v732, 0.0
        %v1612 = vmin.f32 %v797, 0.0
        %v1613 = vmin.f32 %v862, 0.0
        %v1614 = vmin.f32 %v927, 0.0
        %v1615 = vmin.f32 %v992, 0.0
        %v1616 = vmin.f32 %v1057, 0.0
        %v1617 = vmin.f32 %v1122, 0.0
        %v1618 = vmin.f32 %v1187, 0.0
        %v1619 = vmin.f32 %v1252, 0.0
        %v1620 = vmin.f32 %v540, 0.0
        %v1621 = vmin.f32 %v605, 0.0
        %v1622 = vmin.f32 %v670, 0.0
        %v1623 = vmin.f32 %v735, 0.0
        %v1624 = vmin.f32 %v800, 0.0
        %v1625 = vmin.f32 %v865, 0.0
        %v1626 = vmin.f32 %v930, 0.0
        %v1627 = vmin.f32 %v995, 0.0
        %v1628 = vmin.f32 %v1060, 0.0
        %v1629 = vmin.f32 %v1125, 0.0
        %v1630 = vmin.f32 %v1190, 0.0
        %v1631 = vmin.f32 %v1255, 0.0
        %v1632 = vmin.f32 %v543, 0.0
        %v1633 = vmin.f32 %v608, 0.0
        %v1634 = vmin.f32 %v673, 0.0
        %v1635 = vmin.f32 %v738, 0.0
        %v1636 = vmin.f32 %v803, 0.0
        %v1637 = vmin.f32 %v868, 0.0
        %v1638 = vmin.f32 %v933, 0.0
        %v1639 = vmin.f32 %v998, 0.0
        %v1640 = vmin.f32 %v1063, 0.0
        %v1641 = vmin.f32 %v1128, 0.0
        %v1642 = vmin.f32 %v1193, 0.0
        %v1643 = vmin.f32 %v1258, 0.0
        %v1644 = vmul.f32 %v1452, 1.442695
        %v1645 = vpow.pop %v1644
        %v1646 = vmul.f32 %v1453, 1.442695
        %v1647 = vpow.pop %v1646
        %v1648 = vmul.f32 %v1454, 1.442695
        %v1649 = vpow.pop %v1648
        %v1650 = vmul.f32 %v1455, 1.442695
        %v1651 = vpow.pop %v1650
        %v1652 = vmul.f32 %v1456, 1.442695
        %v1653 = vpow.pop %v1652
        %v1654 = vmul.f32 %v1457, 1.442695
        %v1655 = vpow.pop %v1654
        %v1656 = vmul.f32 %v1458, 1.442695
        %v1657 = vpow.pop %v1656
        %v1658 = vmul.f32 %v1459, 1.442695
        %v1659 = vpow.pop %v1658
        %v1660 = vmul.f32 %v1460, 1.442695
        %v1661 = vpow.pop %v1660
        %v1662 = vmul.f32 %v1461, 1.442695
        %v1663 = vpow.pop %v1662
        %v1664 = vmul.f32 %v1462, 1.442695
        %v1665 = vpow.pop %v1664
        %v1666 = vmul.f32 %v1463, 1.442695
        %v1667 = vpow.pop %v1666
        %v1668 = vmul.f32 %v1464, 1.442695
        %v1669 = vpow.pop %v1668
        %v1670 = vmul.f32 %v1465, 1.442695
        %v1671 = vpow.pop %v1670
        %v1672 = vmul.f32 %v1466, 1.442695
        %v1673 = vpow.pop %v1672
        %v1674 = vmul.f32 %v1467, 1.442695
        %v1675 = vpow.pop %v1674
        %v1676 = vmul.f32 %v1468, 1.442695
        %v1677 = vpow.pop %v1676
        %v1678 = vmul.f32 %v1469, 1.442695
        %v1679 = vpow.pop %v1678
        %v1680 = vmul.f32 %v1470, 1.442695
        %v1681 = vpow.pop %v1680
        %v1682 = vmul.f32 %v1471, 1.442695
        %v1683 = vpow.pop %v1682
        %v1684 = vmul.f32 %v1472, 1.442695
        %v1685 = vpow.pop %v1684
        %v1686 = vmul.f32 %v1473, 1.442695
        %v1687 = vpow.pop %v1686
        %v1688 = vmul.f32 %v1474, 1.442695
        %v1689 = vpow.pop %v1688
        %v1690 = vmul.f32 %v1475, 1.442695
        %v1691 = vpow.pop %v1690
        %v1692 = vmul.f32 %v1476, 1.442695
        %v1693 = vpow.pop %v1692
        %v1694 = vmul.f32 %v1477, 1.442695
        %v1695 = vpow.pop %v1694
        %v1696 = vmul.f32 %v1478, 1.442695
        %v1697 = vpow.pop %v1696
        %v1698 = vmul.f32 %v1479, 1.442695
        %v1699 = vpow.pop %v1698
        %v1700 = vmul.f32 %v1480, 1.442695
        %v1701 = vpow.pop %v1700
        %v1702 = vmul.f32 %v1481, 1.442695
        %v1703 = vpow.pop %v1702
        %v1704 = vmul.f32 %v1482, 1.442695
        %v1705 = vpow.pop %v1704
        %v1706 = vmul.f32 %v1483, 1.442695
        %v1707 = vpow.pop %v1706
        %v1708 = vmul.f32 %v1484, 1.442695
        %v1709 = vpow.pop %v1708
        %v1710 = vmul.f32 %v1485, 1.442695
        %v1711 = vpow.pop %v1710
        %v1712 = vmul.f32 %v1486, 1.442695
        %v1713 = vpow.pop %v1712
        %v1714 = vmul.f32 %v1487, 1.442695
        %v1715 = vpow.pop %v1714
        %v1716 = vmul.f32 %v1488, 1.442695
        %v1717 = vpow.pop %v1716
        %v1718 = vmul.f32 %v1489, 1.442695
        %v1719 = vpow.pop %v1718
        %v1720 = vmul.f32 %v1490, 1.442695
        %v1721 = vpow.pop %v1720
        %v1722 = vmul.f32 %v1491, 1.442695
        %v1723 = vpow.pop %v1722
        %v1724 = vmul.f32 %v1492, 1.442695
        %v1725 = vpow.pop %v1724
        %v1726 = vmul.f32 %v1493, 1.442695
        %v1727 = vpow.pop %v1726
        %v1728 = vmul.f32 %v1494, 1.442695
        %v1729 = vpow.pop %v1728
        %v1730 = vmul.f32 %v1495, 1.442695
        %v1731 = vpow.pop %v1730
        %v1732 = vmul.f32 %v1496, 1.442695
        %v1733 = vpow.pop %v1732
        %v1734 = vmul.f32 %v1497, 1.442695
        %v1735 = vpow.pop %v1734
        %v1736 = vmul.f32 %v1498, 1.442695
        %v1737 = vpow.pop %v1736
        %v1738 = vmul.f32 %v1499, 1.442695
        %v1739 = vpow.pop %v1738
        %v1740 = vmul.f32 %v1500, 1.442695
        %v1741 = vpow.pop %v1740
        %v1742 = vmul.f32 %v1501, 1.442695
        %v1743 = vpow.pop %v1742
        %v1744 = vmul.f32 %v1502, 1.442695
        %v1745 = vpow.pop %v1744
        %v1746 = vmul.f32 %v1503, 1.442695
        %v1747 = vpow.pop %v1746
        %v1748 = vmul.f32 %v1504, 1.442695
        %v1749 = vpow.pop %v1748
        %v1750 = vmul.f32 %v1505, 1.442695
        %v1751 = vpow.pop %v1750
        %v1752 = vmul.f32 %v1506, 1.442695
        %v1753 = vpow.pop %v1752
        %v1754 = vmul.f32 %v1507, 1.442695
        %v1755 = vpow.pop %v1754
        %v1756 = vmul.f32 %v1508, 1.442695
        %v1757 = vpow.pop %v1756
        %v1758 = vmul.f32 %v1509, 1.442695
        %v1759 = vpow.pop %v1758
        %v1760 = vmul.f32 %v1510, 1.442695
        %v1761 = vpow.pop %v1760
        %v1762 = vmul.f32 %v1511, 1.442695
        %v1763 = vpow.pop %v1762
        %v1764 = vmul.f32 %v1512, 1.442695
        %v1765 = vpow.pop %v1764
        %v1766 = vmul.f32 %v1513, 1.442695
        %v1767 = vpow.pop %v1766
        %v1768 = vmul.f32 %v1514, 1.442695
        %v1769 = vpow.pop %v1768
        %v1770 = vmul.f32 %v1515, 1.442695
        %v1771 = vpow.pop %v1770
        %v1772 = vmul.f32 %v1516, 1.442695
        %v1773 = vpow.pop %v1772
        %v1774 = vmul.f32 %v1517, 1.442695
        %v1775 = vpow.pop %v1774
        %v1776 = vmul.f32 %v1518, 1.442695
        %v1777 = vpow.pop %v1776
        %v1778 = vmul.f32 %v1519, 1.442695
        %v1779 = vpow.pop %v1778
        %v1780 = vmul.f32 %v1520, 1.442695
        %v1781 = vpow.pop %v1780
        %v1782 = vmul.f32 %v1521, 1.442695
        %v1783 = vpow.pop %v1782
        %v1784 = vmul.f32 %v1522, 1.442695
        %v1785 = vpow.pop %v1784
        %v1786 = vmul.f32 %v1523, 1.442695
        %v1787 = vpow.pop %v1786
        %v1788 = vmul.f32 %v1524, 1.442695
        %v1789 = vpow.pop %v1788
        %v1790 = vmul.f32 %v1525, 1.442695
        %v1791 = vpow.pop %v1790
        %v1792 = vmul.f32 %v1526, 1.442695
        %v1793 = vpow.pop %v1792
        %v1794 = vmul.f32 %v1527, 1.442695
        %v1795 = vpow.pop %v1794
        %v1796 = vmul.f32 %v1528, 1.442695
        %v1797 = vpow.pop %v1796
        %v1798 = vmul.f32 %v1529, 1.442695
        %v1799 = vpow.pop %v1798
        %v1800 = vmul.f32 %v1530, 1.442695
        %v1801 = vpow.pop %v1800
        %v1802 = vmul.f32 %v1531, 1.442695
        %v1803 = vpow.pop %v1802
        %v1804 = vmul.f32 %v1532, 1.442695
        %v1805 = vpow.pop %v1804
        %v1806 = vmul.f32 %v1533, 1.442695
        %v1807 = vpow.pop %v1806
        %v1808 = vmul.f32 %v1534, 1.442695
        %v1809 = vpow.pop %v1808
        %v1810 = vmul.f32 %v1535, 1.442695
        %v1811 = vpow.pop %v1810
        %v1812 = vmul.f32 %v1536, 1.442695
        %v1813 = vpow.pop %v1812
        %v1814 = vmul.f32 %v1537, 1.442695
        %v1815 = vpow.pop %v1814
        %v1816 = vmul.f32 %v1538, 1.442695
        %v1817 = vpow.pop %v1816
        %v1818 = vmul.f32 %v1539, 1.442695
        %v1819 = vpow.pop %v1818
        %v1820 = vmul.f32 %v1540, 1.442695
        %v1821 = vpow.pop %v1820
        %v1822 = vmul.f32 %v1541, 1.442695
        %v1823 = vpow.pop %v1822
        %v1824 = vmul.f32 %v1542, 1.442695
        %v1825 = vpow.pop %v1824
        %v1826 = vmul.f32 %v1543, 1.442695
        %v1827 = vpow.pop %v1826
        %v1828 = vmul.f32 %v1544, 1.442695
        %v1829 = vpow.pop %v1828
        %v1830 = vmul.f32 %v1545, 1.442695
        %v1831 = vpow.pop %v1830
        %v1832 = vmul.f32 %v1546, 1.442695
        %v1833 = vpow.pop %v1832
        %v1834 = vmul.f32 %v1547, 1.442695
        %v1835 = vpow.pop %v1834
        %v1836 = vmul.f32 %v1548, 1.442695
        %v1837 = vpow.pop %v1836
        %v1838 = vmul.f32 %v1549, 1.442695
        %v1839 = vpow.pop %v1838
        %v1840 = vmul.f32 %v1550, 1.442695
        %v1841 = vpow.pop %v1840
        %v1842 = vmul.f32 %v1551, 1.442695
        %v1843 = vpow.pop %v1842
        %v1844 = vmul.f32 %v1552, 1.442695
        %v1845 = vpow.pop %v1844
        %v1846 = vmul.f32 %v1553, 1.442695
        %v1847 = vpow.pop %v1846
        %v1848 = vmul.f32 %v1554, 1.442695
        %v1849 = vpow.pop %v1848
        %v1850 = vmul.f32 %v1555, 1.442695
        %v1851 = vpow.pop %v1850
        %v1852 = vmul.f32 %v1556, 1.442695
        %v1853 = vpow.pop %v1852
        %v1854 = vmul.f32 %v1557, 1.442695
        %v1855 = vpow.pop %v1854
        %v1856 = vmul.f32 %v1558, 1.442695
        %v1857 = vpow.pop %v1856
        %v1858 = vmul.f32 %v1559, 1.442695
        %v1859 = vpow.pop %v1858
        %v1860 = vmul.f32 %v1560, 1.442695
        %v1861 = vpow.pop %v1860
        %v1862 = vmul.f32 %v1561, 1.442695
        %v1863 = vpow.pop %v1862
        %v1864 = vmul.f32 %v1562, 1.442695
        %v1865 = vpow.pop %v1864
        %v1866 = vmul.f32 %v1563, 1.442695
        %v1867 = vpow.pop %v1866
        %v1868 = vmul.f32 %v1564, 1.442695
        %v1869 = vpow.pop %v1868
        %v1870 = vmul.f32 %v1565, 1.442695
        %v1871 = vpow.pop %v1870
        %v1872 = vmul.f32 %v1566, 1.442695
        %v1873 = vpow.pop %v1872
        %v1874 = vmul.f32 %v1567, 1.442695
        %v1875 = vpow.pop %v1874
        %v1876 = vmul.f32 %v1568, 1.442695
        %v1877 = vpow.pop %v1876
        %v1878 = vmul.f32 %v1569, 1.442695
        %v1879 = vpow.pop %v1878
        %v1880 = vmul.f32 %v1570, 1.442695
        %v1881 = vpow.pop %v1880
        %v1882 = vmul.f32 %v1571, 1.442695
        %v1883 = vpow.pop %v1882
        %v1884 = vmul.f32 %v1572, 1.442695
        %v1885 = vpow.pop %v1884
        %v1886 = vmul.f32 %v1573, 1.442695
        %v1887 = vpow.pop %v1886
        %v1888 = vmul.f32 %v1574, 1.442695
        %v1889 = vpow.pop %v1888
        %v1890 = vmul.f32 %v1575, 1.442695
        %v1891 = vpow.pop %v1890
        %v1892 = vmul.f32 %v1576, 1.442695
        %v1893 = vpow.pop %v1892
        %v1894 = vmul.f32 %v1577, 1.442695
        %v1895 = vpow.pop %v1894
        %v1896 = vmul.f32 %v1578, 1.442695
        %v1897 = vpow.pop %v1896
        %v1898 = vmul.f32 %v1579, 1.442695
        %v1899 = vpow.pop %v1898
        %v1900 = vmul.f32 %v1580, 1.442695
        %v1901 = vpow.pop %v1900
        %v1902 = vmul.f32 %v1581, 1.442695
        %v1903 = vpow.pop %v1902
        %v1904 = vmul.f32 %v1582, 1.442695
        %v1905 = vpow.pop %v1904
        %v1906 = vmul.f32 %v1583, 1.442695
        %v1907 = vpow.pop %v1906
        %v1908 = vmul.f32 %v1584, 1.442695
        %v1909 = vpow.pop %v1908
        %v1910 = vmul.f32 %v1585, 1.442695
        %v1911 = vpow.pop %v1910
        %v1912 = vmul.f32 %v1586, 1.442695
        %v1913 = vpow.pop %v1912
        %v1914 = vmul.f32 %v1587, 1.442695
        %v1915 = vpow.pop %v1914
        %v1916 = vmul.f32 %v1588, 1.442695
        %v1917 = vpow.pop %v1916
        %v1918 = vmul.f32 %v1589, 1.442695
        %v1919 = vpow.pop %v1918
        %v1920 = vmul.f32 %v1590, 1.442695
        %v1921 = vpow.pop %v1920
        %v1922 = vmul.f32 %v1591, 1.442695
        %v1923 = vpow.pop %v1922
        %v1924 = vmul.f32 %v1592, 1.442695
        %v1925 = vpow.pop %v1924
        %v1926 = vmul.f32 %v1593, 1.442695
        %v1927 = vpow.pop %v1926
        %v1928 = vmul.f32 %v1594, 1.442695
        %v1929 = vpow.pop %v1928
        %v1930 = vmul.f32 %v1595, 1.442695
        %v1931 = vpow.pop %v1930
        %v1932 = vmul.f32 %v1596, 1.442695
        %v1933 = vpow.pop %v1932
        %v1934 = vmul.f32 %v1597, 1.442695
        %v1935 = vpow.pop %v1934
        %v1936 = vmul.f32 %v1598, 1.442695
        %v1937 = vpow.pop %v1936
        %v1938 = vmul.f32 %v1599, 1.442695
        %v1939 = vpow.pop %v1938
        %v1940 = vmul.f32 %v1600, 1.442695
        %v1941 = vpow.pop %v1940
        %v1942 = vmul.f32 %v1601, 1.442695
        %v1943 = vpow.pop %v1942
        %v1944 = vmul.f32 %v1602, 1.442695
        %v1945 = vpow.pop %v1944
        %v1946 = vmul.f32 %v1603, 1.442695
        %v1947 = vpow.pop %v1946
        %v1948 = vmul.f32 %v1604, 1.442695
        %v1949 = vpow.pop %v1948
        %v1950 = vmul.f32 %v1605, 1.442695
        %v1951 = vpow.pop %v1950
        %v1952 = vmul.f32 %v1606, 1.442695
        %v1953 = vpow.pop %v1952
        %v1954 = vmul.f32 %v1607, 1.442695
        %v1955 = vpow.pop %v1954
        %v1956 = vmul.f32 %v1608, 1.442695
        %v1957 = vpow.pop %v1956
        %v1958 = vmul.f32 %v1609, 1.442695
        %v1959 = vpow.pop %v1958
        %v1960 = vmul.f32 %v1610, 1.442695
        %v1961 = vpow.pop %v1960
        %v1962 = vmul.f32 %v1611, 1.442695
        %v1963 = vpow.pop %v1962
        %v1964 = vmul.f32 %v1612, 1.442695
        %v1965 = vpow.pop %v1964
        %v1966 = vmul.f32 %v1613, 1.442695
        %v1967 = vpow.pop %v1966
        %v1968 = vmul.f32 %v1614, 1.442695
        %v1969 = vpow.pop %v1968
        %v1970 = vmul.f32 %v1615, 1.442695
        %v1971 = vpow.pop %v1970
        %v1972 = vmul.f32 %v1616, 1.442695
        %v1973 = vpow.pop %v1972
        %v1974 = vmul.f32 %v1617, 1.442695
        %v1975 = vpow.pop %v1974
        %v1976 = vmul.f32 %v1618, 1.442695
        %v1977 = vpow.pop %v1976
        %v1978 = vmul.f32 %v1619, 1.442695
        %v1979 = vpow.pop %v1978
        %v1980 = vmul.f32 %v1620, 1.442695
        %v1981 = vpow.pop %v1980
        %v1982 = vmul.f32 %v1621, 1.442695
        %v1983 = vpow.pop %v1982
        %v1984 = vmul.f32 %v1622, 1.442695
        %v1985 = vpow.pop %v1984
        %v1986 = vmul.f32 %v1623, 1.442695
        %v1987 = vpow.pop %v1986
        %v1988 = vmul.f32 %v1624, 1.442695
        %v1989 = vpow.pop %v1988
        %v1990 = vmul.f32 %v1625, 1.442695
        %v1991 = vpow.pop %v1990
        %v1992 = vmul.f32 %v1626, 1.442695
        %v1993 = vpow.pop %v1992
        %v1994 = vmul.f32 %v1627, 1.442695
        %v1995 = vpow.pop %v1994
        %v1996 = vmul.f32 %v1628, 1.442695
        %v1997 = vpow.pop %v1996
        %v1998 = vmul.f32 %v1629, 1.442695
        %v1999 = vpow.pop %v1998
        %v2000 = vmul.f32 %v1630, 1.442695
        %v2001 = vpow.pop %v2000
        %v2002 = vmul.f32 %v1631, 1.442695
        %v2003 = vpow.pop %v2002
        %v2004 = vmul.f32 %v1632, 1.442695
        %v2005 = vpow.pop %v2004
        %v2006 = vmul.f32 %v1633, 1.442695
        %v2007 = vpow.pop %v2006
        %v2008 = vmul.f32 %v1634, 1.442695
        %v2009 = vpow.pop %v2008
        %v2010 = vmul.f32 %v1635, 1.442695
        %v2011 = vpow.pop %v2010
        %v2012 = vmul.f32 %v1636, 1.442695
        %v2013 = vpow.pop %v2012
        %v2014 = vmul.f32 %v1637, 1.442695
        %v2015 = vpow.pop %v2014
        %v2016 = vmul.f32 %v1638, 1.442695
        %v2017 = vpow.pop %v2016
        %v2018 = vmul.f32 %v1639, 1.442695
        %v2019 = vpow.pop %v2018
        %v2020 = vmul.f32 %v1640, 1.442695
        %v2021 = vpow.pop %v2020
        %v2022 = vmul.f32 %v1641, 1.442695
        %v2023 = vpow.pop %v2022
        %v2024 = vmul.f32 %v1642, 1.442695
        %v2025 = vpow.pop %v2024
        %v2026 = vmul.f32 %v1643, 1.442695
        %v2027 = vpow.pop %v2026
        %v2028 = vsub.f32 %v1645, 1.0
        %v2029 = vsub.f32 %v1647, 1.0
        %v2030 = vsub.f32 %v1649, 1.0
        %v2031 = vsub.f32 %v1651, 1.0
        %v2032 = vsub.f32 %v1653, 1.0
        %v2033 = vsub.f32 %v1655, 1.0
        %v2034 = vsub.f32 %v1657, 1.0
        %v2035 = vsub.f32 %v1659, 1.0
        %v2036 = vsub.f32 %v1661, 1.0
        %v2037 = vsub.f32 %v1663, 1.0
        %v2038 = vsub.f32 %v1665, 1.0
        %v2039 = vsub.f32 %v1667, 1.0
        %v2040 = vsub.f32 %v1669, 1.0
        %v2041 = vsub.f32 %v1671, 1.0
        %v2042 = vsub.f32 %v1673, 1.0
        %v2043 = vsub.f32 %v1675, 1.0
        %v2044 = vsub.f32 %v1677, 1.0
        %v2045 = vsub.f32 %v1679, 1.0
        %v2046 = vsub.f32 %v1681, 1.0
        %v2047 = vsub.f32 %v1683, 1.0
        %v2048 = vsub.f32 %v1685, 1.0
        %v2049 = vsub.f32 %v1687, 1.0
        %v2050 = vsub.f32 %v1689, 1.0
        %v2051 = vsub.f32 %v1691, 1.0
        %v2052 = vsub.f32 %v1693, 1.0
        %v2053 = vsub.f32 %v1695, 1.0
        %v2054 = vsub.f32 %v1697, 1.0
        %v2055 = vsub.f32 %v1699, 1.0
        %v2056 = vsub.f32 %v1701, 1.0
        %v2057 = vsub.f32 %v1703, 1.0
        %v2058 = vsub.f32 %v1705, 1.0
        %v2059 = vsub.f32 %v1707, 1.0
        %v2060 = vsub.f32 %v1709, 1.0
        %v2061 = vsub.f32 %v1711, 1.0
        %v2062 = vsub.f32 %v1713, 1.0
        %v2063 = vsub.f32 %v1715, 1.0
        %v2064 = vsub.f32 %v1717, 1.0
        %v2065 = vsub.f32 %v1719, 1.0
        %v2066 = vsub.f32 %v1721, 1.0
        %v2067 = vsub.f32 %v1723, 1.0
        %v2068 = vsub.f32 %v1725, 1.0
        %v2069 = vsub.f32 %v1727, 1.0
        %v2070 = vsub.f32 %v1729, 1.0
        %v2071 = vsub.f32 %v1731, 1.0
        %v2072 = vsub.f32 %v1733, 1.0
        %v2073 = vsub.f32 %v1735, 1.0
        %v2074 = vsub.f32 %v1737, 1.0
        %v2075 = vsub.f32 %v1739, 1.0
        %v2076 = vsub.f32 %v1741, 1.0
        %v2077 = vsub.f32 %v1743, 1.0
        %v2078 = vsub.f32 %v1745, 1.0
        %v2079 = vsub.f32 %v1747, 1.0
        %v2080 = vsub.f32 %v1749, 1.0
        %v2081 = vsub.f32 %v1751, 1.0
        %v2082 = vsub.f32 %v1753, 1.0
        %v2083 = vsub.f32 %v1755, 1.0
        %v2084 = vsub.f32 %v1757, 1.0
        %v2085 = vsub.f32 %v1759, 1.0
        %v2086 = vsub.f32 %v1761, 1.0
        %v2087 = vsub.f32 %v1763, 1.0
        %v2088 = vsub.f32 %v1765, 1.0
        %v2089 = vsub.f32 %v1767, 1.0
        %v2090 = vsub.f32 %v1769, 1.0
        %v2091 = vsub.f32 %v1771, 1.0
        %v2092 = vsub.f32 %v1773, 1.0
        %v2093 = vsub.f32 %v1775, 1.0
        %v2094 = vsub.f32 %v1777, 1.0
        %v2095 = vsub.f32 %v1779, 1.0
        %v2096 = vsub.f32 %v1781, 1.0
        %v2097 = vsub.f32 %v1783, 1.0
        %v2098 = vsub.f32 %v1785, 1.0
        %v2099 = vsub.f32 %v1787, 1.0
        %v2100 = vsub.f32 %v1789, 1.0
        %v2101 = vsub.f32 %v1791, 1.0
        %v2102 = vsub.f32 %v1793, 1.0
        %v2103 = vsub.f32 %v1795, 1.0
        %v2104 = vsub.f32 %v1797, 1.0
        %v2105 = vsub.f32 %v1799, 1.0
        %v2106 = vsub.f32 %v1801, 1.0
        %v2107 = vsub.f32 %v1803, 1.0
        %v2108 = vsub.f32 %v1805, 1.0
        %v2109 = vsub.f32 %v1807, 1.0
        %v2110 = vsub.f32 %v1809, 1.0
        %v2111 = vsub.f32 %v1811, 1.0
        %v2112 = vsub.f32 %v1813, 1.0
        %v2113 = vsub.f32 %v1815, 1.0
        %v2114 = vsub.f32 %v1817, 1.0
        %v2115 = vsub.f32 %v1819, 1.0
        %v2116 = vsub.f32 %v1821, 1.0
        %v2117 = vsub.f32 %v1823, 1.0
        %v2118 = vsub.f32 %v1825, 1.0
        %v2119 = vsub.f32 %v1827, 1.0
        %v2120 = vsub.f32 %v1829, 1.0
        %v2121 = vsub.f32 %v1831, 1.0
        %v2122 = vsub.f32 %v1833, 1.0
        %v2123 = vsub.f32 %v1835, 1.0
        %v2124 = vsub.f32 %v1837, 1.0
        %v2125 = vsub.f32 %v1839, 1.0
        %v2126 = vsub.f32 %v1841, 1.0
        %v2127 = vsub.f32 %v1843, 1.0
        %v2128 = vsub.f32 %v1845, 1.0
        %v2129 = vsub.f32 %v1847, 1.0
        %v2130 = vsub.f32 %v1849, 1.0
        %v2131 = vsub.f32 %v1851, 1.0
        %v2132 = vsub.f32 %v1853, 1.0
        %v2133 = vsub.f32 %v1855, 1.0
        %v2134 = vsub.f32 %v1857, 1.0
        %v2135 = vsub.f32 %v1859, 1.0
        %v2136 = vsub.f32 %v1861, 1.0
        %v2137 = vsub.f32 %v1863, 1.0
        %v2138 = vsub.f32 %v1865, 1.0
        %v2139 = vsub.f32 %v1867, 1.0
        %v2140 = vsub.f32 %v1869, 1.0
        %v2141 = vsub.f32 %v1871, 1.0
        %v2142 = vsub.f32 %v1873, 1.0
        %v2143 = vsub.f32 %v1875, 1.0
        %v2144 = vsub.f32 %v1877, 1.0
        %v2145 = vsub.f32 %v1879, 1.0
        %v2146 = vsub.f32 %v1881, 1.0
        %v2147 = vsub.f32 %v1883, 1.0
        %v2148 = vsub.f32 %v1885, 1.0
        %v2149 = vsub.f32 %v1887, 1.0
        %v2150 = vsub.f32 %v1889, 1.0
        %v2151 = vsub.f32 %v1891, 1.0
        %v2152 = vsub.f32 %v1893, 1.0
        %v2153 = vsub.f32 %v1895, 1.0
        %v2154 = vsub.f32 %v1897, 1.0
        %v2155 = vsub.f32 %v1899, 1.0
        %v2156 = vsub.f32 %v1901, 1.0
        %v2157 = vsub.f32 %v1903, 1.0
        %v2158 = vsub.f32 %v1905, 1.0
        %v2159 = vsub.f32 %v1907, 1.0
        %v2160 = vsub.f32 %v1909, 1.0
        %v2161 = vsub.f32 %v1911, 1.0
        %v2162 = vsub.f32 %v1913, 1.0
        %v2163 = vsub.f32 %v1915, 1.0
        %v2164 = vsub.f32 %v1917, 1.0
        %v2165 = vsub.f32 %v1919, 1.0
        %v2166 = vsub.f32 %v1921, 1.0
        %v2167 = vsub.f32 %v1923, 1.0
        %v2168 = vsub.f32 %v1925, 1.0
        %v2169 = vsub.f32 %v1927, 1.0
        %v2170 = vsub.f32 %v1929, 1.0
        %v2171 = vsub.f32 %v1931, 1.0
        %v2172 = vsub.f32 %v1933, 1.0
        %v2173 = vsub.f32 %v1935, 1.0
        %v2174 = vsub.f32 %v1937, 1.0
        %v2175 = vsub.f32 %v1939, 1.0
        %v2176 = vsub.f32 %v1941, 1.0
        %v2177 = vsub.f32 %v1943, 1.0
        %v2178 = vsub.f32 %v1945, 1.0
        %v2179 = vsub.f32 %v1947, 1.0
        %v2180 = vsub.f32 %v1949, 1.0
        %v2181 = vsub.f32 %v1951, 1.0
        %v2182 = vsub.f32 %v1953, 1.0
        %v2183 = vsub.f32 %v1955, 1.0
        %v2184 = vsub.f32 %v1957, 1.0
        %v2185 = vsub.f32 %v1959, 1.0
        %v2186 = vsub.f32 %v1961, 1.0
        %v2187 = vsub.f32 %v1963, 1.0
        %v2188 = vsub.f32 %v1965, 1.0
        %v2189 = vsub.f32 %v1967, 1.0
        %v2190 = vsub.f32 %v1969, 1.0
        %v2191 = vsub.f32 %v1971, 1.0
        %v2192 = vsub.f32 %v1973, 1.0
        %v2193 = vsub.f32 %v1975, 1.0
        %v2194 = vsub.f32 %v1977, 1.0
        %v2195 = vsub.f32 %v1979, 1.0
        %v2196 = vsub.f32 %v1981, 1.0
        %v2197 = vsub.f32 %v1983, 1.0
        %v2198 = vsub.f32 %v1985, 1.0
        %v2199 = vsub.f32 %v1987, 1.0
        %v2200 = vsub.f32 %v1989, 1.0
        %v2201 = vsub.f32 %v1991, 1.0
        %v2202 = vsub.f32 %v1993, 1.0
        %v2203 = vsub.f32 %v1995, 1.0
        %v2204 = vsub.f32 %v1997, 1.0
        %v2205 = vsub.f32 %v1999, 1.0
        %v2206 = vsub.f32 %v2001, 1.0
        %v2207 = vsub.f32 %v2003, 1.0
        %v2208 = vsub.f32 %v2005, 1.0
        %v2209 = vsub.f32 %v2007, 1.0
        %v2210 = vsub.f32 %v2009, 1.0
        %v2211 = vsub.f32 %v2011, 1.0
        %v2212 = vsub.f32 %v2013, 1.0
        %v2213 = vsub.f32 %v2015, 1.0
        %v2214 = vsub.f32 %v2017, 1.0
        %v2215 = vsub.f32 %v2019, 1.0
        %v2216 = vsub.f32 %v2021, 1.0
        %v2217 = vsub.f32 %v2023, 1.0
        %v2218 = vsub.f32 %v2025, 1.0
        %v2219 = vsub.f32 %v2027, 1.0
        %v2220 = vsel %vm1260, %v498, %v2028
        %v2221 = vsel %vm1261, %v563, %v2029
        %v2222 = vsel %vm1262, %v628, %v2030
        %v2223 = vsel %vm1263, %v693, %v2031
        %v2224 = vsel %vm1264, %v758, %v2032
        %v2225 = vsel %vm1265, %v823, %v2033
        %v2226 = vsel %vm1266, %v888, %v2034
        %v2227 = vsel %vm1267, %v953, %v2035
        %v2228 = vsel %vm1268, %v1018, %v2036
        %v2229 = vsel %vm1269, %v1083, %v2037
        %v2230 = vsel %vm1270, %v1148, %v2038
        %v2231 = vsel %vm1271, %v1213, %v2039
        %v2232 = vsel %vm1272, %v501, %v2040
        %v2233 = vsel %vm1273, %v566, %v2041
        %v2234 = vsel %vm1274, %v631, %v2042
        %v2235 = vsel %vm1275, %v696, %v2043
        %v2236 = vsel %vm1276, %v761, %v2044
        %v2237 = vsel %vm1277, %v826, %v2045
        %v2238 = vsel %vm1278, %v891, %v2046
        %v2239 = vsel %vm1279, %v956, %v2047
        %v2240 = vsel %vm1280, %v1021, %v2048
        %v2241 = vsel %vm1281, %v1086, %v2049
        %v2242 = vsel %vm1282, %v1151, %v2050
        %v2243 = vsel %vm1283, %v1216, %v2051
        %v2244 = vsel %vm1284, %v504, %v2052
        %v2245 = vsel %vm1285, %v569, %v2053
        %v2246 = vsel %vm1286, %v634, %v2054
        %v2247 = vsel %vm1287, %v699, %v2055
        %v2248 = vsel %vm1288, %v764, %v2056
        %v2249 = vsel %vm1289, %v829, %v2057
        %v2250 = vsel %vm1290, %v894, %v2058
        %v2251 = vsel %vm1291, %v959, %v2059
        %v2252 = vsel %vm1292, %v1024, %v2060
        %v2253 = vsel %vm1293, %v1089, %v2061
        %v2254 = vsel %vm1294, %v1154, %v2062
        %v2255 = vsel %vm1295, %v1219, %v2063
        %v2256 = vsel %vm1296, %v507, %v2064
        %v2257 = vsel %vm1297, %v572, %v2065
        %v2258 = vsel %vm1298, %v637, %v2066
        %v2259 = vsel %vm1299, %v702, %v2067
        %v2260 = vsel %vm1300, %v767, %v2068
        %v2261 = vsel %vm1301, %v832, %v2069
        %v2262 = vsel %vm1302, %v897, %v2070
        %v2263 = vsel %vm1303, %v962, %v2071
        %v2264 = vsel %vm1304, %v1027, %v2072
        %v2265 = vsel %vm1305, %v1092, %v2073
        %v2266 = vsel %vm1306, %v1157, %v2074
        %v2267 = vsel %vm1307, %v1222, %v2075
        %v2268 = vsel %vm1308, %v510, %v2076
        %v2269 = vsel %vm1309, %v575, %v2077
        %v2270 = vsel %vm1310, %v640, %v2078
        %v2271 = vsel %vm1311, %v705, %v2079
        %v2272 = vsel %vm1312, %v770, %v2080
        %v2273 = vsel %vm1313, %v835, %v2081
        %v2274 = vsel %vm1314, %v900, %v2082
        %v2275 = vsel %vm1315, %v965, %v2083
        %v2276 = vsel %vm1316, %v1030, %v2084
        %v2277 = vsel %vm1317, %v1095, %v2085
        %v2278 = vsel %vm1318, %v1160, %v2086
        %v2279 = vsel %vm1319, %v1225, %v2087
        %v2280 = vsel %vm1320, %v513, %v2088
        %v2281 = vsel %vm1321, %v578, %v2089
        %v2282 = vsel %vm1322, %v643, %v2090
        %v2283 = vsel %vm1323, %v708, %v2091
        %v2284 = vsel %vm1324, %v773, %v2092
        %v2285 = vsel %vm1325, %v838, %v2093
        %v2286 = vsel %vm1326, %v903, %v2094
        %v2287 = vsel %vm1327, %v968, %v2095
        %v2288 = vsel %vm1328, %v1033, %v2096
        %v2289 = vsel %vm1329, %v1098, %v2097
        %v2290 = vsel %vm1330, %v1163, %v2098
        %v2291 = vsel %vm1331, %v1228, %v2099
        %v2292 = vsel %vm1332, %v516, %v2100
        %v2293 = vsel %vm1333, %v581, %v2101
        %v2294 = vsel %vm1334, %v646, %v2102
        %v2295 = vsel %vm1335, %v711, %v2103
        %v2296 = vsel %vm1336, %v776, %v2104
        %v2297 = vsel %vm1337, %v841, %v2105
        %v2298 = vsel %vm1338, %v906, %v2106
        %v2299 = vsel %vm1339, %v971, %v2107
        %v2300 = vsel %vm1340, %v1036, %v2108
        %v2301 = vsel %vm1341, %v1101, %v2109
        %v2302 = vsel %vm1342, %v1166, %v2110
        %v2303 = vsel %vm1343, %v1231, %v2111
        %v2304 = vsel %vm1344, %v519, %v2112
        %v2305 = vsel %vm1345, %v584, %v2113
        %v2306 = vsel %vm1346, %v649, %v2114
        %v2307 = vsel %vm1347, %v714, %v2115
        %v2308 = vsel %vm1348, %v779, %v2116
        %v2309 = vsel %vm1349, %v844, %v2117
        %v2310 = vsel %vm1350, %v909, %v2118
        %v2311 = vsel %vm1351, %v974, %v2119
        %v2312 = vsel %vm1352, %v1039, %v2120
        %v2313 = vsel %vm1353, %v1104, %v2121
        %v2314 = vsel %vm1354, %v1169, %v2122
        %v2315 = vsel %vm1355, %v1234, %v2123
        %v2316 = vsel %vm1356, %v522, %v2124
        %v2317 = vsel %vm1357, %v587, %v2125
        %v2318 = vsel %vm1358, %v652, %v2126
        %v2319 = vsel %vm1359, %v717, %v2127
        %v2320 = vsel %vm1360, %v782, %v2128
        %v2321 = vsel %vm1361, %v847, %v2129
        %v2322 = vsel %vm1362, %v912, %v2130
        %v2323 = vsel %vm1363, %v977, %v2131
        %v2324 = vsel %vm1364, %v1042, %v2132
        %v2325 = vsel %vm1365, %v1107, %v2133
        %v2326 = vsel %vm1366, %v1172, %v2134
        %v2327 = vsel %vm1367, %v1237, %v2135
        %v2328 = vsel %vm1368, %v525, %v2136
        %v2329 = vsel %vm1369, %v590, %v2137
        %v2330 = vsel %vm1370, %v655, %v2138
        %v2331 = vsel %vm1371, %v720, %v2139
        %v2332 = vsel %vm1372, %v785, %v2140
        %v2333 = vsel %vm1373, %v850, %v2141
        %v2334 = vsel %vm1374, %v915, %v2142
        %v2335 = vsel %vm1375, %v980, %v2143
        %v2336 = vsel %vm1376, %v1045, %v2144
        %v2337 = vsel %vm1377, %v1110, %v2145
        %v2338 = vsel %vm1378, %v1175, %v2146
        %v2339 = vsel %vm1379, %v1240, %v2147
        %v2340 = vsel %vm1380, %v528, %v2148
        %v2341 = vsel %vm1381, %v593, %v2149
        %v2342 = vsel %vm1382, %v658, %v2150
        %v2343 = vsel %vm1383, %v723, %v2151
        %v2344 = vsel %vm1384, %v788, %v2152
        %v2345 = vsel %vm1385, %v853, %v2153
        %v2346 = vsel %vm1386, %v918, %v2154
        %v2347 = vsel %vm1387, %v983, %v2155
        %v2348 = vsel %vm1388, %v1048, %v2156
        %v2349 = vsel %vm1389, %v1113, %v2157
        %v2350 = vsel %vm1390, %v1178, %v2158
        %v2351 = vsel %vm1391, %v1243, %v2159
        %v2352 = vsel %vm1392, %v531, %v2160
        %v2353 = vsel %vm1393, %v596, %v2161
        %v2354 = vsel %vm1394, %v661, %v2162
        %v2355 = vsel %vm1395, %v726, %v2163
        %v2356 = vsel %vm1396, %v791, %v2164
        %v2357 = vsel %vm1397, %v856, %v2165
        %v2358 = vsel %vm1398, %v921, %v2166
        %v2359 = vsel %vm1399, %v986, %v2167
        %v2360 = vsel %vm1400, %v1051, %v2168
        %v2361 = vsel %vm1401, %v1116, %v2169
        %v2362 = vsel %vm1402, %v1181, %v2170
        %v2363 = vsel %vm1403, %v1246, %v2171
        %v2364 = vsel %vm1404, %v534, %v2172
        %v2365 = vsel %vm1405, %v599, %v2173
        %v2366 = vsel %vm1406, %v664, %v2174
        %v2367 = vsel %vm1407, %v729, %v2175
        %v2368 = vsel %vm1408, %v794, %v2176
        %v2369 = vsel %vm1409, %v859, %v2177
        %v2370 = vsel %vm1410, %v924, %v2178
        %v2371 = vsel %vm1411, %v989, %v2179
        %v2372 = vsel %vm1412, %v1054, %v2180
        %v2373 = vsel %vm1413, %v1119, %v2181
        %v2374 = vsel %vm1414, %v1184, %v2182
        %v2375 = vsel %vm1415, %v1249, %v2183
        %v2376 = vsel %vm1416, %v537, %v2184
        %v2377 = vsel %vm1417, %v602, %v2185
        %v2378 = vsel %vm1418, %v667, %v2186
        %v2379 = vsel %vm1419, %v732, %v2187
        %v2380 = vsel %vm1420, %v797, %v2188
        %v2381 = vsel %vm1421, %v862, %v2189
        %v2382 = vsel %vm1422, %v927, %v2190
        %v2383 = vsel %vm1423, %v992, %v2191
        %v2384 = vsel %vm1424, %v1057, %v2192
        %v2385 = vsel %vm1425, %v1122, %v2193
        %v2386 = vsel %vm1426, %v1187, %v2194
        %v2387 = vsel %vm1427, %v1252, %v2195
        %v2388 = vsel %vm1428, %v540, %v2196
        %v2389 = vsel %vm1429, %v605, %v2197
        %v2390 = vsel %vm1430, %v670, %v2198
        %v2391 = vsel %vm1431, %v735, %v2199
        %v2392 = vsel %vm1432, %v800, %v2200
        %v2393 = vsel %vm1433, %v865, %v2201
        %v2394 = vsel %vm1434, %v930, %v2202
        %v2395 = vsel %vm1435, %v995, %v2203
        %v2396 = vsel %vm1436, %v1060, %v2204
        %v2397 = vsel %vm1437, %v1125, %v2205
        %v2398 = vsel %vm1438, %v1190, %v2206
        %v2399 = vsel %vm1439, %v1255, %v2207
        %v2400 = vsel %vm1440, %v543, %v2208
        %v2401 = vsel %vm1441, %v608, %v2209
        %v2402 = vsel %vm1442, %v673, %v2210
        %v2403 = vsel %vm1443, %v738, %v2211
        %v2404 = vsel %vm1444, %v803, %v2212
        %v2405 = vsel %vm1445, %v868, %v2213
        %v2406 = vsel %vm1446, %v933, %v2214
        %v2407 = vsel %vm1447, %v998, %v2215
        %v2408 = vsel %vm1448, %v1063, %v2216
        %v2409 = vsel %vm1449, %v1128, %v2217
        %v2410 = vsel %vm1450, %v1193, %v2218
        %v2411 = vsel %vm1451, %v1258, %v2219
        %v2412 = vld [vmem:[%s3] sm:$0xff]
        %v2413 = vld [vmem:[%s3 + $0x8] sm:$0xff]
        %v2414 = vld [vmem:[%s3 + $0x10] sm:$0xff]
        %v2415 = vld [vmem:[%s3 + $0x18] sm:$0xff]
        %v2416 = vld [vmem:[%s3 + $0x20] sm:$0xff]
        %v2417 = vld [vmem:[%s3 + $0x28] sm:$0xff]
        %v2418 = vld [vmem:[%s3 + $0x30] sm:$0xff]
        %v2419 = vld [vmem:[%s3 + $0x38] sm:$0xff]
        %v2420 = vld [vmem:[%s3 + $0x40] sm:$0xff]
        %v2421 = vld [vmem:[%s3 + $0x48] sm:$0xff]
        %v2422 = vld [vmem:[%s3 + $0x50] sm:$0xff]
        %v2423 = vld [vmem:[%s3 + $0x58] sm:$0xff]
        %v2424 = vld [vmem:[%s3 + $0x60] sm:$0xff]
        %v2425 = vld [vmem:[%s3 + $0x68] sm:$0xff]
        %v2426 = vld [vmem:[%s3 + $0x70] sm:$0xff]
        %v2427 = vld [vmem:[%s3 + $0x78] sm:$0xff]
        %v2428 = vld [vmem:[%s4] sm:$0xff]
        %v2429 = vld [vmem:[%s4 + $0x8] sm:$0xff]
        %v2430 = vld [vmem:[%s4 + $0x10] sm:$0xff]
        %v2431 = vld [vmem:[%s4 + $0x18] sm:$0xff]
        %v2432 = vld [vmem:[%s4 + $0x20] sm:$0xff]
        %v2433 = vld [vmem:[%s4 + $0x28] sm:$0xff]
        %v2434 = vld [vmem:[%s4 + $0x30] sm:$0xff]
        %v2435 = vld [vmem:[%s4 + $0x38] sm:$0xff]
        %v2436 = vld [vmem:[%s4 + $0x40] sm:$0xff]
        %v2437 = vld [vmem:[%s4 + $0x48] sm:$0xff]
        %v2438 = vld [vmem:[%s4 + $0x50] sm:$0xff]
        %v2439 = vld [vmem:[%s4 + $0x58] sm:$0xff]
        %v2440 = vld [vmem:[%s4 + $0x60] sm:$0xff]
        %v2441 = vld [vmem:[%s4 + $0x68] sm:$0xff]
        %v2442 = vld [vmem:[%s4 + $0x70] sm:$0xff]
        %v2443 = vld [vmem:[%s4 + $0x78] sm:$0xff]
        %2445 = vset.pattern.permute.xlu0 0
        %2446 = vperm.xlu0 %2445, %v2428
        %v2447 = vpop.permute.xlu0 %2446
        %2450 = vset.pattern.permute.xlu0 0
        %2451 = vperm.xlu0 %2450, %v2429
        %v2452 = vpop.permute.xlu0 %2451
        %2455 = vset.pattern.permute.xlu0 0
        %2456 = vperm.xlu0 %2455, %v2430
        %v2457 = vpop.permute.xlu0 %2456
        %2460 = vset.pattern.permute.xlu0 0
        %2461 = vperm.xlu0 %2460, %v2431
        %v2462 = vpop.permute.xlu0 %2461
        %2465 = vset.pattern.permute.xlu0 0
        %2466 = vperm.xlu0 %2465, %v2432
        %v2467 = vpop.permute.xlu0 %2466
        %2470 = vset.pattern.permute.xlu0 0
        %2471 = vperm.xlu0 %2470, %v2433
        %v2472 = vpop.permute.xlu0 %2471
        %2475 = vset.pattern.permute.xlu0 0
        %2476 = vperm.xlu0 %2475, %v2434
        %v2477 = vpop.permute.xlu0 %2476
        %2480 = vset.pattern.permute.xlu0 0
        %2481 = vperm.xlu0 %2480, %v2435
        %v2482 = vpop.permute.xlu0 %2481
        %2485 = vset.pattern.permute.xlu0 0
        %2486 = vperm.xlu0 %2485, %v2436
        %v2487 = vpop.permute.xlu0 %2486
        %2490 = vset.pattern.permute.xlu0 0
        %2491 = vperm.xlu0 %2490, %v2437
        %v2492 = vpop.permute.xlu0 %2491
        %2495 = vset.pattern.permute.xlu0 0
        %2496 = vperm.xlu0 %2495, %v2438
        %v2497 = vpop.permute.xlu0 %2496
        %2500 = vset.pattern.permute.xlu0 0
        %2501 = vperm.xlu0 %2500, %v2439
        %v2502 = vpop.permute.xlu0 %2501
        %2505 = vset.pattern.permute.xlu0 0
        %2506 = vperm.xlu0 %2505, %v2440
        %v2507 = vpop.permute.xlu0 %2506
        %2510 = vset.pattern.permute.xlu0 0
        %2511 = vperm.xlu0 %2510, %v2441
        %v2512 = vpop.permute.xlu0 %2511
        %2515 = vset.pattern.permute.xlu0 0
        %2516 = vperm.xlu0 %2515, %v2442
        %v2517 = vpop.permute.xlu0 %2516
        %2520 = vset.pattern.permute.xlu0 0
        %2521 = vperm.xlu0 %2520, %v2443
        %v2522 = vpop.permute.xlu0 %2521
        %2524 = vmatpush.msra.mxu0 %v2400
        %2525 = vmatpush.msra.mxu0 %v2388
        %2526 = vmatpush.msra.mxu0 %v2376
        %2527 = vmatpush.msra.mxu0 %v2364
        %2528 = vmatpush.msra.mxu0 %v2352
        %2529 = vmatpush.msra.mxu0 %v2340
        %2530 = vmatpush.msra.mxu0 %v2328
        %2531 = vmatpush.msra.mxu0 %v2316
        %2532 = vmatpush.msra.mxu0 %v2304
        %2533 = vmatpush.msra.mxu0 %v2292
        %2534 = vmatpush.msra.mxu0 %v2280
        %2535 = vmatpush.msra.mxu0 %v2268
        %2536 = vmatpush.msra.mxu0 %v2256
        %2537 = vmatpush.msra.mxu0 %v2244
        %2538 = vmatpush.msra.mxu0 %v2232
        %2539 = vmatpush.msra.mxu0 %v2220
        %2540 = vmatmul.f32.gmra.mxu0 %v2412
        %v2541 = vpop.f32.mrf.mxu0
        %v2542 = vadd.f32 %v2447, %v2541
        %2543 = vmatmul.f32.gmra.mxu0 %v2413
        %v2544 = vpop.f32.mrf.mxu0
        %v2545 = vadd.f32 %v2452, %v2544
        %2546 = vmatmul.f32.gmra.mxu0 %v2414
        %v2547 = vpop.f32.mrf.mxu0
        %v2548 = vadd.f32 %v2457, %v2547
        %2549 = vmatmul.f32.gmra.mxu0 %v2415
        %v2550 = vpop.f32.mrf.mxu0
        %v2551 = vadd.f32 %v2462, %v2550
        %2552 = vmatmul.f32.gmra.mxu0 %v2416
        %v2553 = vpop.f32.mrf.mxu0
        %v2554 = vadd.f32 %v2467, %v2553
        %2555 = vmatmul.f32.gmra.mxu0 %v2417
        %v2556 = vpop.f32.mrf.mxu0
        %v2557 = vadd.f32 %v2472, %v2556
        %2558 = vmatmul.f32.gmra.mxu0 %v2418
        %v2559 = vpop.f32.mrf.mxu0
        %v2560 = vadd.f32 %v2477, %v2559
        %2561 = vmatmul.f32.gmra.mxu0 %v2419
        %v2562 = vpop.f32.mrf.mxu0
        %v2563 = vadd.f32 %v2482, %v2562
        %2564 = vmatmul.f32.gmra.mxu0 %v2420
        %v2565 = vpop.f32.mrf.mxu0
        %v2566 = vadd.f32 %v2487, %v2565
        %2567 = vmatmul.f32.gmra.mxu0 %v2421
        %v2568 = vpop.f32.mrf.mxu0
        %v2569 = vadd.f32 %v2492, %v2568
        %2570 = vmatmul.f32.gmra.mxu0 %v2422
        %v2571 = vpop.f32.mrf.mxu0
        %v2572 = vadd.f32 %v2497, %v2571
        %2573 = vmatmul.f32.gmra.mxu0 %v2423
        %v2574 = vpop.f32.mrf.mxu0
        %v2575 = vadd.f32 %v2502, %v2574
        %2576 = vmatmul.f32.gmra.mxu0 %v2424
        %v2577 = vpop.f32.mrf.mxu0
        %v2578 = vadd.f32 %v2507, %v2577
        %2579 = vmatmul.f32.gmra.mxu0 %v2425
        %v2580 = vpop.f32.mrf.mxu0
        %v2581 = vadd.f32 %v2512, %v2580
        %2582 = vmatmul.f32.gmra.mxu0 %v2426
        %v2583 = vpop.f32.mrf.mxu0
        %v2584 = vadd.f32 %v2517, %v2583
        %2585 = vmatmul.f32.gmra.mxu0 %v2427
        %v2586 = vpop.f32.mrf.mxu0
        %v2587 = vadd.f32 %v2522, %v2586
        %2588 = vdwg.mxu0
        %2589 = vmatpush.msra.mxu0 %v2401
        %2590 = vmatpush.msra.mxu0 %v2389
        %2591 = vmatpush.msra.mxu0 %v2377
        %2592 = vmatpush.msra.mxu0 %v2365
        %2593 = vmatpush.msra.mxu0 %v2353
        %2594 = vmatpush.msra.mxu0 %v2341
        %2595 = vmatpush.msra.mxu0 %v2329
        %2596 = vmatpush.msra.mxu0 %v2317
        %2597 = vmatpush.msra.mxu0 %v2305
        %2598 = vmatpush.msra.mxu0 %v2293
        %2599 = vmatpush.msra.mxu0 %v2281
        %2600 = vmatpush.msra.mxu0 %v2269
        %2601 = vmatpush.msra.mxu0 %v2257
        %2602 = vmatpush.msra.mxu0 %v2245
        %2603 = vmatpush.msra.mxu0 %v2233
        %2604 = vmatpush.msra.mxu0 %v2221
        %2605 = vmatmul.f32.gmra.mxu0 %v2412
        %v2606 = vpop.f32.mrf.mxu0
        %v2607 = vadd.f32 %v2447, %v2606
        %2608 = vmatmul.f32.gmra.mxu0 %v2413
        %v2609 = vpop.f32.mrf.mxu0
        %v2610 = vadd.f32 %v2452, %v2609
        %2611 = vmatmul.f32.gmra.mxu0 %v2414
        %v2612 = vpop.f32.mrf.mxu0
        %v2613 = vadd.f32 %v2457, %v2612
        %2614 = vmatmul.f32.gmra.mxu0 %v2415
        %v2615 = vpop.f32.mrf.mxu0
        %v2616 = vadd.f32 %v2462, %v2615
        %2617 = vmatmul.f32.gmra.mxu0 %v2416
        %v2618 = vpop.f32.mrf.mxu0
        %v2619 = vadd.f32 %v2467, %v2618
        %2620 = vmatmul.f32.gmra.mxu0 %v2417
        %v2621 = vpop.f32.mrf.mxu0
        %v2622 = vadd.f32 %v2472, %v2621
        %2623 = vmatmul.f32.gmra.mxu0 %v2418
        %v2624 = vpop.f32.mrf.mxu0
        %v2625 = vadd.f32 %v2477, %v2624
        %2626 = vmatmul.f32.gmra.mxu0 %v2419
        %v2627 = vpop.f32.mrf.mxu0
        %v2628 = vadd.f32 %v2482, %v2627
        %2629 = vmatmul.f32.gmra.mxu0 %v2420
        %v2630 = vpop.f32.mrf.mxu0
        %v2631 = vadd.f32 %v2487, %v2630
        %2632 = vmatmul.f32.gmra.mxu0 %v2421
        %v2633 = vpop.f32.mrf.mxu0
        %v2634 = vadd.f32 %v2492, %v2633
        %2635 = vmatmul.f32.gmra.mxu0 %v2422
        %v2636 = vpop.f32.mrf.mxu0
        %v2637 = vadd.f32 %v2497, %v2636
        %2638 = vmatmul.f32.gmra.mxu0 %v2423
        %v2639 = vpop.f32.mrf.mxu0
        %v2640 = vadd.f32 %v2502, %v2639
        %2641 = vmatmul.f32.gmra.mxu0 %v2424
        %v2642 = vpop.f32.mrf.mxu0
        %v2643 = vadd.f32 %v2507, %v2642
        %2644 = vmatmul.f32.gmra.mxu0 %v2425
        %v2645 = vpop.f32.mrf.mxu0
        %v2646 = vadd.f32 %v2512, %v2645
        %2647 = vmatmul.f32.gmra.mxu0 %v2426
        %v2648 = vpop.f32.mrf.mxu0
        %v2649 = vadd.f32 %v2517, %v2648
        %2650 = vmatmul.f32.gmra.mxu0 %v2427
        %v2651 = vpop.f32.mrf.mxu0
        %v2652 = vadd.f32 %v2522, %v2651
        %2653 = vdwg.mxu0
        %2654 = vmatpush.msra.mxu0 %v2402
        %2655 = vmatpush.msra.mxu0 %v2390
        %2656 = vmatpush.msra.mxu0 %v2378
        %2657 = vmatpush.msra.mxu0 %v2366
        %2658 = vmatpush.msra.mxu0 %v2354
        %2659 = vmatpush.msra.mxu0 %v2342
        %2660 = vmatpush.msra.mxu0 %v2330
        %2661 = vmatpush.msra.mxu0 %v2318
        %2662 = vmatpush.msra.mxu0 %v2306
        %2663 = vmatpush.msra.mxu0 %v2294
        %2664 = vmatpush.msra.mxu0 %v2282
        %2665 = vmatpush.msra.mxu0 %v2270
        %2666 = vmatpush.msra.mxu0 %v2258
        %2667 = vmatpush.msra.mxu0 %v2246
        %2668 = vmatpush.msra.mxu0 %v2234
        %2669 = vmatpush.msra.mxu0 %v2222
        %2670 = vmatmul.f32.gmra.mxu0 %v2412
        %v2671 = vpop.f32.mrf.mxu0
        %v2672 = vadd.f32 %v2447, %v2671
        %2673 = vmatmul.f32.gmra.mxu0 %v2413
        %v2674 = vpop.f32.mrf.mxu0
        %v2675 = vadd.f32 %v2452, %v2674
        %2676 = vmatmul.f32.gmra.mxu0 %v2414
        %v2677 = vpop.f32.mrf.mxu0
        %v2678 = vadd.f32 %v2457, %v2677
        %2679 = vmatmul.f32.gmra.mxu0 %v2415
        %v2680 = vpop.f32.mrf.mxu0
        %v2681 = vadd.f32 %v2462, %v2680
        %2682 = vmatmul.f32.gmra.mxu0 %v2416
        %v2683 = vpop.f32.mrf.mxu0
        %v2684 = vadd.f32 %v2467, %v2683
        %2685 = vmatmul.f32.gmra.mxu0 %v2417
        %v2686 = vpop.f32.mrf.mxu0
        %v2687 = vadd.f32 %v2472, %v2686
        %2688 = vmatmul.f32.gmra.mxu0 %v2418
        %v2689 = vpop.f32.mrf.mxu0
        %v2690 = vadd.f32 %v2477, %v2689
        %2691 = vmatmul.f32.gmra.mxu0 %v2419
        %v2692 = vpop.f32.mrf.mxu0
        %v2693 = vadd.f32 %v2482, %v2692
        %2694 = vmatmul.f32.gmra.mxu0 %v2420
        %v2695 = vpop.f32.mrf.mxu0
        %v2696 = vadd.f32 %v2487, %v2695
        %2697 = vmatmul.f32.gmra.mxu0 %v2421
        %v2698 = vpop.f32.mrf.mxu0
        %v2699 = vadd.f32 %v2492, %v2698
        %2700 = vmatmul.f32.gmra.mxu0 %v2422
        %v2701 = vpop.f32.mrf.mxu0
        %v2702 = vadd.f32 %v2497, %v2701
        %2703 = vmatmul.f32.gmra.mxu0 %v2423
        %v2704 = vpop.f32.mrf.mxu0
        %v2705 = vadd.f32 %v2502, %v2704
        %2706 = vmatmul.f32.gmra.mxu0 %v2424
        %v2707 = vpop.f32.mrf.mxu0
        %v2708 = vadd.f32 %v2507, %v2707
        %2709 = vmatmul.f32.gmra.mxu0 %v2425
        %v2710 = vpop.f32.mrf.mxu0
        %v2711 = vadd.f32 %v2512, %v2710
        %2712 = vmatmul.f32.gmra.mxu0 %v2426
        %v2713 = vpop.f32.mrf.mxu0
        %v2714 = vadd.f32 %v2517, %v2713
        %2715 = vmatmul.f32.gmra.mxu0 %v2427
        %v2716 = vpop.f32.mrf.mxu0
        %v2717 = vadd.f32 %v2522, %v2716
        %2718 = vdwg.mxu0
        %2719 = vmatpush.msra.mxu0 %v2403
        %2720 = vmatpush.msra.mxu0 %v2391
        %2721 = vmatpush.msra.mxu0 %v2379
        %2722 = vmatpush.msra.mxu0 %v2367
        %2723 = vmatpush.msra.mxu0 %v2355
        %2724 = vmatpush.msra.mxu0 %v2343
        %2725 = vmatpush.msra.mxu0 %v2331
        %2726 = vmatpush.msra.mxu0 %v2319
        %2727 = vmatpush.msra.mxu0 %v2307
        %2728 = vmatpush.msra.mxu0 %v2295
        %2729 = vmatpush.msra.mxu0 %v2283
        %2730 = vmatpush.msra.mxu0 %v2271
        %2731 = vmatpush.msra.mxu0 %v2259
        %2732 = vmatpush.msra.mxu0 %v2247
        %2733 = vmatpush.msra.mxu0 %v2235
        %2734 = vmatpush.msra.mxu0 %v2223
        %2735 = vmatmul.f32.gmra.mxu0 %v2412
        %v2736 = vpop.f32.mrf.mxu0
        %v2737 = vadd.f32 %v2447, %v2736
        %2738 = vmatmul.f32.gmra.mxu0 %v2413
        %v2739 = vpop.f32.mrf.mxu0
        %v2740 = vadd.f32 %v2452, %v2739
        %2741 = vmatmul.f32.gmra.mxu0 %v2414
        %v2742 = vpop.f32.mrf.mxu0
        %v2743 = vadd.f32 %v2457, %v2742
        %2744 = vmatmul.f32.gmra.mxu0 %v2415
        %v2745 = vpop.f32.mrf.mxu0
        %v2746 = vadd.f32 %v2462, %v2745
        %2747 = vmatmul.f32.gmra.mxu0 %v2416
        %v2748 = vpop.f32.mrf.mxu0
        %v2749 = vadd.f32 %v2467, %v2748
        %2750 = vmatmul.f32.gmra.mxu0 %v2417
        %v2751 = vpop.f32.mrf.mxu0
        %v2752 = vadd.f32 %v2472, %v2751
        %2753 = vmatmul.f32.gmra.mxu0 %v2418
        %v2754 = vpop.f32.mrf.mxu0
        %v2755 = vadd.f32 %v2477, %v2754
        %2756 = vmatmul.f32.gmra.mxu0 %v2419
        %v2757 = vpop.f32.mrf.mxu0
        %v2758 = vadd.f32 %v2482, %v2757
        %2759 = vmatmul.f32.gmra.mxu0 %v2420
        %v2760 = vpop.f32.mrf.mxu0
        %v2761 = vadd.f32 %v2487, %v2760
        %2762 = vmatmul.f32.gmra.mxu0 %v2421
        %v2763 = vpop.f32.mrf.mxu0
        %v2764 = vadd.f32 %v2492, %v2763
        %2765 = vmatmul.f32.gmra.mxu0 %v2422
        %v2766 = vpop.f32.mrf.mxu0
        %v2767 = vadd.f32 %v2497, %v2766
        %2768 = vmatmul.f32.gmra.mxu0 %v2423
        %v2769 = vpop.f32.mrf.mxu0
        %v2770 = vadd.f32 %v2502, %v2769
        %2771 = vmatmul.f32.gmra.mxu0 %v2424
        %v2772 = vpop.f32.mrf.mxu0
        %v2773 = vadd.f32 %v2507, %v2772
        %2774 = vmatmul.f32.gmra.mxu0 %v2425
        %v2775 = vpop.f32.mrf.mxu0
        %v2776 = vadd.f32 %v2512, %v2775
        %2777 = vmatmul.f32.gmra.mxu0 %v2426
        %v2778 = vpop.f32.mrf.mxu0
        %v2779 = vadd.f32 %v2517, %v2778
        %2780 = vmatmul.f32.gmra.mxu0 %v2427
        %v2781 = vpop.f32.mrf.mxu0
        %v2782 = vadd.f32 %v2522, %v2781
        %2783 = vdwg.mxu0
        %2784 = vmatpush.msra.mxu0 %v2404
        %2785 = vmatpush.msra.mxu0 %v2392
        %2786 = vmatpush.msra.mxu0 %v2380
        %2787 = vmatpush.msra.mxu0 %v2368
        %2788 = vmatpush.msra.mxu0 %v2356
        %2789 = vmatpush.msra.mxu0 %v2344
        %2790 = vmatpush.msra.mxu0 %v2332
        %2791 = vmatpush.msra.mxu0 %v2320
        %2792 = vmatpush.msra.mxu0 %v2308
        %2793 = vmatpush.msra.mxu0 %v2296
        %2794 = vmatpush.msra.mxu0 %v2284
        %2795 = vmatpush.msra.mxu0 %v2272
        %2796 = vmatpush.msra.mxu0 %v2260
        %2797 = vmatpush.msra.mxu0 %v2248
        %2798 = vmatpush.msra.mxu0 %v2236
        %2799 = vmatpush.msra.mxu0 %v2224
        %2800 = vmatmul.f32.gmra.mxu0 %v2412
        %v2801 = vpop.f32.mrf.mxu0
        %v2802 = vadd.f32 %v2447, %v2801
        %2803 = vmatmul.f32.gmra.mxu0 %v2413
        %v2804 = vpop.f32.mrf.mxu0
        %v2805 = vadd.f32 %v2452, %v2804
        %2806 = vmatmul.f32.gmra.mxu0 %v2414
        %v2807 = vpop.f32.mrf.mxu0
        %v2808 = vadd.f32 %v2457, %v2807
        %2809 = vmatmul.f32.gmra.mxu0 %v2415
        %v2810 = vpop.f32.mrf.mxu0
        %v2811 = vadd.f32 %v2462, %v2810
        %2812 = vmatmul.f32.gmra.mxu0 %v2416
        %v2813 = vpop.f32.mrf.mxu0
        %v2814 = vadd.f32 %v2467, %v2813
        %2815 = vmatmul.f32.gmra.mxu0 %v2417
        %v2816 = vpop.f32.mrf.mxu0
        %v2817 = vadd.f32 %v2472, %v2816
        %2818 = vmatmul.f32.gmra.mxu0 %v2418
        %v2819 = vpop.f32.mrf.mxu0
        %v2820 = vadd.f32 %v2477, %v2819
        %2821 = vmatmul.f32.gmra.mxu0 %v2419
        %v2822 = vpop.f32.mrf.mxu0
        %v2823 = vadd.f32 %v2482, %v2822
        %2824 = vmatmul.f32.gmra.mxu0 %v2420
        %v2825 = vpop.f32.mrf.mxu0
        %v2826 = vadd.f32 %v2487, %v2825
        %2827 = vmatmul.f32.gmra.mxu0 %v2421
        %v2828 = vpop.f32.mrf.mxu0
        %v2829 = vadd.f32 %v2492, %v2828
        %2830 = vmatmul.f32.gmra.mxu0 %v2422
        %v2831 = vpop.f32.mrf.mxu0
        %v2832 = vadd.f32 %v2497, %v2831
        %2833 = vmatmul.f32.gmra.mxu0 %v2423
        %v2834 = vpop.f32.mrf.mxu0
        %v2835 = vadd.f32 %v2502, %v2834
        %2836 = vmatmul.f32.gmra.mxu0 %v2424
        %v2837 = vpop.f32.mrf.mxu0
        %v2838 = vadd.f32 %v2507, %v2837
        %2839 = vmatmul.f32.gmra.mxu0 %v2425
        %v2840 = vpop.f32.mrf.mxu0
        %v2841 = vadd.f32 %v2512, %v2840
        %2842 = vmatmul.f32.gmra.mxu0 %v2426
        %v2843 = vpop.f32.mrf.mxu0
        %v2844 = vadd.f32 %v2517, %v2843
        %2845 = vmatmul.f32.gmra.mxu0 %v2427
        %v2846 = vpop.f32.mrf.mxu0
        %v2847 = vadd.f32 %v2522, %v2846
        %2848 = vdwg.mxu0
        %2849 = vmatpush.msra.mxu0 %v2405
        %2850 = vmatpush.msra.mxu0 %v2393
        %2851 = vmatpush.msra.mxu0 %v2381
        %2852 = vmatpush.msra.mxu0 %v2369
        %2853 = vmatpush.msra.mxu0 %v2357
        %2854 = vmatpush.msra.mxu0 %v2345
        %2855 = vmatpush.msra.mxu0 %v2333
        %2856 = vmatpush.msra.mxu0 %v2321
        %2857 = vmatpush.msra.mxu0 %v2309
        %2858 = vmatpush.msra.mxu0 %v2297
        %2859 = vmatpush.msra.mxu0 %v2285
        %2860 = vmatpush.msra.mxu0 %v2273
        %2861 = vmatpush.msra.mxu0 %v2261
        %2862 = vmatpush.msra.mxu0 %v2249
        %2863 = vmatpush.msra.mxu0 %v2237
        %2864 = vmatpush.msra.mxu0 %v2225
        %2865 = vmatmul.f32.gmra.mxu0 %v2412
        %v2866 = vpop.f32.mrf.mxu0
        %v2867 = vadd.f32 %v2447, %v2866
        %2868 = vmatmul.f32.gmra.mxu0 %v2413
        %v2869 = vpop.f32.mrf.mxu0
        %v2870 = vadd.f32 %v2452, %v2869
        %2871 = vmatmul.f32.gmra.mxu0 %v2414
        %v2872 = vpop.f32.mrf.mxu0
        %v2873 = vadd.f32 %v2457, %v2872
        %2874 = vmatmul.f32.gmra.mxu0 %v2415
        %v2875 = vpop.f32.mrf.mxu0
        %v2876 = vadd.f32 %v2462, %v2875
        %2877 = vmatmul.f32.gmra.mxu0 %v2416
        %v2878 = vpop.f32.mrf.mxu0
        %v2879 = vadd.f32 %v2467, %v2878
        %2880 = vmatmul.f32.gmra.mxu0 %v2417
        %v2881 = vpop.f32.mrf.mxu0
        %v2882 = vadd.f32 %v2472, %v2881
        %2883 = vmatmul.f32.gmra.mxu0 %v2418
        %v2884 = vpop.f32.mrf.mxu0
        %v2885 = vadd.f32 %v2477, %v2884
        %2886 = vmatmul.f32.gmra.mxu0 %v2419
        %v2887 = vpop.f32.mrf.mxu0
        %v2888 = vadd.f32 %v2482, %v2887
        %2889 = vmatmul.f32.gmra.mxu0 %v2420
        %v2890 = vpop.f32.mrf.mxu0
        %v2891 = vadd.f32 %v2487, %v2890
        %2892 = vmatmul.f32.gmra.mxu0 %v2421
        %v2893 = vpop.f32.mrf.mxu0
        %v2894 = vadd.f32 %v2492, %v2893
        %2895 = vmatmul.f32.gmra.mxu0 %v2422
        %v2896 = vpop.f32.mrf.mxu0
        %v2897 = vadd.f32 %v2497, %v2896
        %2898 = vmatmul.f32.gmra.mxu0 %v2423
        %v2899 = vpop.f32.mrf.mxu0
        %v2900 = vadd.f32 %v2502, %v2899
        %2901 = vmatmul.f32.gmra.mxu0 %v2424
        %v2902 = vpop.f32.mrf.mxu0
        %v2903 = vadd.f32 %v2507, %v2902
        %2904 = vmatmul.f32.gmra.mxu0 %v2425
        %v2905 = vpop.f32.mrf.mxu0
        %v2906 = vadd.f32 %v2512, %v2905
        %2907 = vmatmul.f32.gmra.mxu0 %v2426
        %v2908 = vpop.f32.mrf.mxu0
        %v2909 = vadd.f32 %v2517, %v2908
        %2910 = vmatmul.f32.gmra.mxu0 %v2427
        %v2911 = vpop.f32.mrf.mxu0
        %v2912 = vadd.f32 %v2522, %v2911
        %2913 = vdwg.mxu0
        %2914 = vmatpush.msra.mxu0 %v2406
        %2915 = vmatpush.msra.mxu0 %v2394
        %2916 = vmatpush.msra.mxu0 %v2382
        %2917 = vmatpush.msra.mxu0 %v2370
        %2918 = vmatpush.msra.mxu0 %v2358
        %2919 = vmatpush.msra.mxu0 %v2346
        %2920 = vmatpush.msra.mxu0 %v2334
        %2921 = vmatpush.msra.mxu0 %v2322
        %2922 = vmatpush.msra.mxu0 %v2310
        %2923 = vmatpush.msra.mxu0 %v2298
        %2924 = vmatpush.msra.mxu0 %v2286
        %2925 = vmatpush.msra.mxu0 %v2274
        %2926 = vmatpush.msra.mxu0 %v2262
        %2927 = vmatpush.msra.mxu0 %v2250
        %2928 = vmatpush.msra.mxu0 %v2238
        %2929 = vmatpush.msra.mxu0 %v2226
        %2930 = vmatmul.f32.gmra.mxu0 %v2412
        %v2931 = vpop.f32.mrf.mxu0
        %v2932 = vadd.f32 %v2447, %v2931
        %2933 = vmatmul.f32.gmra.mxu0 %v2413
        %v2934 = vpop.f32.mrf.mxu0
        %v2935 = vadd.f32 %v2452, %v2934
        %2936 = vmatmul.f32.gmra.mxu0 %v2414
        %v2937 = vpop.f32.mrf.mxu0
        %v2938 = vadd.f32 %v2457, %v2937
        %2939 = vmatmul.f32.gmra.mxu0 %v2415
        %v2940 = vpop.f32.mrf.mxu0
        %v2941 = vadd.f32 %v2462, %v2940
        %2942 = vmatmul.f32.gmra.mxu0 %v2416
        %v2943 = vpop.f32.mrf.mxu0
        %v2944 = vadd.f32 %v2467, %v2943
        %2945 = vmatmul.f32.gmra.mxu0 %v2417
        %v2946 = vpop.f32.mrf.mxu0
        %v2947 = vadd.f32 %v2472, %v2946
        %2948 = vmatmul.f32.gmra.mxu0 %v2418
        %v2949 = vpop.f32.mrf.mxu0
        %v2950 = vadd.f32 %v2477, %v2949
        %2951 = vmatmul.f32.gmra.mxu0 %v2419
        %v2952 = vpop.f32.mrf.mxu0
        %v2953 = vadd.f32 %v2482, %v2952
        %2954 = vmatmul.f32.gmra.mxu0 %v2420
        %v2955 = vpop.f32.mrf.mxu0
        %v2956 = vadd.f32 %v2487, %v2955
        %2957 = vmatmul.f32.gmra.mxu0 %v2421
        %v2958 = vpop.f32.mrf.mxu0
        %v2959 = vadd.f32 %v2492, %v2958
        %2960 = vmatmul.f32.gmra.mxu0 %v2422
        %v2961 = vpop.f32.mrf.mxu0
        %v2962 = vadd.f32 %v2497, %v2961
        %2963 = vmatmul.f32.gmra.mxu0 %v2423
        %v2964 = vpop.f32.mrf.mxu0
        %v2965 = vadd.f32 %v2502, %v2964
        %2966 = vmatmul.f32.gmra.mxu0 %v2424
        %v2967 = vpop.f32.mrf.mxu0
        %v2968 = vadd.f32 %v2507, %v2967
        %2969 = vmatmul.f32.gmra.mxu0 %v2425
        %v2970 = vpop.f32.mrf.mxu0
        %v2971 = vadd.f32 %v2512, %v2970
        %2972 = vmatmul.f32.gmra.mxu0 %v2426
        %v2973 = vpop.f32.mrf.mxu0
        %v2974 = vadd.f32 %v2517, %v2973
        %2975 = vmatmul.f32.gmra.mxu0 %v2427
        %v2976 = vpop.f32.mrf.mxu0
        %v2977 = vadd.f32 %v2522, %v2976
        %2978 = vdwg.mxu0
        %2979 = vmatpush.msra.mxu0 %v2407
        %2980 = vmatpush.msra.mxu0 %v2395
        %2981 = vmatpush.msra.mxu0 %v2383
        %2982 = vmatpush.msra.mxu0 %v2371
        %2983 = vmatpush.msra.mxu0 %v2359
        %2984 = vmatpush.msra.mxu0 %v2347
        %2985 = vmatpush.msra.mxu0 %v2335
        %2986 = vmatpush.msra.mxu0 %v2323
        %2987 = vmatpush.msra.mxu0 %v2311
        %2988 = vmatpush.msra.mxu0 %v2299
        %2989 = vmatpush.msra.mxu0 %v2287
        %2990 = vmatpush.msra.mxu0 %v2275
        %2991 = vmatpush.msra.mxu0 %v2263
        %2992 = vmatpush.msra.mxu0 %v2251
        %2993 = vmatpush.msra.mxu0 %v2239
        %2994 = vmatpush.msra.mxu0 %v2227
        %2995 = vmatmul.f32.gmra.mxu0 %v2412
        %v2996 = vpop.f32.mrf.mxu0
        %v2997 = vadd.f32 %v2447, %v2996
        %2998 = vmatmul.f32.gmra.mxu0 %v2413
        %v2999 = vpop.f32.mrf.mxu0
        %v3000 = vadd.f32 %v2452, %v2999
        %3001 = vmatmul.f32.gmra.mxu0 %v2414
        %v3002 = vpop.f32.mrf.mxu0
        %v3003 = vadd.f32 %v2457, %v3002
        %3004 = vmatmul.f32.gmra.mxu0 %v2415
        %v3005 = vpop.f32.mrf.mxu0
        %v3006 = vadd.f32 %v2462, %v3005
        %3007 = vmatmul.f32.gmra.mxu0 %v2416
        %v3008 = vpop.f32.mrf.mxu0
        %v3009 = vadd.f32 %v2467, %v3008
        %3010 = vmatmul.f32.gmra.mxu0 %v2417
        %v3011 = vpop.f32.mrf.mxu0
        %v3012 = vadd.f32 %v2472, %v3011
        %3013 = vmatmul.f32.gmra.mxu0 %v2418
        %v3014 = vpop.f32.mrf.mxu0
        %v3015 = vadd.f32 %v2477, %v3014
        %3016 = vmatmul.f32.gmra.mxu0 %v2419
        %v3017 = vpop.f32.mrf.mxu0
        %v3018 = vadd.f32 %v2482, %v3017
        %3019 = vmatmul.f32.gmra.mxu0 %v2420
        %v3020 = vpop.f32.mrf.mxu0
        %v3021 = vadd.f32 %v2487, %v3020
        %3022 = vmatmul.f32.gmra.mxu0 %v2421
        %v3023 = vpop.f32.mrf.mxu0
        %v3024 = vadd.f32 %v2492, %v3023
        %3025 = vmatmul.f32.gmra.mxu0 %v2422
        %v3026 = vpop.f32.mrf.mxu0
        %v3027 = vadd.f32 %v2497, %v3026
        %3028 = vmatmul.f32.gmra.mxu0 %v2423
        %v3029 = vpop.f32.mrf.mxu0
        %v3030 = vadd.f32 %v2502, %v3029
        %3031 = vmatmul.f32.gmra.mxu0 %v2424
        %v3032 = vpop.f32.mrf.mxu0
        %v3033 = vadd.f32 %v2507, %v3032
        %3034 = vmatmul.f32.gmra.mxu0 %v2425
        %v3035 = vpop.f32.mrf.mxu0
        %v3036 = vadd.f32 %v2512, %v3035
        %3037 = vmatmul.f32.gmra.mxu0 %v2426
        %v3038 = vpop.f32.mrf.mxu0
        %v3039 = vadd.f32 %v2517, %v3038
        %3040 = vmatmul.f32.gmra.mxu0 %v2427
        %v3041 = vpop.f32.mrf.mxu0
        %v3042 = vadd.f32 %v2522, %v3041
        %3043 = vdwg.mxu0
        %3044 = vmatpush.msra.mxu0 %v2408
        %3045 = vmatpush.msra.mxu0 %v2396
        %3046 = vmatpush.msra.mxu0 %v2384
        %3047 = vmatpush.msra.mxu0 %v2372
        %3048 = vmatpush.msra.mxu0 %v2360
        %3049 = vmatpush.msra.mxu0 %v2348
        %3050 = vmatpush.msra.mxu0 %v2336
        %3051 = vmatpush.msra.mxu0 %v2324
        %3052 = vmatpush.msra.mxu0 %v2312
        %3053 = vmatpush.msra.mxu0 %v2300
        %3054 = vmatpush.msra.mxu0 %v2288
        %3055 = vmatpush.msra.mxu0 %v2276
        %3056 = vmatpush.msra.mxu0 %v2264
        %3057 = vmatpush.msra.mxu0 %v2252
        %3058 = vmatpush.msra.mxu0 %v2240
        %3059 = vmatpush.msra.mxu0 %v2228
        %3060 = vmatmul.f32.gmra.mxu0 %v2412
        %v3061 = vpop.f32.mrf.mxu0
        %v3062 = vadd.f32 %v2447, %v3061
        %3063 = vmatmul.f32.gmra.mxu0 %v2413
        %v3064 = vpop.f32.mrf.mxu0
        %v3065 = vadd.f32 %v2452, %v3064
        %3066 = vmatmul.f32.gmra.mxu0 %v2414
        %v3067 = vpop.f32.mrf.mxu0
        %v3068 = vadd.f32 %v2457, %v3067
        %3069 = vmatmul.f32.gmra.mxu0 %v2415
        %v3070 = vpop.f32.mrf.mxu0
        %v3071 = vadd.f32 %v2462, %v3070
        %3072 = vmatmul.f32.gmra.mxu0 %v2416
        %v3073 = vpop.f32.mrf.mxu0
        %v3074 = vadd.f32 %v2467, %v3073
        %3075 = vmatmul.f32.gmra.mxu0 %v2417
        %v3076 = vpop.f32.mrf.mxu0
        %v3077 = vadd.f32 %v2472, %v3076
        %3078 = vmatmul.f32.gmra.mxu0 %v2418
        %v3079 = vpop.f32.mrf.mxu0
        %v3080 = vadd.f32 %v2477, %v3079
        %3081 = vmatmul.f32.gmra.mxu0 %v2419
        %v3082 = vpop.f32.mrf.mxu0
        %v3083 = vadd.f32 %v2482, %v3082
        %3084 = vmatmul.f32.gmra.mxu0 %v2420
        %v3085 = vpop.f32.mrf.mxu0
        %v3086 = vadd.f32 %v2487, %v3085
        %3087 = vmatmul.f32.gmra.mxu0 %v2421
        %v3088 = vpop.f32.mrf.mxu0
        %v3089 = vadd.f32 %v2492, %v3088
        %3090 = vmatmul.f32.gmra.mxu0 %v2422
        %v3091 = vpop.f32.mrf.mxu0
        %v3092 = vadd.f32 %v2497, %v3091
        %3093 = vmatmul.f32.gmra.mxu0 %v2423
        %v3094 = vpop.f32.mrf.mxu0
        %v3095 = vadd.f32 %v2502, %v3094
        %3096 = vmatmul.f32.gmra.mxu0 %v2424
        %v3097 = vpop.f32.mrf.mxu0
        %v3098 = vadd.f32 %v2507, %v3097
        %3099 = vmatmul.f32.gmra.mxu0 %v2425
        %v3100 = vpop.f32.mrf.mxu0
        %v3101 = vadd.f32 %v2512, %v3100
        %3102 = vmatmul.f32.gmra.mxu0 %v2426
        %v3103 = vpop.f32.mrf.mxu0
        %v3104 = vadd.f32 %v2517, %v3103
        %3105 = vmatmul.f32.gmra.mxu0 %v2427
        %v3106 = vpop.f32.mrf.mxu0
        %v3107 = vadd.f32 %v2522, %v3106
        %3108 = vdwg.mxu0
        %3109 = vmatpush.msra.mxu0 %v2409
        %3110 = vmatpush.msra.mxu0 %v2397
        %3111 = vmatpush.msra.mxu0 %v2385
        %3112 = vmatpush.msra.mxu0 %v2373
        %3113 = vmatpush.msra.mxu0 %v2361
        %3114 = vmatpush.msra.mxu0 %v2349
        %3115 = vmatpush.msra.mxu0 %v2337
        %3116 = vmatpush.msra.mxu0 %v2325
        %3117 = vmatpush.msra.mxu0 %v2313
        %3118 = vmatpush.msra.mxu0 %v2301
        %3119 = vmatpush.msra.mxu0 %v2289
        %3120 = vmatpush.msra.mxu0 %v2277
        %3121 = vmatpush.msra.mxu0 %v2265
        %3122 = vmatpush.msra.mxu0 %v2253
        %3123 = vmatpush.msra.mxu0 %v2241
        %3124 = vmatpush.msra.mxu0 %v2229
        %3125 = vmatmul.f32.gmra.mxu0 %v2412
        %v3126 = vpop.f32.mrf.mxu0
        %v3127 = vadd.f32 %v2447, %v3126
        %3128 = vmatmul.f32.gmra.mxu0 %v2413
        %v3129 = vpop.f32.mrf.mxu0
        %v3130 = vadd.f32 %v2452, %v3129
        %3131 = vmatmul.f32.gmra.mxu0 %v2414
        %v3132 = vpop.f32.mrf.mxu0
        %v3133 = vadd.f32 %v2457, %v3132
        %3134 = vmatmul.f32.gmra.mxu0 %v2415
        %v3135 = vpop.f32.mrf.mxu0
        %v3136 = vadd.f32 %v2462, %v3135
        %3137 = vmatmul.f32.gmra.mxu0 %v2416
        %v3138 = vpop.f32.mrf.mxu0
        %v3139 = vadd.f32 %v2467, %v3138
        %3140 = vmatmul.f32.gmra.mxu0 %v2417
        %v3141 = vpop.f32.mrf.mxu0
        %v3142 = vadd.f32 %v2472, %v3141
        %3143 = vmatmul.f32.gmra.mxu0 %v2418
        %v3144 = vpop.f32.mrf.mxu0
        %v3145 = vadd.f32 %v2477, %v3144
        %3146 = vmatmul.f32.gmra.mxu0 %v2419
        %v3147 = vpop.f32.mrf.mxu0
        %v3148 = vadd.f32 %v2482, %v3147
        %3149 = vmatmul.f32.gmra.mxu0 %v2420
        %v3150 = vpop.f32.mrf.mxu0
        %v3151 = vadd.f32 %v2487, %v3150
        %3152 = vmatmul.f32.gmra.mxu0 %v2421
        %v3153 = vpop.f32.mrf.mxu0
        %v3154 = vadd.f32 %v2492, %v3153
        %3155 = vmatmul.f32.gmra.mxu0 %v2422
        %v3156 = vpop.f32.mrf.mxu0
        %v3157 = vadd.f32 %v2497, %v3156
        %3158 = vmatmul.f32.gmra.mxu0 %v2423
        %v3159 = vpop.f32.mrf.mxu0
        %v3160 = vadd.f32 %v2502, %v3159
        %3161 = vmatmul.f32.gmra.mxu0 %v2424
        %v3162 = vpop.f32.mrf.mxu0
        %v3163 = vadd.f32 %v2507, %v3162
        %3164 = vmatmul.f32.gmra.mxu0 %v2425
        %v3165 = vpop.f32.mrf.mxu0
        %v3166 = vadd.f32 %v2512, %v3165
        %3167 = vmatmul.f32.gmra.mxu0 %v2426
        %v3168 = vpop.f32.mrf.mxu0
        %v3169 = vadd.f32 %v2517, %v3168
        %3170 = vmatmul.f32.gmra.mxu0 %v2427
        %v3171 = vpop.f32.mrf.mxu0
        %v3172 = vadd.f32 %v2522, %v3171
        %3173 = vdwg.mxu0
        %3174 = vmatpush.msra.mxu0 %v2410
        %3175 = vmatpush.msra.mxu0 %v2398
        %3176 = vmatpush.msra.mxu0 %v2386
        %3177 = vmatpush.msra.mxu0 %v2374
        %3178 = vmatpush.msra.mxu0 %v2362
        %3179 = vmatpush.msra.mxu0 %v2350
        %3180 = vmatpush.msra.mxu0 %v2338
        %3181 = vmatpush.msra.mxu0 %v2326
        %3182 = vmatpush.msra.mxu0 %v2314
        %3183 = vmatpush.msra.mxu0 %v2302
        %3184 = vmatpush.msra.mxu0 %v2290
        %3185 = vmatpush.msra.mxu0 %v2278
        %3186 = vmatpush.msra.mxu0 %v2266
        %3187 = vmatpush.msra.mxu0 %v2254
        %3188 = vmatpush.msra.mxu0 %v2242
        %3189 = vmatpush.msra.mxu0 %v2230
        %3190 = vmatmul.f32.gmra.mxu0 %v2412
        %v3191 = vpop.f32.mrf.mxu0
        %v3192 = vadd.f32 %v2447, %v3191
        %3193 = vmatmul.f32.gmra.mxu0 %v2413
        %v3194 = vpop.f32.mrf.mxu0
        %v3195 = vadd.f32 %v2452, %v3194
        %3196 = vmatmul.f32.gmra.mxu0 %v2414
        %v3197 = vpop.f32.mrf.mxu0
        %v3198 = vadd.f32 %v2457, %v3197
        %3199 = vmatmul.f32.gmra.mxu0 %v2415
        %v3200 = vpop.f32.mrf.mxu0
        %v3201 = vadd.f32 %v2462, %v3200
        %3202 = vmatmul.f32.gmra.mxu0 %v2416
        %v3203 = vpop.f32.mrf.mxu0
        %v3204 = vadd.f32 %v2467, %v3203
        %3205 = vmatmul.f32.gmra.mxu0 %v2417
        %v3206 = vpop.f32.mrf.mxu0
        %v3207 = vadd.f32 %v2472, %v3206
        %3208 = vmatmul.f32.gmra.mxu0 %v2418
        %v3209 = vpop.f32.mrf.mxu0
        %v3210 = vadd.f32 %v2477, %v3209
        %3211 = vmatmul.f32.gmra.mxu0 %v2419
        %v3212 = vpop.f32.mrf.mxu0
        %v3213 = vadd.f32 %v2482, %v3212
        %3214 = vmatmul.f32.gmra.mxu0 %v2420
        %v3215 = vpop.f32.mrf.mxu0
        %v3216 = vadd.f32 %v2487, %v3215
        %3217 = vmatmul.f32.gmra.mxu0 %v2421
        %v3218 = vpop.f32.mrf.mxu0
        %v3219 = vadd.f32 %v2492, %v3218
        %3220 = vmatmul.f32.gmra.mxu0 %v2422
        %v3221 = vpop.f32.mrf.mxu0
        %v3222 = vadd.f32 %v2497, %v3221
        %3223 = vmatmul.f32.gmra.mxu0 %v2423
        %v3224 = vpop.f32.mrf.mxu0
        %v3225 = vadd.f32 %v2502, %v3224
        %3226 = vmatmul.f32.gmra.mxu0 %v2424
        %v3227 = vpop.f32.mrf.mxu0
        %v3228 = vadd.f32 %v2507, %v3227
        %3229 = vmatmul.f32.gmra.mxu0 %v2425
        %v3230 = vpop.f32.mrf.mxu0
        %v3231 = vadd.f32 %v2512, %v3230
        %3232 = vmatmul.f32.gmra.mxu0 %v2426
        %v3233 = vpop.f32.mrf.mxu0
        %v3234 = vadd.f32 %v2517, %v3233
        %3235 = vmatmul.f32.gmra.mxu0 %v2427
        %v3236 = vpop.f32.mrf.mxu0
        %v3237 = vadd.f32 %v2522, %v3236
        %3238 = vdwg.mxu0
        %3239 = vmatpush.msra.mxu0 %v2411
        %3240 = vmatpush.msra.mxu0 %v2399
        %3241 = vmatpush.msra.mxu0 %v2387
        %3242 = vmatpush.msra.mxu0 %v2375
        %3243 = vmatpush.msra.mxu0 %v2363
        %3244 = vmatpush.msra.mxu0 %v2351
        %3245 = vmatpush.msra.mxu0 %v2339
        %3246 = vmatpush.msra.mxu0 %v2327
        %3247 = vmatpush.msra.mxu0 %v2315
        %3248 = vmatpush.msra.mxu0 %v2303
        %3249 = vmatpush.msra.mxu0 %v2291
        %3250 = vmatpush.msra.mxu0 %v2279
        %3251 = vmatpush.msra.mxu0 %v2267
        %3252 = vmatpush.msra.mxu0 %v2255
        %3253 = vmatpush.msra.mxu0 %v2243
        %3254 = vmatpush.msra.mxu0 %v2231
        %3255 = vmatmul.f32.gmra.mxu0 %v2412
        %v3256 = vpop.f32.mrf.mxu0
        %v3257 = vadd.f32 %v2447, %v3256
        %3258 = vmatmul.f32.gmra.mxu0 %v2413
        %v3259 = vpop.f32.mrf.mxu0
        %v3260 = vadd.f32 %v2452, %v3259
        %3261 = vmatmul.f32.gmra.mxu0 %v2414
        %v3262 = vpop.f32.mrf.mxu0
        %v3263 = vadd.f32 %v2457, %v3262
        %3264 = vmatmul.f32.gmra.mxu0 %v2415
        %v3265 = vpop.f32.mrf.mxu0
        %v3266 = vadd.f32 %v2462, %v3265
        %3267 = vmatmul.f32.gmra.mxu0 %v2416
        %v3268 = vpop.f32.mrf.mxu0
        %v3269 = vadd.f32 %v2467, %v3268
        %3270 = vmatmul.f32.gmra.mxu0 %v2417
        %v3271 = vpop.f32.mrf.mxu0
        %v3272 = vadd.f32 %v2472, %v3271
        %3273 = vmatmul.f32.gmra.mxu0 %v2418
        %v3274 = vpop.f32.mrf.mxu0
        %v3275 = vadd.f32 %v2477, %v3274
        %3276 = vmatmul.f32.gmra.mxu0 %v2419
        %v3277 = vpop.f32.mrf.mxu0
        %v3278 = vadd.f32 %v2482, %v3277
        %3279 = vmatmul.f32.gmra.mxu0 %v2420
        %v3280 = vpop.f32.mrf.mxu0
        %v3281 = vadd.f32 %v2487, %v3280
        %3282 = vmatmul.f32.gmra.mxu0 %v2421
        %v3283 = vpop.f32.mrf.mxu0
        %v3284 = vadd.f32 %v2492, %v3283
        %3285 = vmatmul.f32.gmra.mxu0 %v2422
        %v3286 = vpop.f32.mrf.mxu0
        %v3287 = vadd.f32 %v2497, %v3286
        %3288 = vmatmul.f32.gmra.mxu0 %v2423
        %v3289 = vpop.f32.mrf.mxu0
        %v3290 = vadd.f32 %v2502, %v3289
        %3291 = vmatmul.f32.gmra.mxu0 %v2424
        %v3292 = vpop.f32.mrf.mxu0
        %v3293 = vadd.f32 %v2507, %v3292
        %3294 = vmatmul.f32.gmra.mxu0 %v2425
        %v3295 = vpop.f32.mrf.mxu0
        %v3296 = vadd.f32 %v2512, %v3295
        %3297 = vmatmul.f32.gmra.mxu0 %v2426
        %v3298 = vpop.f32.mrf.mxu0
        %v3299 = vadd.f32 %v2517, %v3298
        %3300 = vmatmul.f32.gmra.mxu0 %v2427
        %v3301 = vpop.f32.mrf.mxu0
        %v3302 = vadd.f32 %v2522, %v3301
        %3303 = vdwg.mxu0
        %vm3304 = vcmp.gt.f32.partialorder %v2542, 0.0
        %vm3305 = vcmp.gt.f32.partialorder %v2607, 0.0
        %vm3306 = vcmp.gt.f32.partialorder %v2672, 0.0
        %vm3307 = vcmp.gt.f32.partialorder %v2737, 0.0
        %vm3308 = vcmp.gt.f32.partialorder %v2802, 0.0
        %vm3309 = vcmp.gt.f32.partialorder %v2867, 0.0
        %vm3310 = vcmp.gt.f32.partialorder %v2932, 0.0
        %vm3311 = vcmp.gt.f32.partialorder %v2997, 0.0
        %vm3312 = vcmp.gt.f32.partialorder %v3062, 0.0
        %vm3313 = vcmp.gt.f32.partialorder %v3127, 0.0
        %vm3314 = vcmp.gt.f32.partialorder %v3192, 0.0
        %vm3315 = vcmp.gt.f32.partialorder %v3257, 0.0
        %vm3316 = vcmp.gt.f32.partialorder %v2545, 0.0
        %vm3317 = vcmp.gt.f32.partialorder %v2610, 0.0
        %vm3318 = vcmp.gt.f32.partialorder %v2675, 0.0
        %vm3319 = vcmp.gt.f32.partialorder %v2740, 0.0
        %vm3320 = vcmp.gt.f32.partialorder %v2805, 0.0
        %vm3321 = vcmp.gt.f32.partialorder %v2870, 0.0
        %vm3322 = vcmp.gt.f32.partialorder %v2935, 0.0
        %vm3323 = vcmp.gt.f32.partialorder %v3000, 0.0
        %vm3324 = vcmp.gt.f32.partialorder %v3065, 0.0
        %vm3325 = vcmp.gt.f32.partialorder %v3130, 0.0
        %vm3326 = vcmp.gt.f32.partialorder %v3195, 0.0
        %vm3327 = vcmp.gt.f32.partialorder %v3260, 0.0
        %vm3328 = vcmp.gt.f32.partialorder %v2548, 0.0
        %vm3329 = vcmp.gt.f32.partialorder %v2613, 0.0
        %vm3330 = vcmp.gt.f32.partialorder %v2678, 0.0
        %vm3331 = vcmp.gt.f32.partialorder %v2743, 0.0
        %vm3332 = vcmp.gt.f32.partialorder %v2808, 0.0
        %vm3333 = vcmp.gt.f32.partialorder %v2873, 0.0
        %vm3334 = vcmp.gt.f32.partialorder %v2938, 0.0
        %vm3335 = vcmp.gt.f32.partialorder %v3003, 0.0
        %vm3336 = vcmp.gt.f32.partialorder %v3068, 0.0
        %vm3337 = vcmp.gt.f32.partialorder %v3133, 0.0
        %vm3338 = vcmp.gt.f32.partialorder %v3198, 0.0
        %vm3339 = vcmp.gt.f32.partialorder %v3263, 0.0
        %vm3340 = vcmp.gt.f32.partialorder %v2551, 0.0
        %vm3341 = vcmp.gt.f32.partialorder %v2616, 0.0
        %vm3342 = vcmp.gt.f32.partialorder %v2681, 0.0
        %vm3343 = vcmp.gt.f32.partialorder %v2746, 0.0
        %vm3344 = vcmp.gt.f32.partialorder %v2811, 0.0
        %vm3345 = vcmp.gt.f32.partialorder %v2876, 0.0
        %vm3346 = vcmp.gt.f32.partialorder %v2941, 0.0
        %vm3347 = vcmp.gt.f32.partialorder %v3006, 0.0
        %vm3348 = vcmp.gt.f32.partialorder %v3071, 0.0
        %vm3349 = vcmp.gt.f32.partialorder %v3136, 0.0
        %vm3350 = vcmp.gt.f32.partialorder %v3201, 0.0
        %vm3351 = vcmp.gt.f32.partialorder %v3266, 0.0
        %vm3352 = vcmp.gt.f32.partialorder %v2554, 0.0
        %vm3353 = vcmp.gt.f32.partialorder %v2619, 0.0
        %vm3354 = vcmp.gt.f32.partialorder %v2684, 0.0
        %vm3355 = vcmp.gt.f32.partialorder %v2749, 0.0
        %vm3356 = vcmp.gt.f32.partialorder %v2814, 0.0
        %vm3357 = vcmp.gt.f32.partialorder %v2879, 0.0
        %vm3358 = vcmp.gt.f32.partialorder %v2944, 0.0
        %vm3359 = vcmp.gt.f32.partialorder %v3009, 0.0
        %vm3360 = vcmp.gt.f32.partialorder %v3074, 0.0
        %vm3361 = vcmp.gt.f32.partialorder %v3139, 0.0
        %vm3362 = vcmp.gt.f32.partialorder %v3204, 0.0
        %vm3363 = vcmp.gt.f32.partialorder %v3269, 0.0
        %vm3364 = vcmp.gt.f32.partialorder %v2557, 0.0
        %vm3365 = vcmp.gt.f32.partialorder %v2622, 0.0
        %vm3366 = vcmp.gt.f32.partialorder %v2687, 0.0
        %vm3367 = vcmp.gt.f32.partialorder %v2752, 0.0
        %vm3368 = vcmp.gt.f32.partialorder %v2817, 0.0
        %vm3369 = vcmp.gt.f32.partialorder %v2882, 0.0
        %vm3370 = vcmp.gt.f32.partialorder %v2947, 0.0
        %vm3371 = vcmp.gt.f32.partialorder %v3012, 0.0
        %vm3372 = vcmp.gt.f32.partialorder %v3077, 0.0
        %vm3373 = vcmp.gt.f32.partialorder %v3142, 0.0
        %vm3374 = vcmp.gt.f32.partialorder %v3207, 0.0
        %vm3375 = vcmp.gt.f32.partialorder %v3272, 0.0
        %vm3376 = vcmp.gt.f32.partialorder %v2560, 0.0
        %vm3377 = vcmp.gt.f32.partialorder %v2625, 0.0
        %vm3378 = vcmp.gt.f32.partialorder %v2690, 0.0
        %vm3379 = vcmp.gt.f32.partialorder %v2755, 0.0
        %vm3380 = vcmp.gt.f32.partialorder %v2820, 0.0
        %vm3381 = vcmp.gt.f32.partialorder %v2885, 0.0
        %vm3382 = vcmp.gt.f32.partialorder %v2950, 0.0
        %vm3383 = vcmp.gt.f32.partialorder %v3015, 0.0
        %vm3384 = vcmp.gt.f32.partialorder %v3080, 0.0
        %vm3385 = vcmp.gt.f32.partialorder %v3145, 0.0
        %vm3386 = vcmp.gt.f32.partialorder %v3210, 0.0
        %vm3387 = vcmp.gt.f32.partialorder %v3275, 0.0
        %vm3388 = vcmp.gt.f32.partialorder %v2563, 0.0
        %vm3389 = vcmp.gt.f32.partialorder %v2628, 0.0
        %vm3390 = vcmp.gt.f32.partialorder %v2693, 0.0
        %vm3391 = vcmp.gt.f32.partialorder %v2758, 0.0
        %vm3392 = vcmp.gt.f32.partialorder %v2823, 0.0
        %vm3393 = vcmp.gt.f32.partialorder %v2888, 0.0
        %vm3394 = vcmp.gt.f32.partialorder %v2953, 0.0
        %vm3395 = vcmp.gt.f32.partialorder %v3018, 0.0
        %vm3396 = vcmp.gt.f32.partialorder %v3083, 0.0
        %vm3397 = vcmp.gt.f32.partialorder %v3148, 0.0
        %vm3398 = vcmp.gt.f32.partialorder %v3213, 0.0
        %vm3399 = vcmp.gt.f32.partialorder %v3278, 0.0
        %vm3400 = vcmp.gt.f32.partialorder %v2566, 0.0
        %vm3401 = vcmp.gt.f32.partialorder %v2631, 0.0
        %vm3402 = vcmp.gt.f32.partialorder %v2696, 0.0
        %vm3403 = vcmp.gt.f32.partialorder %v2761, 0.0
        %vm3404 = vcmp.gt.f32.partialorder %v2826, 0.0
        %vm3405 = vcmp.gt.f32.partialorder %v2891, 0.0
        %vm3406 = vcmp.gt.f32.partialorder %v2956, 0.0
        %vm3407 = vcmp.gt.f32.partialorder %v3021, 0.0
        %vm3408 = vcmp.gt.f32.partialorder %v3086, 0.0
        %vm3409 = vcmp.gt.f32.partialorder %v3151, 0.0
        %vm3410 = vcmp.gt.f32.partialorder %v3216, 0.0
        %vm3411 = vcmp.gt.f32.partialorder %v3281, 0.0
        %vm3412 = vcmp.gt.f32.partialorder %v2569, 0.0
        %vm3413 = vcmp.gt.f32.partialorder %v2634, 0.0
        %vm3414 = vcmp.gt.f32.partialorder %v2699, 0.0
        %vm3415 = vcmp.gt.f32.partialorder %v2764, 0.0
        %vm3416 = vcmp.gt.f32.partialorder %v2829, 0.0
        %vm3417 = vcmp.gt.f32.partialorder %v2894, 0.0
        %vm3418 = vcmp.gt.f32.partialorder %v2959, 0.0
        %vm3419 = vcmp.gt.f32.partialorder %v3024, 0.0
        %vm3420 = vcmp.gt.f32.partialorder %v3089, 0.0
        %vm3421 = vcmp.gt.f32.partialorder %v3154, 0.0
        %vm3422 = vcmp.gt.f32.partialorder %v3219, 0.0
        %vm3423 = vcmp.gt.f32.partialorder %v3284, 0.0
        %vm3424 = vcmp.gt.f32.partialorder %v2572, 0.0
        %vm3425 = vcmp.gt.f32.partialorder %v2637, 0.0
        %vm3426 = vcmp.gt.f32.partialorder %v2702, 0.0
        %vm3427 = vcmp.gt.f32.partialorder %v2767, 0.0
        %vm3428 = vcmp.gt.f32.partialorder %v2832, 0.0
        %vm3429 = vcmp.gt.f32.partialorder %v2897, 0.0
        %vm3430 = vcmp.gt.f32.partialorder %v2962, 0.0
        %vm3431 = vcmp.gt.f32.partialorder %v3027, 0.0
        %vm3432 = vcmp.gt.f32.partialorder %v3092, 0.0
        %vm3433 = vcmp.gt.f32.partialorder %v3157, 0.0
        %vm3434 = vcmp.gt.f32.partialorder %v3222, 0.0
        %vm3435 = vcmp.gt.f32.partialorder %v3287, 0.0
        %vm3436 = vcmp.gt.f32.partialorder %v2575, 0.0
        %vm3437 = vcmp.gt.f32.partialorder %v2640, 0.0
        %vm3438 = vcmp.gt.f32.partialorder %v2705, 0.0
        %vm3439 = vcmp.gt.f32.partialorder %v2770, 0.0
        %vm3440 = vcmp.gt.f32.partialorder %v2835, 0.0
        %vm3441 = vcmp.gt.f32.partialorder %v2900, 0.0
        %vm3442 = vcmp.gt.f32.partialorder %v2965, 0.0
        %vm3443 = vcmp.gt.f32.partialorder %v3030, 0.0
        %vm3444 = vcmp.gt.f32.partialorder %v3095, 0.0
        %vm3445 = vcmp.gt.f32.partialorder %v3160, 0.0
        %vm3446 = vcmp.gt.f32.partialorder %v3225, 0.0
        %vm3447 = vcmp.gt.f32.partialorder %v3290, 0.0
        %vm3448 = vcmp.gt.f32.partialorder %v2578, 0.0
        %vm3449 = vcmp.gt.f32.partialorder %v2643, 0.0
        %vm3450 = vcmp.gt.f32.partialorder %v2708, 0.0
        %vm3451 = vcmp.gt.f32.partialorder %v2773, 0.0
        %vm3452 = vcmp.gt.f32.partialorder %v2838, 0.0
        %vm3453 = vcmp.gt.f32.partialorder %v2903, 0.0
        %vm3454 = vcmp.gt.f32.partialorder %v2968, 0.0
        %vm3455 = vcmp.gt.f32.partialorder %v3033, 0.0
        %vm3456 = vcmp.gt.f32.partialorder %v3098, 0.0
        %vm3457 = vcmp.gt.f32.partialorder %v3163, 0.0
        %vm3458 = vcmp.gt.f32.partialorder %v3228, 0.0
        %vm3459 = vcmp.gt.f32.partialorder %v3293, 0.0
        %vm3460 = vcmp.gt.f32.partialorder %v2581, 0.0
        %vm3461 = vcmp.gt.f32.partialorder %v2646, 0.0
        %vm3462 = vcmp.gt.f32.partialorder %v2711, 0.0
        %vm3463 = vcmp.gt.f32.partialorder %v2776, 0.0
        %vm3464 = vcmp.gt.f32.partialorder %v2841, 0.0
        %vm3465 = vcmp.gt.f32.partialorder %v2906, 0.0
        %vm3466 = vcmp.gt.f32.partialorder %v2971, 0.0
        %vm3467 = vcmp.gt.f32.partialorder %v3036, 0.0
        %vm3468 = vcmp.gt.f32.partialorder %v3101, 0.0
        %vm3469 = vcmp.gt.f32.partialorder %v3166, 0.0
        %vm3470 = vcmp.gt.f32.partialorder %v3231, 0.0
        %vm3471 = vcmp.gt.f32.partialorder %v3296, 0.0
        %vm3472 = vcmp.gt.f32.partialorder %v2584, 0.0
        %vm3473 = vcmp.gt.f32.partialorder %v2649, 0.0
        %vm3474 = vcmp.gt.f32.partialorder %v2714, 0.0
        %vm3475 = vcmp.gt.f32.partialorder %v2779, 0.0
        %vm3476 = vcmp.gt.f32.partialorder %v2844, 0.0
        %vm3477 = vcmp.gt.f32.partialorder %v2909, 0.0
        %vm3478 = vcmp.gt.f32.partialorder %v2974, 0.0
        %vm3479 = vcmp.gt.f32.partialorder %v3039, 0.0
        %vm3480 = vcmp.gt.f32.partialorder %v3104, 0.0
        %vm3481 = vcmp.gt.f32.partialorder %v3169, 0.0
        %vm3482 = vcmp.gt.f32.partialorder %v3234, 0.0
        %vm3483 = vcmp.gt.f32.partialorder %v3299, 0.0
        %vm3484 = vcmp.gt.f32.partialorder %v2587, 0.0
        %vm3485 = vcmp.gt.f32.partialorder %v2652, 0.0
        %vm3486 = vcmp.gt.f32.partialorder %v2717, 0.0
        %vm3487 = vcmp.gt.f32.partialorder %v2782, 0.0
        %vm3488 = vcmp.gt.f32.partialorder %v2847, 0.0
        %vm3489 = vcmp.gt.f32.partialorder %v2912, 0.0
        %vm3490 = vcmp.gt.f32.partialorder %v2977, 0.0
        %vm3491 = vcmp.gt.f32.partialorder %v3042, 0.0
        %vm3492 = vcmp.gt.f32.partialorder %v3107, 0.0
        %vm3493 = vcmp.gt.f32.partialorder %v3172, 0.0
        %vm3494 = vcmp.gt.f32.partialorder %v3237, 0.0
        %vm3495 = vcmp.gt.f32.partialorder %v3302, 0.0
        %v3496 = vmin.f32 %v2542, 0.0
        %v3497 = vmin.f32 %v2607, 0.0
        %v3498 = vmin.f32 %v2672, 0.0
        %v3499 = vmin.f32 %v2737, 0.0
        %v3500 = vmin.f32 %v2802, 0.0
        %v3501 = vmin.f32 %v2867, 0.0
        %v3502 = vmin.f32 %v2932, 0.0
        %v3503 = vmin.f32 %v2997, 0.0
        %v3504 = vmin.f32 %v3062, 0.0
        %v3505 = vmin.f32 %v3127, 0.0
        %v3506 = vmin.f32 %v3192, 0.0
        %v3507 = vmin.f32 %v3257, 0.0
        %v3508 = vmin.f32 %v2545, 0.0
        %v3509 = vmin.f32 %v2610, 0.0
        %v3510 = vmin.f32 %v2675, 0.0
        %v3511 = vmin.f32 %v2740, 0.0
        %v3512 = vmin.f32 %v2805, 0.0
        %v3513 = vmin.f32 %v2870, 0.0
        %v3514 = vmin.f32 %v2935, 0.0
        %v3515 = vmin.f32 %v3000, 0.0
        %v3516 = vmin.f32 %v3065, 0.0
        %v3517 = vmin.f32 %v3130, 0.0
        %v3518 = vmin.f32 %v3195, 0.0
        %v3519 = vmin.f32 %v3260, 0.0
        %v3520 = vmin.f32 %v2548, 0.0
        %v3521 = vmin.f32 %v2613, 0.0
        %v3522 = vmin.f32 %v2678, 0.0
        %v3523 = vmin.f32 %v2743, 0.0
        %v3524 = vmin.f32 %v2808, 0.0
        %v3525 = vmin.f32 %v2873, 0.0
        %v3526 = vmin.f32 %v2938, 0.0
        %v3527 = vmin.f32 %v3003, 0.0
        %v3528 = vmin.f32 %v3068, 0.0
        %v3529 = vmin.f32 %v3133, 0.0
        %v3530 = vmin.f32 %v3198, 0.0
        %v3531 = vmin.f32 %v3263, 0.0
        %v3532 = vmin.f32 %v2551, 0.0
        %v3533 = vmin.f32 %v2616, 0.0
        %v3534 = vmin.f32 %v2681, 0.0
        %v3535 = vmin.f32 %v2746, 0.0
        %v3536 = vmin.f32 %v2811, 0.0
        %v3537 = vmin.f32 %v2876, 0.0
        %v3538 = vmin.f32 %v2941, 0.0
        %v3539 = vmin.f32 %v3006, 0.0
        %v3540 = vmin.f32 %v3071, 0.0
        %v3541 = vmin.f32 %v3136, 0.0
        %v3542 = vmin.f32 %v3201, 0.0
        %v3543 = vmin.f32 %v3266, 0.0
        %v3544 = vmin.f32 %v2554, 0.0
        %v3545 = vmin.f32 %v2619, 0.0
        %v3546 = vmin.f32 %v2684, 0.0
        %v3547 = vmin.f32 %v2749, 0.0
        %v3548 = vmin.f32 %v2814, 0.0
        %v3549 = vmin.f32 %v2879, 0.0
        %v3550 = vmin.f32 %v2944, 0.0
        %v3551 = vmin.f32 %v3009, 0.0
        %v3552 = vmin.f32 %v3074, 0.0
        %v3553 = vmin.f32 %v3139, 0.0
        %v3554 = vmin.f32 %v3204, 0.0
        %v3555 = vmin.f32 %v3269, 0.0
        %v3556 = vmin.f32 %v2557, 0.0
        %v3557 = vmin.f32 %v2622, 0.0
        %v3558 = vmin.f32 %v2687, 0.0
        %v3559 = vmin.f32 %v2752, 0.0
        %v3560 = vmin.f32 %v2817, 0.0
        %v3561 = vmin.f32 %v2882, 0.0
        %v3562 = vmin.f32 %v2947, 0.0
        %v3563 = vmin.f32 %v3012, 0.0
        %v3564 = vmin.f32 %v3077, 0.0
        %v3565 = vmin.f32 %v3142, 0.0
        %v3566 = vmin.f32 %v3207, 0.0
        %v3567 = vmin.f32 %v3272, 0.0
        %v3568 = vmin.f32 %v2560, 0.0
        %v3569 = vmin.f32 %v2625, 0.0
        %v3570 = vmin.f32 %v2690, 0.0
        %v3571 = vmin.f32 %v2755, 0.0
        %v3572 = vmin.f32 %v2820, 0.0
        %v3573 = vmin.f32 %v2885, 0.0
        %v3574 = vmin.f32 %v2950, 0.0
        %v3575 = vmin.f32 %v3015, 0.0
        %v3576 = vmin.f32 %v3080, 0.0
        %v3577 = vmin.f32 %v3145, 0.0
        %v3578 = vmin.f32 %v3210, 0.0
        %v3579 = vmin.f32 %v3275, 0.0
        %v3580 = vmin.f32 %v2563, 0.0
        %v3581 = vmin.f32 %v2628, 0.0
        %v3582 = vmin.f32 %v2693, 0.0
        %v3583 = vmin.f32 %v2758, 0.0
        %v3584 = vmin.f32 %v2823, 0.0
        %v3585 = vmin.f32 %v2888, 0.0
        %v3586 = vmin.f32 %v2953, 0.0
        %v3587 = vmin.f32 %v3018, 0.0
        %v3588 = vmin.f32 %v3083, 0.0
        %v3589 = vmin.f32 %v3148, 0.0
        %v3590 = vmin.f32 %v3213, 0.0
        %v3591 = vmin.f32 %v3278, 0.0
        %v3592 = vmin.f32 %v2566, 0.0
        %v3593 = vmin.f32 %v2631, 0.0
        %v3594 = vmin.f32 %v2696, 0.0
        %v3595 = vmin.f32 %v2761, 0.0
        %v3596 = vmin.f32 %v2826, 0.0
        %v3597 = vmin.f32 %v2891, 0.0
        %v3598 = vmin.f32 %v2956, 0.0
        %v3599 = vmin.f32 %v3021, 0.0
        %v3600 = vmin.f32 %v3086, 0.0
        %v3601 = vmin.f32 %v3151, 0.0
        %v3602 = vmin.f32 %v3216, 0.0
        %v3603 = vmin.f32 %v3281, 0.0
        %v3604 = vmin.f32 %v2569, 0.0
        %v3605 = vmin.f32 %v2634, 0.0
        %v3606 = vmin.f32 %v2699, 0.0
        %v3607 = vmin.f32 %v2764, 0.0
        %v3608 = vmin.f32 %v2829, 0.0
        %v3609 = vmin.f32 %v2894, 0.0
        %v3610 = vmin.f32 %v2959, 0.0
        %v3611 = vmin.f32 %v3024, 0.0
        %v3612 = vmin.f32 %v3089, 0.0
        %v3613 = vmin.f32 %v3154, 0.0
        %v3614 = vmin.f32 %v3219, 0.0
        %v3615 = vmin.f32 %v3284, 0.0
        %v3616 = vmin.f32 %v2572, 0.0
        %v3617 = vmin.f32 %v2637, 0.0
        %v3618 = vmin.f32 %v2702, 0.0
        %v3619 = vmin.f32 %v2767, 0.0
        %v3620 = vmin.f32 %v2832, 0.0
        %v3621 = vmin.f32 %v2897, 0.0
        %v3622 = vmin.f32 %v2962, 0.0
        %v3623 = vmin.f32 %v3027, 0.0
        %v3624 = vmin.f32 %v3092, 0.0
        %v3625 = vmin.f32 %v3157, 0.0
        %v3626 = vmin.f32 %v3222, 0.0
        %v3627 = vmin.f32 %v3287, 0.0
        %v3628 = vmin.f32 %v2575, 0.0
        %v3629 = vmin.f32 %v2640, 0.0
        %v3630 = vmin.f32 %v2705, 0.0
        %v3631 = vmin.f32 %v2770, 0.0
        %v3632 = vmin.f32 %v2835, 0.0
        %v3633 = vmin.f32 %v2900, 0.0
        %v3634 = vmin.f32 %v2965, 0.0
        %v3635 = vmin.f32 %v3030, 0.0
        %v3636 = vmin.f32 %v3095, 0.0
        %v3637 = vmin.f32 %v3160, 0.0
        %v3638 = vmin.f32 %v3225, 0.0
        %v3639 = vmin.f32 %v3290, 0.0
        %v3640 = vmin.f32 %v2578, 0.0
        %v3641 = vmin.f32 %v2643, 0.0
        %v3642 = vmin.f32 %v2708, 0.0
        %v3643 = vmin.f32 %v2773, 0.0
        %v3644 = vmin.f32 %v2838, 0.0
        %v3645 = vmin.f32 %v2903, 0.0
        %v3646 = vmin.f32 %v2968, 0.0
        %v3647 = vmin.f32 %v3033, 0.0
        %v3648 = vmin.f32 %v3098, 0.0
        %v3649 = vmin.f32 %v3163, 0.0
        %v3650 = vmin.f32 %v3228, 0.0
        %v3651 = vmin.f32 %v3293, 0.0
        %v3652 = vmin.f32 %v2581, 0.0
        %v3653 = vmin.f32 %v2646, 0.0
        %v3654 = vmin.f32 %v2711, 0.0
        %v3655 = vmin.f32 %v2776, 0.0
        %v3656 = vmin.f32 %v2841, 0.0
        %v3657 = vmin.f32 %v2906, 0.0
        %v3658 = vmin.f32 %v2971, 0.0
        %v3659 = vmin.f32 %v3036, 0.0
        %v3660 = vmin.f32 %v3101, 0.0
        %v3661 = vmin.f32 %v3166, 0.0
        %v3662 = vmin.f32 %v3231, 0.0
        %v3663 = vmin.f32 %v3296, 0.0
        %v3664 = vmin.f32 %v2584, 0.0
        %v3665 = vmin.f32 %v2649, 0.0
        %v3666 = vmin.f32 %v2714, 0.0
        %v3667 = vmin.f32 %v2779, 0.0
        %v3668 = vmin.f32 %v2844, 0.0
        %v3669 = vmin.f32 %v2909, 0.0
        %v3670 = vmin.f32 %v2974, 0.0
        %v3671 = vmin.f32 %v3039, 0.0
        %v3672 = vmin.f32 %v3104, 0.0
        %v3673 = vmin.f32 %v3169, 0.0
        %v3674 = vmin.f32 %v3234, 0.0
        %v3675 = vmin.f32 %v3299, 0.0
        %v3676 = vmin.f32 %v2587, 0.0
        %v3677 = vmin.f32 %v2652, 0.0
        %v3678 = vmin.f32 %v2717, 0.0
        %v3679 = vmin.f32 %v2782, 0.0
        %v3680 = vmin.f32 %v2847, 0.0
        %v3681 = vmin.f32 %v2912, 0.0
        %v3682 = vmin.f32 %v2977, 0.0
        %v3683 = vmin.f32 %v3042, 0.0
        %v3684 = vmin.f32 %v3107, 0.0
        %v3685 = vmin.f32 %v3172, 0.0
        %v3686 = vmin.f32 %v3237, 0.0
        %v3687 = vmin.f32 %v3302, 0.0
        %v3688 = vmul.f32 %v3496, 1.442695
        %v3689 = vpow.pop %v3688
        %v3690 = vmul.f32 %v3497, 1.442695
        %v3691 = vpow.pop %v3690
        %v3692 = vmul.f32 %v3498, 1.442695
        %v3693 = vpow.pop %v3692
        %v3694 = vmul.f32 %v3499, 1.442695
        %v3695 = vpow.pop %v3694
        %v3696 = vmul.f32 %v3500, 1.442695
        %v3697 = vpow.pop %v3696
        %v3698 = vmul.f32 %v3501, 1.442695
        %v3699 = vpow.pop %v3698
        %v3700 = vmul.f32 %v3502, 1.442695
        %v3701 = vpow.pop %v3700
        %v3702 = vmul.f32 %v3503, 1.442695
        %v3703 = vpow.pop %v3702
        %v3704 = vmul.f32 %v3504, 1.442695
        %v3705 = vpow.pop %v3704
        %v3706 = vmul.f32 %v3505, 1.442695
        %v3707 = vpow.pop %v3706
        %v3708 = vmul.f32 %v3506, 1.442695
        %v3709 = vpow.pop %v3708
        %v3710 = vmul.f32 %v3507, 1.442695
        %v3711 = vpow.pop %v3710
        %v3712 = vmul.f32 %v3508, 1.442695
        %v3713 = vpow.pop %v3712
        %v3714 = vmul.f32 %v3509, 1.442695
        %v3715 = vpow.pop %v3714
        %v3716 = vmul.f32 %v3510, 1.442695
        %v3717 = vpow.pop %v3716
        %v3718 = vmul.f32 %v3511, 1.442695
        %v3719 = vpow.pop %v3718
        %v3720 = vmul.f32 %v3512, 1.442695
        %v3721 = vpow.pop %v3720
        %v3722 = vmul.f32 %v3513, 1.442695
        %v3723 = vpow.pop %v3722
        %v3724 = vmul.f32 %v3514, 1.442695
        %v3725 = vpow.pop %v3724
        %v3726 = vmul.f32 %v3515, 1.442695
        %v3727 = vpow.pop %v3726
        %v3728 = vmul.f32 %v3516, 1.442695
        %v3729 = vpow.pop %v3728
        %v3730 = vmul.f32 %v3517, 1.442695
        %v3731 = vpow.pop %v3730
        %v3732 = vmul.f32 %v3518, 1.442695
        %v3733 = vpow.pop %v3732
        %v3734 = vmul.f32 %v3519, 1.442695
        %v3735 = vpow.pop %v3734
        %v3736 = vmul.f32 %v3520, 1.442695
        %v3737 = vpow.pop %v3736
        %v3738 = vmul.f32 %v3521, 1.442695
        %v3739 = vpow.pop %v3738
        %v3740 = vmul.f32 %v3522, 1.442695
        %v3741 = vpow.pop %v3740
        %v3742 = vmul.f32 %v3523, 1.442695
        %v3743 = vpow.pop %v3742
        %v3744 = vmul.f32 %v3524, 1.442695
        %v3745 = vpow.pop %v3744
        %v3746 = vmul.f32 %v3525, 1.442695
        %v3747 = vpow.pop %v3746
        %v3748 = vmul.f32 %v3526, 1.442695
        %v3749 = vpow.pop %v3748
        %v3750 = vmul.f32 %v3527, 1.442695
        %v3751 = vpow.pop %v3750
        %v3752 = vmul.f32 %v3528, 1.442695
        %v3753 = vpow.pop %v3752
        %v3754 = vmul.f32 %v3529, 1.442695
        %v3755 = vpow.pop %v3754
        %v3756 = vmul.f32 %v3530, 1.442695
        %v3757 = vpow.pop %v3756
        %v3758 = vmul.f32 %v3531, 1.442695
        %v3759 = vpow.pop %v3758
        %v3760 = vmul.f32 %v3532, 1.442695
        %v3761 = vpow.pop %v3760
        %v3762 = vmul.f32 %v3533, 1.442695
        %v3763 = vpow.pop %v3762
        %v3764 = vmul.f32 %v3534, 1.442695
        %v3765 = vpow.pop %v3764
        %v3766 = vmul.f32 %v3535, 1.442695
        %v3767 = vpow.pop %v3766
        %v3768 = vmul.f32 %v3536, 1.442695
        %v3769 = vpow.pop %v3768
        %v3770 = vmul.f32 %v3537, 1.442695
        %v3771 = vpow.pop %v3770
        %v3772 = vmul.f32 %v3538, 1.442695
        %v3773 = vpow.pop %v3772
        %v3774 = vmul.f32 %v3539, 1.442695
        %v3775 = vpow.pop %v3774
        %v3776 = vmul.f32 %v3540, 1.442695
        %v3777 = vpow.pop %v3776
        %v3778 = vmul.f32 %v3541, 1.442695
        %v3779 = vpow.pop %v3778
        %v3780 = vmul.f32 %v3542, 1.442695
        %v3781 = vpow.pop %v3780
        %v3782 = vmul.f32 %v3543, 1.442695
        %v3783 = vpow.pop %v3782
        %v3784 = vmul.f32 %v3544, 1.442695
        %v3785 = vpow.pop %v3784
        %v3786 = vmul.f32 %v3545, 1.442695
        %v3787 = vpow.pop %v3786
        %v3788 = vmul.f32 %v3546, 1.442695
        %v3789 = vpow.pop %v3788
        %v3790 = vmul.f32 %v3547, 1.442695
        %v3791 = vpow.pop %v3790
        %v3792 = vmul.f32 %v3548, 1.442695
        %v3793 = vpow.pop %v3792
        %v3794 = vmul.f32 %v3549, 1.442695
        %v3795 = vpow.pop %v3794
        %v3796 = vmul.f32 %v3550, 1.442695
        %v3797 = vpow.pop %v3796
        %v3798 = vmul.f32 %v3551, 1.442695
        %v3799 = vpow.pop %v3798
        %v3800 = vmul.f32 %v3552, 1.442695
        %v3801 = vpow.pop %v3800
        %v3802 = vmul.f32 %v3553, 1.442695
        %v3803 = vpow.pop %v3802
        %v3804 = vmul.f32 %v3554, 1.442695
        %v3805 = vpow.pop %v3804
        %v3806 = vmul.f32 %v3555, 1.442695
        %v3807 = vpow.pop %v3806
        %v3808 = vmul.f32 %v3556, 1.442695
        %v3809 = vpow.pop %v3808
        %v3810 = vmul.f32 %v3557, 1.442695
        %v3811 = vpow.pop %v3810
        %v3812 = vmul.f32 %v3558, 1.442695
        %v3813 = vpow.pop %v3812
        %v3814 = vmul.f32 %v3559, 1.442695
        %v3815 = vpow.pop %v3814
        %v3816 = vmul.f32 %v3560, 1.442695
        %v3817 = vpow.pop %v3816
        %v3818 = vmul.f32 %v3561, 1.442695
        %v3819 = vpow.pop %v3818
        %v3820 = vmul.f32 %v3562, 1.442695
        %v3821 = vpow.pop %v3820
        %v3822 = vmul.f32 %v3563, 1.442695
        %v3823 = vpow.pop %v3822
        %v3824 = vmul.f32 %v3564, 1.442695
        %v3825 = vpow.pop %v3824
        %v3826 = vmul.f32 %v3565, 1.442695
        %v3827 = vpow.pop %v3826
        %v3828 = vmul.f32 %v3566, 1.442695
        %v3829 = vpow.pop %v3828
        %v3830 = vmul.f32 %v3567, 1.442695
        %v3831 = vpow.pop %v3830
        %v3832 = vmul.f32 %v3568, 1.442695
        %v3833 = vpow.pop %v3832
        %v3834 = vmul.f32 %v3569, 1.442695
        %v3835 = vpow.pop %v3834
        %v3836 = vmul.f32 %v3570, 1.442695
        %v3837 = vpow.pop %v3836
        %v3838 = vmul.f32 %v3571, 1.442695
        %v3839 = vpow.pop %v3838
        %v3840 = vmul.f32 %v3572, 1.442695
        %v3841 = vpow.pop %v3840
        %v3842 = vmul.f32 %v3573, 1.442695
        %v3843 = vpow.pop %v3842
        %v3844 = vmul.f32 %v3574, 1.442695
        %v3845 = vpow.pop %v3844
        %v3846 = vmul.f32 %v3575, 1.442695
        %v3847 = vpow.pop %v3846
        %v3848 = vmul.f32 %v3576, 1.442695
        %v3849 = vpow.pop %v3848
        %v3850 = vmul.f32 %v3577, 1.442695
        %v3851 = vpow.pop %v3850
        %v3852 = vmul.f32 %v3578, 1.442695
        %v3853 = vpow.pop %v3852
        %v3854 = vmul.f32 %v3579, 1.442695
        %v3855 = vpow.pop %v3854
        %v3856 = vmul.f32 %v3580, 1.442695
        %v3857 = vpow.pop %v3856
        %v3858 = vmul.f32 %v3581, 1.442695
        %v3859 = vpow.pop %v3858
        %v3860 = vmul.f32 %v3582, 1.442695
        %v3861 = vpow.pop %v3860
        %v3862 = vmul.f32 %v3583, 1.442695
        %v3863 = vpow.pop %v3862
        %v3864 = vmul.f32 %v3584, 1.442695
        %v3865 = vpow.pop %v3864
        %v3866 = vmul.f32 %v3585, 1.442695
        %v3867 = vpow.pop %v3866
        %v3868 = vmul.f32 %v3586, 1.442695
        %v3869 = vpow.pop %v3868
        %v3870 = vmul.f32 %v3587, 1.442695
        %v3871 = vpow.pop %v3870
        %v3872 = vmul.f32 %v3588, 1.442695
        %v3873 = vpow.pop %v3872
        %v3874 = vmul.f32 %v3589, 1.442695
        %v3875 = vpow.pop %v3874
        %v3876 = vmul.f32 %v3590, 1.442695
        %v3877 = vpow.pop %v3876
        %v3878 = vmul.f32 %v3591, 1.442695
        %v3879 = vpow.pop %v3878
        %v3880 = vmul.f32 %v3592, 1.442695
        %v3881 = vpow.pop %v3880
        %v3882 = vmul.f32 %v3593, 1.442695
        %v3883 = vpow.pop %v3882
        %v3884 = vmul.f32 %v3594, 1.442695
        %v3885 = vpow.pop %v3884
        %v3886 = vmul.f32 %v3595, 1.442695
        %v3887 = vpow.pop %v3886
        %v3888 = vmul.f32 %v3596, 1.442695
        %v3889 = vpow.pop %v3888
        %v3890 = vmul.f32 %v3597, 1.442695
        %v3891 = vpow.pop %v3890
        %v3892 = vmul.f32 %v3598, 1.442695
        %v3893 = vpow.pop %v3892
        %v3894 = vmul.f32 %v3599, 1.442695
        %v3895 = vpow.pop %v3894
        %v3896 = vmul.f32 %v3600, 1.442695
        %v3897 = vpow.pop %v3896
        %v3898 = vmul.f32 %v3601, 1.442695
        %v3899 = vpow.pop %v3898
        %v3900 = vmul.f32 %v3602, 1.442695
        %v3901 = vpow.pop %v3900
        %v3902 = vmul.f32 %v3603, 1.442695
        %v3903 = vpow.pop %v3902
        %v3904 = vmul.f32 %v3604, 1.442695
        %v3905 = vpow.pop %v3904
        %v3906 = vmul.f32 %v3605, 1.442695
        %v3907 = vpow.pop %v3906
        %v3908 = vmul.f32 %v3606, 1.442695
        %v3909 = vpow.pop %v3908
        %v3910 = vmul.f32 %v3607, 1.442695
        %v3911 = vpow.pop %v3910
        %v3912 = vmul.f32 %v3608, 1.442695
        %v3913 = vpow.pop %v3912
        %v3914 = vmul.f32 %v3609, 1.442695
        %v3915 = vpow.pop %v3914
        %v3916 = vmul.f32 %v3610, 1.442695
        %v3917 = vpow.pop %v3916
        %v3918 = vmul.f32 %v3611, 1.442695
        %v3919 = vpow.pop %v3918
        %v3920 = vmul.f32 %v3612, 1.442695
        %v3921 = vpow.pop %v3920
        %v3922 = vmul.f32 %v3613, 1.442695
        %v3923 = vpow.pop %v3922
        %v3924 = vmul.f32 %v3614, 1.442695
        %v3925 = vpow.pop %v3924
        %v3926 = vmul.f32 %v3615, 1.442695
        %v3927 = vpow.pop %v3926
        %v3928 = vmul.f32 %v3616, 1.442695
        %v3929 = vpow.pop %v3928
        %v3930 = vmul.f32 %v3617, 1.442695
        %v3931 = vpow.pop %v3930
        %v3932 = vmul.f32 %v3618, 1.442695
        %v3933 = vpow.pop %v3932
        %v3934 = vmul.f32 %v3619, 1.442695
        %v3935 = vpow.pop %v3934
        %v3936 = vmul.f32 %v3620, 1.442695
        %v3937 = vpow.pop %v3936
        %v3938 = vmul.f32 %v3621, 1.442695
        %v3939 = vpow.pop %v3938
        %v3940 = vmul.f32 %v3622, 1.442695
        %v3941 = vpow.pop %v3940
        %v3942 = vmul.f32 %v3623, 1.442695
        %v3943 = vpow.pop %v3942
        %v3944 = vmul.f32 %v3624, 1.442695
        %v3945 = vpow.pop %v3944
        %v3946 = vmul.f32 %v3625, 1.442695
        %v3947 = vpow.pop %v3946
        %v3948 = vmul.f32 %v3626, 1.442695
        %v3949 = vpow.pop %v3948
        %v3950 = vmul.f32 %v3627, 1.442695
        %v3951 = vpow.pop %v3950
        %v3952 = vmul.f32 %v3628, 1.442695
        %v3953 = vpow.pop %v3952
        %v3954 = vmul.f32 %v3629, 1.442695
        %v3955 = vpow.pop %v3954
        %v3956 = vmul.f32 %v3630, 1.442695
        %v3957 = vpow.pop %v3956
        %v3958 = vmul.f32 %v3631, 1.442695
        %v3959 = vpow.pop %v3958
        %v3960 = vmul.f32 %v3632, 1.442695
        %v3961 = vpow.pop %v3960
        %v3962 = vmul.f32 %v3633, 1.442695
        %v3963 = vpow.pop %v3962
        %v3964 = vmul.f32 %v3634, 1.442695
        %v3965 = vpow.pop %v3964
        %v3966 = vmul.f32 %v3635, 1.442695
        %v3967 = vpow.pop %v3966
        %v3968 = vmul.f32 %v3636, 1.442695
        %v3969 = vpow.pop %v3968
        %v3970 = vmul.f32 %v3637, 1.442695
        %v3971 = vpow.pop %v3970
        %v3972 = vmul.f32 %v3638, 1.442695
        %v3973 = vpow.pop %v3972
        %v3974 = vmul.f32 %v3639, 1.442695
        %v3975 = vpow.pop %v3974
        %v3976 = vmul.f32 %v3640, 1.442695
        %v3977 = vpow.pop %v3976
        %v3978 = vmul.f32 %v3641, 1.442695
        %v3979 = vpow.pop %v3978
        %v3980 = vmul.f32 %v3642, 1.442695
        %v3981 = vpow.pop %v3980
        %v3982 = vmul.f32 %v3643, 1.442695
        %v3983 = vpow.pop %v3982
        %v3984 = vmul.f32 %v3644, 1.442695
        %v3985 = vpow.pop %v3984
        %v3986 = vmul.f32 %v3645, 1.442695
        %v3987 = vpow.pop %v3986
        %v3988 = vmul.f32 %v3646, 1.442695
        %v3989 = vpow.pop %v3988
        %v3990 = vmul.f32 %v3647, 1.442695
        %v3991 = vpow.pop %v3990
        %v3992 = vmul.f32 %v3648, 1.442695
        %v3993 = vpow.pop %v3992
        %v3994 = vmul.f32 %v3649, 1.442695
        %v3995 = vpow.pop %v3994
        %v3996 = vmul.f32 %v3650, 1.442695
        %v3997 = vpow.pop %v3996
        %v3998 = vmul.f32 %v3651, 1.442695
        %v3999 = vpow.pop %v3998
        %v4000 = vmul.f32 %v3652, 1.442695
        %v4001 = vpow.pop %v4000
        %v4002 = vmul.f32 %v3653, 1.442695
        %v4003 = vpow.pop %v4002
        %v4004 = vmul.f32 %v3654, 1.442695
        %v4005 = vpow.pop %v4004
        %v4006 = vmul.f32 %v3655, 1.442695
        %v4007 = vpow.pop %v4006
        %v4008 = vmul.f32 %v3656, 1.442695
        %v4009 = vpow.pop %v4008
        %v4010 = vmul.f32 %v3657, 1.442695
        %v4011 = vpow.pop %v4010
        %v4012 = vmul.f32 %v3658, 1.442695
        %v4013 = vpow.pop %v4012
        %v4014 = vmul.f32 %v3659, 1.442695
        %v4015 = vpow.pop %v4014
        %v4016 = vmul.f32 %v3660, 1.442695
        %v4017 = vpow.pop %v4016
        %v4018 = vmul.f32 %v3661, 1.442695
        %v4019 = vpow.pop %v4018
        %v4020 = vmul.f32 %v3662, 1.442695
        %v4021 = vpow.pop %v4020
        %v4022 = vmul.f32 %v3663, 1.442695
        %v4023 = vpow.pop %v4022
        %v4024 = vmul.f32 %v3664, 1.442695
        %v4025 = vpow.pop %v4024
        %v4026 = vmul.f32 %v3665, 1.442695
        %v4027 = vpow.pop %v4026
        %v4028 = vmul.f32 %v3666, 1.442695
        %v4029 = vpow.pop %v4028
        %v4030 = vmul.f32 %v3667, 1.442695
        %v4031 = vpow.pop %v4030
        %v4032 = vmul.f32 %v3668, 1.442695
        %v4033 = vpow.pop %v4032
        %v4034 = vmul.f32 %v3669, 1.442695
        %v4035 = vpow.pop %v4034
        %v4036 = vmul.f32 %v3670, 1.442695
        %v4037 = vpow.pop %v4036
        %v4038 = vmul.f32 %v3671, 1.442695
        %v4039 = vpow.pop %v4038
        %v4040 = vmul.f32 %v3672, 1.442695
        %v4041 = vpow.pop %v4040
        %v4042 = vmul.f32 %v3673, 1.442695
        %v4043 = vpow.pop %v4042
        %v4044 = vmul.f32 %v3674, 1.442695
        %v4045 = vpow.pop %v4044
        %v4046 = vmul.f32 %v3675, 1.442695
        %v4047 = vpow.pop %v4046
        %v4048 = vmul.f32 %v3676, 1.442695
        %v4049 = vpow.pop %v4048
        %v4050 = vmul.f32 %v3677, 1.442695
        %v4051 = vpow.pop %v4050
        %v4052 = vmul.f32 %v3678, 1.442695
        %v4053 = vpow.pop %v4052
        %v4054 = vmul.f32 %v3679, 1.442695
        %v4055 = vpow.pop %v4054
        %v4056 = vmul.f32 %v3680, 1.442695
        %v4057 = vpow.pop %v4056
        %v4058 = vmul.f32 %v3681, 1.442695
        %v4059 = vpow.pop %v4058
        %v4060 = vmul.f32 %v3682, 1.442695
        %v4061 = vpow.pop %v4060
        %v4062 = vmul.f32 %v3683, 1.442695
        %v4063 = vpow.pop %v4062
        %v4064 = vmul.f32 %v3684, 1.442695
        %v4065 = vpow.pop %v4064
        %v4066 = vmul.f32 %v3685, 1.442695
        %v4067 = vpow.pop %v4066
        %v4068 = vmul.f32 %v3686, 1.442695
        %v4069 = vpow.pop %v4068
        %v4070 = vmul.f32 %v3687, 1.442695
        %v4071 = vpow.pop %v4070
        %v4072 = vsub.f32 %v3689, 1.0
        %v4073 = vsub.f32 %v3691, 1.0
        %v4074 = vsub.f32 %v3693, 1.0
        %v4075 = vsub.f32 %v3695, 1.0
        %v4076 = vsub.f32 %v3697, 1.0
        %v4077 = vsub.f32 %v3699, 1.0
        %v4078 = vsub.f32 %v3701, 1.0
        %v4079 = vsub.f32 %v3703, 1.0
        %v4080 = vsub.f32 %v3705, 1.0
        %v4081 = vsub.f32 %v3707, 1.0
        %v4082 = vsub.f32 %v3709, 1.0
        %v4083 = vsub.f32 %v3711, 1.0
        %v4084 = vsub.f32 %v3713, 1.0
        %v4085 = vsub.f32 %v3715, 1.0
        %v4086 = vsub.f32 %v3717, 1.0
        %v4087 = vsub.f32 %v3719, 1.0
        %v4088 = vsub.f32 %v3721, 1.0
        %v4089 = vsub.f32 %v3723, 1.0
        %v4090 = vsub.f32 %v3725, 1.0
        %v4091 = vsub.f32 %v3727, 1.0
        %v4092 = vsub.f32 %v3729, 1.0
        %v4093 = vsub.f32 %v3731, 1.0
        %v4094 = vsub.f32 %v3733, 1.0
        %v4095 = vsub.f32 %v3735, 1.0
        %v4096 = vsub.f32 %v3737, 1.0
        %v4097 = vsub.f32 %v3739, 1.0
        %v4098 = vsub.f32 %v3741, 1.0
        %v4099 = vsub.f32 %v3743, 1.0
        %v4100 = vsub.f32 %v3745, 1.0
        %v4101 = vsub.f32 %v3747, 1.0
        %v4102 = vsub.f32 %v3749, 1.0
        %v4103 = vsub.f32 %v3751, 1.0
        %v4104 = vsub.f32 %v3753, 1.0
        %v4105 = vsub.f32 %v3755, 1.0
        %v4106 = vsub.f32 %v3757, 1.0
        %v4107 = vsub.f32 %v3759, 1.0
        %v4108 = vsub.f32 %v3761, 1.0
        %v4109 = vsub.f32 %v3763, 1.0
        %v4110 = vsub.f32 %v3765, 1.0
        %v4111 = vsub.f32 %v3767, 1.0
        %v4112 = vsub.f32 %v3769, 1.0
        %v4113 = vsub.f32 %v3771, 1.0
        %v4114 = vsub.f32 %v3773, 1.0
        %v4115 = vsub.f32 %v3775, 1.0
        %v4116 = vsub.f32 %v3777, 1.0
        %v4117 = vsub.f32 %v3779, 1.0
        %v4118 = vsub.f32 %v3781, 1.0
        %v4119 = vsub.f32 %v3783, 1.0
        %v4120 = vsub.f32 %v3785, 1.0
        %v4121 = vsub.f32 %v3787, 1.0
        %v4122 = vsub.f32 %v3789, 1.0
        %v4123 = vsub.f32 %v3791, 1.0
        %v4124 = vsub.f32 %v3793, 1.0
        %v4125 = vsub.f32 %v3795, 1.0
        %v4126 = vsub.f32 %v3797, 1.0
        %v4127 = vsub.f32 %v3799, 1.0
        %v4128 = vsub.f32 %v3801, 1.0
        %v4129 = vsub.f32 %v3803, 1.0
        %v4130 = vsub.f32 %v3805, 1.0
        %v4131 = vsub.f32 %v3807, 1.0
        %v4132 = vsub.f32 %v3809, 1.0
        %v4133 = vsub.f32 %v3811, 1.0
        %v4134 = vsub.f32 %v3813, 1.0
        %v4135 = vsub.f32 %v3815, 1.0
        %v4136 = vsub.f32 %v3817, 1.0
        %v4137 = vsub.f32 %v3819, 1.0
        %v4138 = vsub.f32 %v3821, 1.0
        %v4139 = vsub.f32 %v3823, 1.0
        %v4140 = vsub.f32 %v3825, 1.0
        %v4141 = vsub.f32 %v3827, 1.0
        %v4142 = vsub.f32 %v3829, 1.0
        %v4143 = vsub.f32 %v3831, 1.0
        %v4144 = vsub.f32 %v3833, 1.0
        %v4145 = vsub.f32 %v3835, 1.0
        %v4146 = vsub.f32 %v3837, 1.0
        %v4147 = vsub.f32 %v3839, 1.0
        %v4148 = vsub.f32 %v3841, 1.0
        %v4149 = vsub.f32 %v3843, 1.0
        %v4150 = vsub.f32 %v3845, 1.0
        %v4151 = vsub.f32 %v3847, 1.0
        %v4152 = vsub.f32 %v3849, 1.0
        %v4153 = vsub.f32 %v3851, 1.0
        %v4154 = vsub.f32 %v3853, 1.0
        %v4155 = vsub.f32 %v3855, 1.0
        %v4156 = vsub.f32 %v3857, 1.0
        %v4157 = vsub.f32 %v3859, 1.0
        %v4158 = vsub.f32 %v3861, 1.0
        %v4159 = vsub.f32 %v3863, 1.0
        %v4160 = vsub.f32 %v3865, 1.0
        %v4161 = vsub.f32 %v3867, 1.0
        %v4162 = vsub.f32 %v3869, 1.0
        %v4163 = vsub.f32 %v3871, 1.0
        %v4164 = vsub.f32 %v3873, 1.0
        %v4165 = vsub.f32 %v3875, 1.0
        %v4166 = vsub.f32 %v3877, 1.0
        %v4167 = vsub.f32 %v3879, 1.0
        %v4168 = vsub.f32 %v3881, 1.0
        %v4169 = vsub.f32 %v3883, 1.0
        %v4170 = vsub.f32 %v3885, 1.0
        %v4171 = vsub.f32 %v3887, 1.0
        %v4172 = vsub.f32 %v3889, 1.0
        %v4173 = vsub.f32 %v3891, 1.0
        %v4174 = vsub.f32 %v3893, 1.0
        %v4175 = vsub.f32 %v3895, 1.0
        %v4176 = vsub.f32 %v3897, 1.0
        %v4177 = vsub.f32 %v3899, 1.0
        %v4178 = vsub.f32 %v3901, 1.0
        %v4179 = vsub.f32 %v3903, 1.0
        %v4180 = vsub.f32 %v3905, 1.0
        %v4181 = vsub.f32 %v3907, 1.0
        %v4182 = vsub.f32 %v3909, 1.0
        %v4183 = vsub.f32 %v3911, 1.0
        %v4184 = vsub.f32 %v3913, 1.0
        %v4185 = vsub.f32 %v3915, 1.0
        %v4186 = vsub.f32 %v3917, 1.0
        %v4187 = vsub.f32 %v3919, 1.0
        %v4188 = vsub.f32 %v3921, 1.0
        %v4189 = vsub.f32 %v3923, 1.0
        %v4190 = vsub.f32 %v3925, 1.0
        %v4191 = vsub.f32 %v3927, 1.0
        %v4192 = vsub.f32 %v3929, 1.0
        %v4193 = vsub.f32 %v3931, 1.0
        %v4194 = vsub.f32 %v3933, 1.0
        %v4195 = vsub.f32 %v3935, 1.0
        %v4196 = vsub.f32 %v3937, 1.0
        %v4197 = vsub.f32 %v3939, 1.0
        %v4198 = vsub.f32 %v3941, 1.0
        %v4199 = vsub.f32 %v3943, 1.0
        %v4200 = vsub.f32 %v3945, 1.0
        %v4201 = vsub.f32 %v3947, 1.0
        %v4202 = vsub.f32 %v3949, 1.0
        %v4203 = vsub.f32 %v3951, 1.0
        %v4204 = vsub.f32 %v3953, 1.0
        %v4205 = vsub.f32 %v3955, 1.0
        %v4206 = vsub.f32 %v3957, 1.0
        %v4207 = vsub.f32 %v3959, 1.0
        %v4208 = vsub.f32 %v3961, 1.0
        %v4209 = vsub.f32 %v3963, 1.0
        %v4210 = vsub.f32 %v3965, 1.0
        %v4211 = vsub.f32 %v3967, 1.0
        %v4212 = vsub.f32 %v3969, 1.0
        %v4213 = vsub.f32 %v3971, 1.0
        %v4214 = vsub.f32 %v3973, 1.0
        %v4215 = vsub.f32 %v3975, 1.0
        %v4216 = vsub.f32 %v3977, 1.0
        %v4217 = vsub.f32 %v3979, 1.0
        %v4218 = vsub.f32 %v3981, 1.0
        %v4219 = vsub.f32 %v3983, 1.0
        %v4220 = vsub.f32 %v3985, 1.0
        %v4221 = vsub.f32 %v3987, 1.0
        %v4222 = vsub.f32 %v3989, 1.0
        %v4223 = vsub.f32 %v3991, 1.0
        %v4224 = vsub.f32 %v3993, 1.0
        %v4225 = vsub.f32 %v3995, 1.0
        %v4226 = vsub.f32 %v3997, 1.0
        %v4227 = vsub.f32 %v3999, 1.0
        %v4228 = vsub.f32 %v4001, 1.0
        %v4229 = vsub.f32 %v4003, 1.0
        %v4230 = vsub.f32 %v4005, 1.0
        %v4231 = vsub.f32 %v4007, 1.0
        %v4232 = vsub.f32 %v4009, 1.0
        %v4233 = vsub.f32 %v4011, 1.0
        %v4234 = vsub.f32 %v4013, 1.0
        %v4235 = vsub.f32 %v4015, 1.0
        %v4236 = vsub.f32 %v4017, 1.0
        %v4237 = vsub.f32 %v4019, 1.0
        %v4238 = vsub.f32 %v4021, 1.0
        %v4239 = vsub.f32 %v4023, 1.0
        %v4240 = vsub.f32 %v4025, 1.0
        %v4241 = vsub.f32 %v4027, 1.0
        %v4242 = vsub.f32 %v4029, 1.0
        %v4243 = vsub.f32 %v4031, 1.0
        %v4244 = vsub.f32 %v4033, 1.0
        %v4245 = vsub.f32 %v4035, 1.0
        %v4246 = vsub.f32 %v4037, 1.0
        %v4247 = vsub.f32 %v4039, 1.0
        %v4248 = vsub.f32 %v4041, 1.0
        %v4249 = vsub.f32 %v4043, 1.0
        %v4250 = vsub.f32 %v4045, 1.0
        %v4251 = vsub.f32 %v4047, 1.0
        %v4252 = vsub.f32 %v4049, 1.0
        %v4253 = vsub.f32 %v4051, 1.0
        %v4254 = vsub.f32 %v4053, 1.0
        %v4255 = vsub.f32 %v4055, 1.0
        %v4256 = vsub.f32 %v4057, 1.0
        %v4257 = vsub.f32 %v4059, 1.0
        %v4258 = vsub.f32 %v4061, 1.0
        %v4259 = vsub.f32 %v4063, 1.0
        %v4260 = vsub.f32 %v4065, 1.0
        %v4261 = vsub.f32 %v4067, 1.0
        %v4262 = vsub.f32 %v4069, 1.0
        %v4263 = vsub.f32 %v4071, 1.0
        %v4264 = vsel %vm3304, %v2542, %v4072
        %v4265 = vsel %vm3305, %v2607, %v4073
        %v4266 = vsel %vm3306, %v2672, %v4074
        %v4267 = vsel %vm3307, %v2737, %v4075
        %v4268 = vsel %vm3308, %v2802, %v4076
        %v4269 = vsel %vm3309, %v2867, %v4077
        %v4270 = vsel %vm3310, %v2932, %v4078
        %v4271 = vsel %vm3311, %v2997, %v4079
        %v4272 = vsel %vm3312, %v3062, %v4080
        %v4273 = vsel %vm3313, %v3127, %v4081
        %v4274 = vsel %vm3314, %v3192, %v4082
        %v4275 = vsel %vm3315, %v3257, %v4083
        %v4276 = vsel %vm3316, %v2545, %v4084
        %v4277 = vsel %vm3317, %v2610, %v4085
        %v4278 = vsel %vm3318, %v2675, %v4086
        %v4279 = vsel %vm3319, %v2740, %v4087
        %v4280 = vsel %vm3320, %v2805, %v4088
        %v4281 = vsel %vm3321, %v2870, %v4089
        %v4282 = vsel %vm3322, %v2935, %v4090
        %v4283 = vsel %vm3323, %v3000, %v4091
        %v4284 = vsel %vm3324, %v3065, %v4092
        %v4285 = vsel %vm3325, %v3130, %v4093
        %v4286 = vsel %vm3326, %v3195, %v4094
        %v4287 = vsel %vm3327, %v3260, %v4095
        %v4288 = vsel %vm3328, %v2548, %v4096
        %v4289 = vsel %vm3329, %v2613, %v4097
        %v4290 = vsel %vm3330, %v2678, %v4098
        %v4291 = vsel %vm3331, %v2743, %v4099
        %v4292 = vsel %vm3332, %v2808, %v4100
        %v4293 = vsel %vm3333, %v2873, %v4101
        %v4294 = vsel %vm3334, %v2938, %v4102
        %v4295 = vsel %vm3335, %v3003, %v4103
        %v4296 = vsel %vm3336, %v3068, %v4104
        %v4297 = vsel %vm3337, %v3133, %v4105
        %v4298 = vsel %vm3338, %v3198, %v4106
        %v4299 = vsel %vm3339, %v3263, %v4107
        %v4300 = vsel %vm3340, %v2551, %v4108
        %v4301 = vsel %vm3341, %v2616, %v4109
        %v4302 = vsel %vm3342, %v2681, %v4110
        %v4303 = vsel %vm3343, %v2746, %v4111
        %v4304 = vsel %vm3344, %v2811, %v4112
        %v4305 = vsel %vm3345, %v2876, %v4113
        %v4306 = vsel %vm3346, %v2941, %v4114
        %v4307 = vsel %vm3347, %v3006, %v4115
        %v4308 = vsel %vm3348, %v3071, %v4116
        %v4309 = vsel %vm3349, %v3136, %v4117
        %v4310 = vsel %vm3350, %v3201, %v4118
        %v4311 = vsel %vm3351, %v3266, %v4119
        %v4312 = vsel %vm3352, %v2554, %v4120
        %v4313 = vsel %vm3353, %v2619, %v4121
        %v4314 = vsel %vm3354, %v2684, %v4122
        %v4315 = vsel %vm3355, %v2749, %v4123
        %v4316 = vsel %vm3356, %v2814, %v4124
        %v4317 = vsel %vm3357, %v2879, %v4125
        %v4318 = vsel %vm3358, %v2944, %v4126
        %v4319 = vsel %vm3359, %v3009, %v4127
        %v4320 = vsel %vm3360, %v3074, %v4128
        %v4321 = vsel %vm3361, %v3139, %v4129
        %v4322 = vsel %vm3362, %v3204, %v4130
        %v4323 = vsel %vm3363, %v3269, %v4131
        %v4324 = vsel %vm3364, %v2557, %v4132
        %v4325 = vsel %vm3365, %v2622, %v4133
        %v4326 = vsel %vm3366, %v2687, %v4134
        %v4327 = vsel %vm3367, %v2752, %v4135
        %v4328 = vsel %vm3368, %v2817, %v4136
        %v4329 = vsel %vm3369, %v2882, %v4137
        %v4330 = vsel %vm3370, %v2947, %v4138
        %v4331 = vsel %vm3371, %v3012, %v4139
        %v4332 = vsel %vm3372, %v3077, %v4140
        %v4333 = vsel %vm3373, %v3142, %v4141
        %v4334 = vsel %vm3374, %v3207, %v4142
        %v4335 = vsel %vm3375, %v3272, %v4143
        %v4336 = vsel %vm3376, %v2560, %v4144
        %v4337 = vsel %vm3377, %v2625, %v4145
        %v4338 = vsel %vm3378, %v2690, %v4146
        %v4339 = vsel %vm3379, %v2755, %v4147
        %v4340 = vsel %vm3380, %v2820, %v4148
        %v4341 = vsel %vm3381, %v2885, %v4149
        %v4342 = vsel %vm3382, %v2950, %v4150
        %v4343 = vsel %vm3383, %v3015, %v4151
        %v4344 = vsel %vm3384, %v3080, %v4152
        %v4345 = vsel %vm3385, %v3145, %v4153
        %v4346 = vsel %vm3386, %v3210, %v4154
        %v4347 = vsel %vm3387, %v3275, %v4155
        %v4348 = vsel %vm3388, %v2563, %v4156
        %v4349 = vsel %vm3389, %v2628, %v4157
        %v4350 = vsel %vm3390, %v2693, %v4158
        %v4351 = vsel %vm3391, %v2758, %v4159
        %v4352 = vsel %vm3392, %v2823, %v4160
        %v4353 = vsel %vm3393, %v2888, %v4161
        %v4354 = vsel %vm3394, %v2953, %v4162
        %v4355 = vsel %vm3395, %v3018, %v4163
        %v4356 = vsel %vm3396, %v3083, %v4164
        %v4357 = vsel %vm3397, %v3148, %v4165
        %v4358 = vsel %vm3398, %v3213, %v4166
        %v4359 = vsel %vm3399, %v3278, %v4167
        %v4360 = vsel %vm3400, %v2566, %v4168
        %v4361 = vsel %vm3401, %v2631, %v4169
        %v4362 = vsel %vm3402, %v2696, %v4170
        %v4363 = vsel %vm3403, %v2761, %v4171
        %v4364 = vsel %vm3404, %v2826, %v4172
        %v4365 = vsel %vm3405, %v2891, %v4173
        %v4366 = vsel %vm3406, %v2956, %v4174
        %v4367 = vsel %vm3407, %v3021, %v4175
        %v4368 = vsel %vm3408, %v3086, %v4176
        %v4369 = vsel %vm3409, %v3151, %v4177
        %v4370 = vsel %vm3410, %v3216, %v4178
        %v4371 = vsel %vm3411, %v3281, %v4179
        %v4372 = vsel %vm3412, %v2569, %v4180
        %v4373 = vsel %vm3413, %v2634, %v4181
        %v4374 = vsel %vm3414, %v2699, %v4182
        %v4375 = vsel %vm3415, %v2764, %v4183
        %v4376 = vsel %vm3416, %v2829, %v4184
        %v4377 = vsel %vm3417, %v2894, %v4185
        %v4378 = vsel %vm3418, %v2959, %v4186
        %v4379 = vsel %vm3419, %v3024, %v4187
        %v4380 = vsel %vm3420, %v3089, %v4188
        %v4381 = vsel %vm3421, %v3154, %v4189
        %v4382 = vsel %vm3422, %v3219, %v4190
        %v4383 = vsel %vm3423, %v3284, %v4191
        %v4384 = vsel %vm3424, %v2572, %v4192
        %v4385 = vsel %vm3425, %v2637, %v4193
        %v4386 = vsel %vm3426, %v2702, %v4194
        %v4387 = vsel %vm3427, %v2767, %v4195
        %v4388 = vsel %vm3428, %v2832, %v4196
        %v4389 = vsel %vm3429, %v2897, %v4197
        %v4390 = vsel %vm3430, %v2962, %v4198
        %v4391 = vsel %vm3431, %v3027, %v4199
        %v4392 = vsel %vm3432, %v3092, %v4200
        %v4393 = vsel %vm3433, %v3157, %v4201
        %v4394 = vsel %vm3434, %v3222, %v4202
        %v4395 = vsel %vm3435, %v3287, %v4203
        %v4396 = vsel %vm3436, %v2575, %v4204
        %v4397 = vsel %vm3437, %v2640, %v4205
        %v4398 = vsel %vm3438, %v2705, %v4206
        %v4399 = vsel %vm3439, %v2770, %v4207
        %v4400 = vsel %vm3440, %v2835, %v4208
        %v4401 = vsel %vm3441, %v2900, %v4209
        %v4402 = vsel %vm3442, %v2965, %v4210
        %v4403 = vsel %vm3443, %v3030, %v4211
        %v4404 = vsel %vm3444, %v3095, %v4212
        %v4405 = vsel %vm3445, %v3160, %v4213
        %v4406 = vsel %vm3446, %v3225, %v4214
        %v4407 = vsel %vm3447, %v3290, %v4215
        %v4408 = vsel %vm3448, %v2578, %v4216
        %v4409 = vsel %vm3449, %v2643, %v4217
        %v4410 = vsel %vm3450, %v2708, %v4218
        %v4411 = vsel %vm3451, %v2773, %v4219
        %v4412 = vsel %vm3452, %v2838, %v4220
        %v4413 = vsel %vm3453, %v2903, %v4221
        %v4414 = vsel %vm3454, %v2968, %v4222
        %v4415 = vsel %vm3455, %v3033, %v4223
        %v4416 = vsel %vm3456, %v3098, %v4224
        %v4417 = vsel %vm3457, %v3163, %v4225
        %v4418 = vsel %vm3458, %v3228, %v4226
        %v4419 = vsel %vm3459, %v3293, %v4227
        %v4420 = vsel %vm3460, %v2581, %v4228
        %v4421 = vsel %vm3461, %v2646, %v4229
        %v4422 = vsel %vm3462, %v2711, %v4230
        %v4423 = vsel %vm3463, %v2776, %v4231
        %v4424 = vsel %vm3464, %v2841, %v4232
        %v4425 = vsel %vm3465, %v2906, %v4233
        %v4426 = vsel %vm3466, %v2971, %v4234
        %v4427 = vsel %vm3467, %v3036, %v4235
        %v4428 = vsel %vm3468, %v3101, %v4236
        %v4429 = vsel %vm3469, %v3166, %v4237
        %v4430 = vsel %vm3470, %v3231, %v4238
        %v4431 = vsel %vm3471, %v3296, %v4239
        %v4432 = vsel %vm3472, %v2584, %v4240
        %v4433 = vsel %vm3473, %v2649, %v4241
        %v4434 = vsel %vm3474, %v2714, %v4242
        %v4435 = vsel %vm3475, %v2779, %v4243
        %v4436 = vsel %vm3476, %v2844, %v4244
        %v4437 = vsel %vm3477, %v2909, %v4245
        %v4438 = vsel %vm3478, %v2974, %v4246
        %v4439 = vsel %vm3479, %v3039, %v4247
        %v4440 = vsel %vm3480, %v3104, %v4248
        %v4441 = vsel %vm3481, %v3169, %v4249
        %v4442 = vsel %vm3482, %v3234, %v4250
        %v4443 = vsel %vm3483, %v3299, %v4251
        %v4444 = vsel %vm3484, %v2587, %v4252
        %v4445 = vsel %vm3485, %v2652, %v4253
        %v4446 = vsel %vm3486, %v2717, %v4254
        %v4447 = vsel %vm3487, %v2782, %v4255
        %v4448 = vsel %vm3488, %v2847, %v4256
        %v4449 = vsel %vm3489, %v2912, %v4257
        %v4450 = vsel %vm3490, %v2977, %v4258
        %v4451 = vsel %vm3491, %v3042, %v4259
        %v4452 = vsel %vm3492, %v3107, %v4260
        %v4453 = vsel %vm3493, %v3172, %v4261
        %v4454 = vsel %vm3494, %v3237, %v4262
        %v4455 = vsel %vm3495, %v3302, %v4263
        %v4456 = vld [vmem:[%s5] sm:$0xf]
        %v4457 = vld [vmem:[%s6] sm:$0xf]
        %4459 = vset.pattern.permute.xlu0 0
        %4460 = vperm.xlu0 %4459, %v4457
        %v4461 = vpop.permute.xlu0 %4460
        %4463 = vmatpush.msra.mxu0 %v4444
        %4464 = vmatpush.msra.mxu0 %v4432
        %4465 = vmatpush.msra.mxu0 %v4420
        %4466 = vmatpush.msra.mxu0 %v4408
        %4467 = vmatpush.msra.mxu0 %v4396
        %4468 = vmatpush.msra.mxu0 %v4384
        %4469 = vmatpush.msra.mxu0 %v4372
        %4470 = vmatpush.msra.mxu0 %v4360
        %4471 = vmatpush.msra.mxu0 %v4348
        %4472 = vmatpush.msra.mxu0 %v4336
        %4473 = vmatpush.msra.mxu0 %v4324
        %4474 = vmatpush.msra.mxu0 %v4312
        %4475 = vmatpush.msra.mxu0 %v4300
        %4476 = vmatpush.msra.mxu0 %v4288
        %4477 = vmatpush.msra.mxu0 %v4276
        %4478 = vmatpush.msra.mxu0 %v4264
        %4479 = vmatmul.f32.gmra.mxu0 %v4456
        %v4480 = vpop.f32.mrf.mxu0
        %v4481 = vadd.f32 %v4461, %v4480
        %4482 = vdwg.mxu0
        %4483 = vmatpush.msra.mxu0 %v4445
        %4484 = vmatpush.msra.mxu0 %v4433
        %4485 = vmatpush.msra.mxu0 %v4421
        %4486 = vmatpush.msra.mxu0 %v4409
        %4487 = vmatpush.msra.mxu0 %v4397
        %4488 = vmatpush.msra.mxu0 %v4385
        %4489 = vmatpush.msra.mxu0 %v4373
        %4490 = vmatpush.msra.mxu0 %v4361
        %4491 = vmatpush.msra.mxu0 %v4349
        %4492 = vmatpush.msra.mxu0 %v4337
        %4493 = vmatpush.msra.mxu0 %v4325
        %4494 = vmatpush.msra.mxu0 %v4313
        %4495 = vmatpush.msra.mxu0 %v4301
        %4496 = vmatpush.msra.mxu0 %v4289
        %4497 = vmatpush.msra.mxu0 %v4277
        %4498 = vmatpush.msra.mxu0 %v4265
        %4499 = vmatmul.f32.gmra.mxu0 %v4456
        %v4500 = vpop.f32.mrf.mxu0
        %v4501 = vadd.f32 %v4461, %v4500
        %4502 = vdwg.mxu0
        %4503 = vmatpush.msra.mxu0 %v4446
        %4504 = vmatpush.msra.mxu0 %v4434
        %4505 = vmatpush.msra.mxu0 %v4422
        %4506 = vmatpush.msra.mxu0 %v4410
        %4507 = vmatpush.msra.mxu0 %v4398
        %4508 = vmatpush.msra.mxu0 %v4386
        %4509 = vmatpush.msra.mxu0 %v4374
        %4510 = vmatpush.msra.mxu0 %v4362
        %4511 = vmatpush.msra.mxu0 %v4350
        %4512 = vmatpush.msra.mxu0 %v4338
        %4513 = vmatpush.msra.mxu0 %v4326
        %4514 = vmatpush.msra.mxu0 %v4314
        %4515 = vmatpush.msra.mxu0 %v4302
        %4516 = vmatpush.msra.mxu0 %v4290
        %4517 = vmatpush.msra.mxu0 %v4278
        %4518 = vmatpush.msra.mxu0 %v4266
        %4519 = vmatmul.f32.gmra.mxu0 %v4456
        %v4520 = vpop.f32.mrf.mxu0
        %v4521 = vadd.f32 %v4461, %v4520
        %4522 = vdwg.mxu0
        %4523 = vmatpush.msra.mxu0 %v4447
        %4524 = vmatpush.msra.mxu0 %v4435
        %4525 = vmatpush.msra.mxu0 %v4423
        %4526 = vmatpush.msra.mxu0 %v4411
        %4527 = vmatpush.msra.mxu0 %v4399
        %4528 = vmatpush.msra.mxu0 %v4387
        %4529 = vmatpush.msra.mxu0 %v4375
        %4530 = vmatpush.msra.mxu0 %v4363
        %4531 = vmatpush.msra.mxu0 %v4351
        %4532 = vmatpush.msra.mxu0 %v4339
        %4533 = vmatpush.msra.mxu0 %v4327
        %4534 = vmatpush.msra.mxu0 %v4315
        %4535 = vmatpush.msra.mxu0 %v4303
        %4536 = vmatpush.msra.mxu0 %v4291
        %4537 = vmatpush.msra.mxu0 %v4279
        %4538 = vmatpush.msra.mxu0 %v4267
        %4539 = vmatmul.f32.gmra.mxu0 %v4456
        %v4540 = vpop.f32.mrf.mxu0
        %v4541 = vadd.f32 %v4461, %v4540
        %4542 = vdwg.mxu0
        %4543 = vmatpush.msra.mxu0 %v4448
        %4544 = vmatpush.msra.mxu0 %v4436
        %4545 = vmatpush.msra.mxu0 %v4424
        %4546 = vmatpush.msra.mxu0 %v4412
        %4547 = vmatpush.msra.mxu0 %v4400
        %4548 = vmatpush.msra.mxu0 %v4388
        %4549 = vmatpush.msra.mxu0 %v4376
        %4550 = vmatpush.msra.mxu0 %v4364
        %4551 = vmatpush.msra.mxu0 %v4352
        %4552 = vmatpush.msra.mxu0 %v4340
        %4553 = vmatpush.msra.mxu0 %v4328
        %4554 = vmatpush.msra.mxu0 %v4316
        %4555 = vmatpush.msra.mxu0 %v4304
        %4556 = vmatpush.msra.mxu0 %v4292
        %4557 = vmatpush.msra.mxu0 %v4280
        %4558 = vmatpush.msra.mxu0 %v4268
        %4559 = vmatmul.f32.gmra.mxu0 %v4456
        %v4560 = vpop.f32.mrf.mxu0
        %v4561 = vadd.f32 %v4461, %v4560
        %4562 = vdwg.mxu0
        %4563 = vmatpush.msra.mxu0 %v4449
        %4564 = vmatpush.msra.mxu0 %v4437
        %4565 = vmatpush.msra.mxu0 %v4425
        %4566 = vmatpush.msra.mxu0 %v4413
        %4567 = vmatpush.msra.mxu0 %v4401
        %4568 = vmatpush.msra.mxu0 %v4389
        %4569 = vmatpush.msra.mxu0 %v4377
        %4570 = vmatpush.msra.mxu0 %v4365
        %4571 = vmatpush.msra.mxu0 %v4353
        %4572 = vmatpush.msra.mxu0 %v4341
        %4573 = vmatpush.msra.mxu0 %v4329
        %4574 = vmatpush.msra.mxu0 %v4317
        %4575 = vmatpush.msra.mxu0 %v4305
        %4576 = vmatpush.msra.mxu0 %v4293
        %4577 = vmatpush.msra.mxu0 %v4281
        %4578 = vmatpush.msra.mxu0 %v4269
        %4579 = vmatmul.f32.gmra.mxu0 %v4456
        %v4580 = vpop.f32.mrf.mxu0
        %v4581 = vadd.f32 %v4461, %v4580
        %4582 = vdwg.mxu0
        %4583 = vmatpush.msra.mxu0 %v4450
        %4584 = vmatpush.msra.mxu0 %v4438
        %4585 = vmatpush.msra.mxu0 %v4426
        %4586 = vmatpush.msra.mxu0 %v4414
        %4587 = vmatpush.msra.mxu0 %v4402
        %4588 = vmatpush.msra.mxu0 %v4390
        %4589 = vmatpush.msra.mxu0 %v4378
        %4590 = vmatpush.msra.mxu0 %v4366
        %4591 = vmatpush.msra.mxu0 %v4354
        %4592 = vmatpush.msra.mxu0 %v4342
        %4593 = vmatpush.msra.mxu0 %v4330
        %4594 = vmatpush.msra.mxu0 %v4318
        %4595 = vmatpush.msra.mxu0 %v4306
        %4596 = vmatpush.msra.mxu0 %v4294
        %4597 = vmatpush.msra.mxu0 %v4282
        %4598 = vmatpush.msra.mxu0 %v4270
        %4599 = vmatmul.f32.gmra.mxu0 %v4456
        %v4600 = vpop.f32.mrf.mxu0
        %v4601 = vadd.f32 %v4461, %v4600
        %4602 = vdwg.mxu0
        %4603 = vmatpush.msra.mxu0 %v4451
        %4604 = vmatpush.msra.mxu0 %v4439
        %4605 = vmatpush.msra.mxu0 %v4427
        %4606 = vmatpush.msra.mxu0 %v4415
        %4607 = vmatpush.msra.mxu0 %v4403
        %4608 = vmatpush.msra.mxu0 %v4391
        %4609 = vmatpush.msra.mxu0 %v4379
        %4610 = vmatpush.msra.mxu0 %v4367
        %4611 = vmatpush.msra.mxu0 %v4355
        %4612 = vmatpush.msra.mxu0 %v4343
        %4613 = vmatpush.msra.mxu0 %v4331
        %4614 = vmatpush.msra.mxu0 %v4319
        %4615 = vmatpush.msra.mxu0 %v4307
        %4616 = vmatpush.msra.mxu0 %v4295
        %4617 = vmatpush.msra.mxu0 %v4283
        %4618 = vmatpush.msra.mxu0 %v4271
        %4619 = vmatmul.f32.gmra.mxu0 %v4456
        %v4620 = vpop.f32.mrf.mxu0
        %v4621 = vadd.f32 %v4461, %v4620
        %4622 = vdwg.mxu0
        %4623 = vmatpush.msra.mxu0 %v4452
        %4624 = vmatpush.msra.mxu0 %v4440
        %4625 = vmatpush.msra.mxu0 %v4428
        %4626 = vmatpush.msra.mxu0 %v4416
        %4627 = vmatpush.msra.mxu0 %v4404
        %4628 = vmatpush.msra.mxu0 %v4392
        %4629 = vmatpush.msra.mxu0 %v4380
        %4630 = vmatpush.msra.mxu0 %v4368
        %4631 = vmatpush.msra.mxu0 %v4356
        %4632 = vmatpush.msra.mxu0 %v4344
        %4633 = vmatpush.msra.mxu0 %v4332
        %4634 = vmatpush.msra.mxu0 %v4320
        %4635 = vmatpush.msra.mxu0 %v4308
        %4636 = vmatpush.msra.mxu0 %v4296
        %4637 = vmatpush.msra.mxu0 %v4284
        %4638 = vmatpush.msra.mxu0 %v4272
        %4639 = vmatmul.f32.gmra.mxu0 %v4456
        %v4640 = vpop.f32.mrf.mxu0
        %v4641 = vadd.f32 %v4461, %v4640
        %4642 = vdwg.mxu0
        %4643 = vmatpush.msra.mxu0 %v4453
        %4644 = vmatpush.msra.mxu0 %v4441
        %4645 = vmatpush.msra.mxu0 %v4429
        %4646 = vmatpush.msra.mxu0 %v4417
        %4647 = vmatpush.msra.mxu0 %v4405
        %4648 = vmatpush.msra.mxu0 %v4393
        %4649 = vmatpush.msra.mxu0 %v4381
        %4650 = vmatpush.msra.mxu0 %v4369
        %4651 = vmatpush.msra.mxu0 %v4357
        %4652 = vmatpush.msra.mxu0 %v4345
        %4653 = vmatpush.msra.mxu0 %v4333
        %4654 = vmatpush.msra.mxu0 %v4321
        %4655 = vmatpush.msra.mxu0 %v4309
        %4656 = vmatpush.msra.mxu0 %v4297
        %4657 = vmatpush.msra.mxu0 %v4285
        %4658 = vmatpush.msra.mxu0 %v4273
        %4659 = vmatmul.f32.gmra.mxu0 %v4456
        %v4660 = vpop.f32.mrf.mxu0
        %v4661 = vadd.f32 %v4461, %v4660
        %4662 = vdwg.mxu0
        %4663 = vmatpush.msra.mxu0 %v4454
        %4664 = vmatpush.msra.mxu0 %v4442
        %4665 = vmatpush.msra.mxu0 %v4430
        %4666 = vmatpush.msra.mxu0 %v4418
        %4667 = vmatpush.msra.mxu0 %v4406
        %4668 = vmatpush.msra.mxu0 %v4394
        %4669 = vmatpush.msra.mxu0 %v4382
        %4670 = vmatpush.msra.mxu0 %v4370
        %4671 = vmatpush.msra.mxu0 %v4358
        %4672 = vmatpush.msra.mxu0 %v4346
        %4673 = vmatpush.msra.mxu0 %v4334
        %4674 = vmatpush.msra.mxu0 %v4322
        %4675 = vmatpush.msra.mxu0 %v4310
        %4676 = vmatpush.msra.mxu0 %v4298
        %4677 = vmatpush.msra.mxu0 %v4286
        %4678 = vmatpush.msra.mxu0 %v4274
        %4679 = vmatmul.f32.gmra.mxu0 %v4456
        %v4680 = vpop.f32.mrf.mxu0
        %v4681 = vadd.f32 %v4461, %v4680
        %4682 = vdwg.mxu0
        %4683 = vmatpush.msra.mxu0 %v4455
        %4684 = vmatpush.msra.mxu0 %v4443
        %4685 = vmatpush.msra.mxu0 %v4431
        %4686 = vmatpush.msra.mxu0 %v4419
        %4687 = vmatpush.msra.mxu0 %v4407
        %4688 = vmatpush.msra.mxu0 %v4395
        %4689 = vmatpush.msra.mxu0 %v4383
        %4690 = vmatpush.msra.mxu0 %v4371
        %4691 = vmatpush.msra.mxu0 %v4359
        %4692 = vmatpush.msra.mxu0 %v4347
        %4693 = vmatpush.msra.mxu0 %v4335
        %4694 = vmatpush.msra.mxu0 %v4323
        %4695 = vmatpush.msra.mxu0 %v4311
        %4696 = vmatpush.msra.mxu0 %v4299
        %4697 = vmatpush.msra.mxu0 %v4287
        %4698 = vmatpush.msra.mxu0 %v4275
        %4699 = vmatmul.f32.gmra.mxu0 %v4456
        %v4700 = vpop.f32.mrf.mxu0
        %v4701 = vadd.f32 %v4461, %v4700
        %4702 = vdwg.mxu0
        %v4703 = vsub.f32 0.0, %v4481
        %v4704 = vsub.f32 0.0, %v4501
        %v4705 = vsub.f32 0.0, %v4521
        %v4706 = vsub.f32 0.0, %v4541
        %v4707 = vsub.f32 0.0, %v4561
        %v4708 = vsub.f32 0.0, %v4581
        %v4709 = vsub.f32 0.0, %v4601
        %v4710 = vsub.f32 0.0, %v4621
        %v4711 = vsub.f32 0.0, %v4641
        %v4712 = vsub.f32 0.0, %v4661
        %v4713 = vsub.f32 0.0, %v4681
        %v4714 = vsub.f32 0.0, %v4701
        %v4715 = vmul.f32 %v4703, 1.442695
        %v4716 = vpow.pop %v4715
        %v4717 = vmul.f32 %v4704, 1.442695
        %v4718 = vpow.pop %v4717
        %v4719 = vmul.f32 %v4705, 1.442695
        %v4720 = vpow.pop %v4719
        %v4721 = vmul.f32 %v4706, 1.442695
        %v4722 = vpow.pop %v4721
        %v4723 = vmul.f32 %v4707, 1.442695
        %v4724 = vpow.pop %v4723
        %v4725 = vmul.f32 %v4708, 1.442695
        %v4726 = vpow.pop %v4725
        %v4727 = vmul.f32 %v4709, 1.442695
        %v4728 = vpow.pop %v4727
        %v4729 = vmul.f32 %v4710, 1.442695
        %v4730 = vpow.pop %v4729
        %v4731 = vmul.f32 %v4711, 1.442695
        %v4732 = vpow.pop %v4731
        %v4733 = vmul.f32 %v4712, 1.442695
        %v4734 = vpow.pop %v4733
        %v4735 = vmul.f32 %v4713, 1.442695
        %v4736 = vpow.pop %v4735
        %v4737 = vmul.f32 %v4714, 1.442695
        %v4738 = vpow.pop %v4737
        %v4739 = vadd.f32 %v4716, 1.0
        %v4740 = vadd.f32 %v4718, 1.0
        %v4741 = vadd.f32 %v4720, 1.0
        %v4742 = vadd.f32 %v4722, 1.0
        %v4743 = vadd.f32 %v4724, 1.0
        %v4744 = vadd.f32 %v4726, 1.0
        %v4745 = vadd.f32 %v4728, 1.0
        %v4746 = vadd.f32 %v4730, 1.0
        %v4747 = vadd.f32 %v4732, 1.0
        %v4748 = vadd.f32 %v4734, 1.0
        %v4749 = vadd.f32 %v4736, 1.0
        %v4750 = vadd.f32 %v4738, 1.0
        %v4751 = vrcp.pop %v4739
        %v4752 = vmul.f32 %v4739, %v4751
        %v4753 = vsub.f32 1.0, %v4752
        %v4754 = vmul.f32 %v4751, %v4753
        %v4755 = vadd.f32 %v4751, %v4754
        %vm4756 = vweird.f32 %v4739
        %vm4757 = vweird.f32 %v4751
        %vm4758 = vmor %vm4756, %vm4757
        %v4759 = vsel %vm4758, %v4751, %v4755
        %v4760 = vand.u32 2147483647, %v4739
        %vm4761 = vcmp.eq.f32.partialorder %v4760, 8.507059e+37
        %v4762 = vand.u32 %v4739, 2147483648
        %v4763 = vor.u32 1.1754944e-38, %v4762
        %v4764 = vsel %vm4761, %v4763, %v4759
        %v4765 = vmul.f32 1.0, %v4764
        %v4766 = vrcp.pop %v4740
        %v4767 = vmul.f32 %v4740, %v4766
        %v4768 = vsub.f32 1.0, %v4767
        %v4769 = vmul.f32 %v4766, %v4768
        %v4770 = vadd.f32 %v4766, %v4769
        %vm4771 = vweird.f32 %v4740
        %vm4772 = vweird.f32 %v4766
        %vm4773 = vmor %vm4771, %vm4772
        %v4774 = vsel %vm4773, %v4766, %v4770
        %v4775 = vand.u32 2147483647, %v4740
        %vm4776 = vcmp.eq.f32.partialorder %v4775, 8.507059e+37
        %v4777 = vand.u32 %v4740, 2147483648
        %v4778 = vor.u32 1.1754944e-38, %v4777
        %v4779 = vsel %vm4776, %v4778, %v4774
        %v4780 = vmul.f32 1.0, %v4779
        %v4781 = vrcp.pop %v4741
        %v4782 = vmul.f32 %v4741, %v4781
        %v4783 = vsub.f32 1.0, %v4782
        %v4784 = vmul.f32 %v4781, %v4783
        %v4785 = vadd.f32 %v4781, %v4784
        %vm4786 = vweird.f32 %v4741
        %vm4787 = vweird.f32 %v4781
        %vm4788 = vmor %vm4786, %vm4787
        %v4789 = vsel %vm4788, %v4781, %v4785
        %v4790 = vand.u32 2147483647, %v4741
        %vm4791 = vcmp.eq.f32.partialorder %v4790, 8.507059e+37
        %v4792 = vand.u32 %v4741, 2147483648
        %v4793 = vor.u32 1.1754944e-38, %v4792
        %v4794 = vsel %vm4791, %v4793, %v4789
        %v4795 = vmul.f32 1.0, %v4794
        %v4796 = vrcp.pop %v4742
        %v4797 = vmul.f32 %v4742, %v4796
        %v4798 = vsub.f32 1.0, %v4797
        %v4799 = vmul.f32 %v4796, %v4798
        %v4800 = vadd.f32 %v4796, %v4799
        %vm4801 = vweird.f32 %v4742
        %vm4802 = vweird.f32 %v4796
        %vm4803 = vmor %vm4801, %vm4802
        %v4804 = vsel %vm4803, %v4796, %v4800
        %v4805 = vand.u32 2147483647, %v4742
        %vm4806 = vcmp.eq.f32.partialorder %v4805, 8.507059e+37
        %v4807 = vand.u32 %v4742, 2147483648
        %v4808 = vor.u32 1.1754944e-38, %v4807
        %v4809 = vsel %vm4806, %v4808, %v4804
        %v4810 = vmul.f32 1.0, %v4809
        %v4811 = vrcp.pop %v4743
        %v4812 = vmul.f32 %v4743, %v4811
        %v4813 = vsub.f32 1.0, %v4812
        %v4814 = vmul.f32 %v4811, %v4813
        %v4815 = vadd.f32 %v4811, %v4814
        %vm4816 = vweird.f32 %v4743
        %vm4817 = vweird.f32 %v4811
        %vm4818 = vmor %vm4816, %vm4817
        %v4819 = vsel %vm4818, %v4811, %v4815
        %v4820 = vand.u32 2147483647, %v4743
        %vm4821 = vcmp.eq.f32.partialorder %v4820, 8.507059e+37
        %v4822 = vand.u32 %v4743, 2147483648
        %v4823 = vor.u32 1.1754944e-38, %v4822
        %v4824 = vsel %vm4821, %v4823, %v4819
        %v4825 = vmul.f32 1.0, %v4824
        %v4826 = vrcp.pop %v4744
        %v4827 = vmul.f32 %v4744, %v4826
        %v4828 = vsub.f32 1.0, %v4827
        %v4829 = vmul.f32 %v4826, %v4828
        %v4830 = vadd.f32 %v4826, %v4829
        %vm4831 = vweird.f32 %v4744
        %vm4832 = vweird.f32 %v4826
        %vm4833 = vmor %vm4831, %vm4832
        %v4834 = vsel %vm4833, %v4826, %v4830
        %v4835 = vand.u32 2147483647, %v4744
        %vm4836 = vcmp.eq.f32.partialorder %v4835, 8.507059e+37
        %v4837 = vand.u32 %v4744, 2147483648
        %v4838 = vor.u32 1.1754944e-38, %v4837
        %v4839 = vsel %vm4836, %v4838, %v4834
        %v4840 = vmul.f32 1.0, %v4839
        %v4841 = vrcp.pop %v4745
        %v4842 = vmul.f32 %v4745, %v4841
        %v4843 = vsub.f32 1.0, %v4842
        %v4844 = vmul.f32 %v4841, %v4843
        %v4845 = vadd.f32 %v4841, %v4844
        %vm4846 = vweird.f32 %v4745
        %vm4847 = vweird.f32 %v4841
        %vm4848 = vmor %vm4846, %vm4847
        %v4849 = vsel %vm4848, %v4841, %v4845
        %v4850 = vand.u32 2147483647, %v4745
        %vm4851 = vcmp.eq.f32.partialorder %v4850, 8.507059e+37
        %v4852 = vand.u32 %v4745, 2147483648
        %v4853 = vor.u32 1.1754944e-38, %v4852
        %v4854 = vsel %vm4851, %v4853, %v4849
        %v4855 = vmul.f32 1.0, %v4854
        %v4856 = vrcp.pop %v4746
        %v4857 = vmul.f32 %v4746, %v4856
        %v4858 = vsub.f32 1.0, %v4857
        %v4859 = vmul.f32 %v4856, %v4858
        %v4860 = vadd.f32 %v4856, %v4859
        %vm4861 = vweird.f32 %v4746
        %vm4862 = vweird.f32 %v4856
        %vm4863 = vmor %vm4861, %vm4862
        %v4864 = vsel %vm4863, %v4856, %v4860
        %v4865 = vand.u32 2147483647, %v4746
        %vm4866 = vcmp.eq.f32.partialorder %v4865, 8.507059e+37
        %v4867 = vand.u32 %v4746, 2147483648
        %v4868 = vor.u32 1.1754944e-38, %v4867
        %v4869 = vsel %vm4866, %v4868, %v4864
        %v4870 = vmul.f32 1.0, %v4869
        %v4871 = vrcp.pop %v4747
        %v4872 = vmul.f32 %v4747, %v4871
        %v4873 = vsub.f32 1.0, %v4872
        %v4874 = vmul.f32 %v4871, %v4873
        %v4875 = vadd.f32 %v4871, %v4874
        %vm4876 = vweird.f32 %v4747
        %vm4877 = vweird.f32 %v4871
        %vm4878 = vmor %vm4876, %vm4877
        %v4879 = vsel %vm4878, %v4871, %v4875
        %v4880 = vand.u32 2147483647, %v4747
        %vm4881 = vcmp.eq.f32.partialorder %v4880, 8.507059e+37
        %v4882 = vand.u32 %v4747, 2147483648
        %v4883 = vor.u32 1.1754944e-38, %v4882
        %v4884 = vsel %vm4881, %v4883, %v4879
        %v4885 = vmul.f32 1.0, %v4884
        %v4886 = vrcp.pop %v4748
        %v4887 = vmul.f32 %v4748, %v4886
        %v4888 = vsub.f32 1.0, %v4887
        %v4889 = vmul.f32 %v4886, %v4888
        %v4890 = vadd.f32 %v4886, %v4889
        %vm4891 = vweird.f32 %v4748
        %vm4892 = vweird.f32 %v4886
        %vm4893 = vmor %vm4891, %vm4892
        %v4894 = vsel %vm4893, %v4886, %v4890
        %v4895 = vand.u32 2147483647, %v4748
        %vm4896 = vcmp.eq.f32.partialorder %v4895, 8.507059e+37
        %v4897 = vand.u32 %v4748, 2147483648
        %v4898 = vor.u32 1.1754944e-38, %v4897
        %v4899 = vsel %vm4896, %v4898, %v4894
        %v4900 = vmul.f32 1.0, %v4899
        %v4901 = vrcp.pop %v4749
        %v4902 = vmul.f32 %v4749, %v4901
        %v4903 = vsub.f32 1.0, %v4902
        %v4904 = vmul.f32 %v4901, %v4903
        %v4905 = vadd.f32 %v4901, %v4904
        %vm4906 = vweird.f32 %v4749
        %vm4907 = vweird.f32 %v4901
        %vm4908 = vmor %vm4906, %vm4907
        %v4909 = vsel %vm4908, %v4901, %v4905
        %v4910 = vand.u32 2147483647, %v4749
        %vm4911 = vcmp.eq.f32.partialorder %v4910, 8.507059e+37
        %v4912 = vand.u32 %v4749, 2147483648
        %v4913 = vor.u32 1.1754944e-38, %v4912
        %v4914 = vsel %vm4911, %v4913, %v4909
        %v4915 = vmul.f32 1.0, %v4914
        %v4916 = vrcp.pop %v4750
        %v4917 = vmul.f32 %v4750, %v4916
        %v4918 = vsub.f32 1.0, %v4917
        %v4919 = vmul.f32 %v4916, %v4918
        %v4920 = vadd.f32 %v4916, %v4919
        %vm4921 = vweird.f32 %v4750
        %vm4922 = vweird.f32 %v4916
        %vm4923 = vmor %vm4921, %vm4922
        %v4924 = vsel %vm4923, %v4916, %v4920
        %v4925 = vand.u32 2147483647, %v4750
        %vm4926 = vcmp.eq.f32.partialorder %v4925, 8.507059e+37
        %v4927 = vand.u32 %v4750, 2147483648
        %v4928 = vor.u32 1.1754944e-38, %v4927
        %v4929 = vsel %vm4926, %v4928, %v4924
        %v4930 = vmul.f32 1.0, %v4929
        %v4931 = vmul.f32 %v4765, 0.295
        %v4932 = vmul.f32 %v4780, 0.295
        %v4933 = vmul.f32 %v4795, 0.295
        %v4934 = vmul.f32 %v4810, 0.295
        %v4935 = vmul.f32 %v4825, 0.295
        %v4936 = vmul.f32 %v4840, 0.295
        %v4937 = vmul.f32 %v4855, 0.295
        %v4938 = vmul.f32 %v4870, 0.295
        %v4939 = vmul.f32 %v4885, 0.295
        %v4940 = vmul.f32 %v4900, 0.295
        %v4941 = vmul.f32 %v4915, 0.295
        %v4942 = vmul.f32 %v4930, 0.295
        %v4943 = vadd.f32 %v4931, 0.005
        %v4944 = vadd.f32 %v4932, 0.005
        %v4945 = vadd.f32 %v4933, 0.005
        %v4946 = vadd.f32 %v4934, 0.005
        %v4947 = vadd.f32 %v4935, 0.005
        %v4948 = vadd.f32 %v4936, 0.005
        %v4949 = vadd.f32 %v4937, 0.005
        %v4950 = vadd.f32 %v4938, 0.005
        %v4951 = vadd.f32 %v4939, 0.005
        %v4952 = vadd.f32 %v4940, 0.005
        %v4953 = vadd.f32 %v4941, 0.005
        %v4954 = vadd.f32 %v4942, 0.005
        %v4955 = vmul.f32 %v4765, 0.005
        %v4956 = vmul.f32 %v4780, 0.005
        %v4957 = vmul.f32 %v4795, 0.005
        %v4958 = vmul.f32 %v4810, 0.005
        %v4959 = vmul.f32 %v4825, 0.005
        %v4960 = vmul.f32 %v4840, 0.005
        %v4961 = vmul.f32 %v4855, 0.005
        %v4962 = vmul.f32 %v4870, 0.005
        %v4963 = vmul.f32 %v4885, 0.005
        %v4964 = vmul.f32 %v4900, 0.005
        %v4965 = vmul.f32 %v4915, 0.005
        %v4966 = vmul.f32 %v4930, 0.005
        %v4967 = vadd.f32 %v4955, 0.0
        %v4968 = vadd.f32 %v4956, 0.0
        %v4969 = vadd.f32 %v4957, 0.0
        %v4970 = vadd.f32 %v4958, 0.0
        %v4971 = vadd.f32 %v4959, 0.0
        %v4972 = vadd.f32 %v4960, 0.0
        %v4973 = vadd.f32 %v4961, 0.0
        %v4974 = vadd.f32 %v4962, 0.0
        %v4975 = vadd.f32 %v4963, 0.0
        %v4976 = vadd.f32 %v4964, 0.0
        %v4977 = vadd.f32 %v4965, 0.0
        %v4978 = vadd.f32 %v4966, 0.0
        %v4979 = vmul.f32 %v4765, 0.7
        %v4980 = vmul.f32 %v4780, 0.7
        %v4981 = vmul.f32 %v4795, 0.7
        %v4982 = vmul.f32 %v4810, 0.7
        %v4983 = vmul.f32 %v4825, 0.7
        %v4984 = vmul.f32 %v4840, 0.7
        %v4985 = vmul.f32 %v4855, 0.7
        %v4986 = vmul.f32 %v4870, 0.7
        %v4987 = vmul.f32 %v4885, 0.7
        %v4988 = vmul.f32 %v4900, 0.7
        %v4989 = vmul.f32 %v4915, 0.7
        %v4990 = vmul.f32 %v4930, 0.7
        %v4991 = vadd.f32 %v4979, 0.0
        %v4992 = vadd.f32 %v4980, 0.0
        %v4993 = vadd.f32 %v4981, 0.0
        %v4994 = vadd.f32 %v4982, 0.0
        %v4995 = vadd.f32 %v4983, 0.0
        %v4996 = vadd.f32 %v4984, 0.0
        %v4997 = vadd.f32 %v4985, 0.0
        %v4998 = vadd.f32 %v4986, 0.0
        %v4999 = vadd.f32 %v4987, 0.0
        %v5000 = vadd.f32 %v4988, 0.0
        %v5001 = vadd.f32 %v4989, 0.0
        %v5002 = vadd.f32 %v4990, 0.0
        %v5003 = vmul.f32 %v4765, 1.2
        %v5004 = vmul.f32 %v4780, 1.2
        %v5005 = vmul.f32 %v4795, 1.2
        %v5006 = vmul.f32 %v4810, 1.2
        %v5007 = vmul.f32 %v4825, 1.2
        %v5008 = vmul.f32 %v4840, 1.2
        %v5009 = vmul.f32 %v4855, 1.2
        %v5010 = vmul.f32 %v4870, 1.2
        %v5011 = vmul.f32 %v4885, 1.2
        %v5012 = vmul.f32 %v4900, 1.2
        %v5013 = vmul.f32 %v4915, 1.2
        %v5014 = vmul.f32 %v4930, 1.2
        %v5015 = vadd.f32 %v5003, 0.8
        %v5016 = vadd.f32 %v5004, 0.8
        %v5017 = vadd.f32 %v5005, 0.8
        %v5018 = vadd.f32 %v5006, 0.8
        %v5019 = vadd.f32 %v5007, 0.8
        %v5020 = vadd.f32 %v5008, 0.8
        %v5021 = vadd.f32 %v5009, 0.8
        %v5022 = vadd.f32 %v5010, 0.8
        %v5023 = vadd.f32 %v5011, 0.8
        %v5024 = vadd.f32 %v5012, 0.8
        %v5025 = vadd.f32 %v5013, 0.8
        %v5026 = vadd.f32 %v5014, 0.8
        %v5027 = vld [vmem:[%s0] sm:$0xff]
        %v5028 = vsub.f32 0.0, %v5027
        %5030 = vset.pattern.permute.xlu0 0
        %5031 = vperm.xlu0 %5030, %v5028
        %v5032 = vpop.permute.xlu0 %5031
        %v5034 = vperm.slane %v4943, 0
        %v5035 = vperm.slane %v4944, 0
        %v5036 = vperm.slane %v4945, 0
        %v5037 = vperm.slane %v4946, 0
        %v5038 = vperm.slane %v4947, 0
        %v5039 = vperm.slane %v4948, 0
        %v5040 = vperm.slane %v4949, 0
        %v5041 = vperm.slane %v4950, 0
        %v5042 = vperm.slane %v4951, 0
        %v5043 = vperm.slane %v4952, 0
        %v5044 = vperm.slane %v4953, 0
        %v5045 = vperm.slane %v4954, 0
        %v5046 = vmul.f32 %v5032, %v5034
        %v5047 = vmul.f32 %v5032, %v5035
        %v5048 = vmul.f32 %v5032, %v5036
        %v5049 = vmul.f32 %v5032, %v5037
        %v5050 = vmul.f32 %v5032, %v5038
        %v5051 = vmul.f32 %v5032, %v5039
        %v5052 = vmul.f32 %v5032, %v5040
        %v5053 = vmul.f32 %v5032, %v5041
        %v5054 = vmul.f32 %v5032, %v5042
        %v5055 = vmul.f32 %v5032, %v5043
        %v5056 = vmul.f32 %v5032, %v5044
        %v5057 = vmul.f32 %v5032, %v5045
        %v5058 = vmul.f32 %v5046, 1.442695
        %v5059 = vpow.pop %v5058
        %v5060 = vmul.f32 %v5047, 1.442695
        %v5061 = vpow.pop %v5060
        %v5062 = vmul.f32 %v5048, 1.442695
        %v5063 = vpow.pop %v5062
        %v5064 = vmul.f32 %v5049, 1.442695
        %v5065 = vpow.pop %v5064
        %v5066 = vmul.f32 %v5050, 1.442695
        %v5067 = vpow.pop %v5066
        %v5068 = vmul.f32 %v5051, 1.442695
        %v5069 = vpow.pop %v5068
        %v5070 = vmul.f32 %v5052, 1.442695
        %v5071 = vpow.pop %v5070
        %v5072 = vmul.f32 %v5053, 1.442695
        %v5073 = vpow.pop %v5072
        %v5074 = vmul.f32 %v5054, 1.442695
        %v5075 = vpow.pop %v5074
        %v5076 = vmul.f32 %v5055, 1.442695
        %v5077 = vpow.pop %v5076
        %v5078 = vmul.f32 %v5056, 1.442695
        %v5079 = vpow.pop %v5078
        %v5080 = vmul.f32 %v5057, 1.442695
        %v5081 = vpow.pop %v5080
        %v5082 = vperm.slane %v4991, 2
        %v5083 = vperm.slane %v4992, 2
        %v5084 = vperm.slane %v4993, 2
        %v5085 = vperm.slane %v4994, 2
        %v5086 = vperm.slane %v4995, 2
        %v5087 = vperm.slane %v4996, 2
        %v5088 = vperm.slane %v4997, 2
        %v5089 = vperm.slane %v4998, 2
        %v5090 = vperm.slane %v4999, 2
        %v5091 = vperm.slane %v5000, 2
        %v5092 = vperm.slane %v5001, 2
        %v5093 = vperm.slane %v5002, 2
        %v5094 = vmul.f32 %v5082, %v5059
        %v5095 = vmul.f32 %v5083, %v5061
        %v5096 = vmul.f32 %v5084, %v5063
        %v5097 = vmul.f32 %v5085, %v5065
        %v5098 = vmul.f32 %v5086, %v5067
        %v5099 = vmul.f32 %v5087, %v5069
        %v5100 = vmul.f32 %v5088, %v5071
        %v5101 = vmul.f32 %v5089, %v5073
        %v5102 = vmul.f32 %v5090, %v5075
        %v5103 = vmul.f32 %v5091, %v5077
        %v5104 = vmul.f32 %v5092, %v5079
        %v5105 = vmul.f32 %v5093, %v5081
        %v5106 = vsub.f32 1.0, %v4991
        %v5107 = vsub.f32 1.0, %v4992
        %v5108 = vsub.f32 1.0, %v4993
        %v5109 = vsub.f32 1.0, %v4994
        %v5110 = vsub.f32 1.0, %v4995
        %v5111 = vsub.f32 1.0, %v4996
        %v5112 = vsub.f32 1.0, %v4997
        %v5113 = vsub.f32 1.0, %v4998
        %v5114 = vsub.f32 1.0, %v4999
        %v5115 = vsub.f32 1.0, %v5000
        %v5116 = vsub.f32 1.0, %v5001
        %v5117 = vsub.f32 1.0, %v5002
        %v5118 = vperm.slane %v4967, 1
        %v5119 = vperm.slane %v4968, 1
        %v5120 = vperm.slane %v4969, 1
        %v5121 = vperm.slane %v4970, 1
        %v5122 = vperm.slane %v4971, 1
        %v5123 = vperm.slane %v4972, 1
        %v5124 = vperm.slane %v4973, 1
        %v5125 = vperm.slane %v4974, 1
        %v5126 = vperm.slane %v4975, 1
        %v5127 = vperm.slane %v4976, 1
        %v5128 = vperm.slane %v4977, 1
        %v5129 = vperm.slane %v4978, 1
        %v5130 = vmul.f32 %v5032, %v5118
        %v5131 = vmul.f32 %v5032, %v5119
        %v5132 = vmul.f32 %v5032, %v5120
        %v5133 = vmul.f32 %v5032, %v5121
        %v5134 = vmul.f32 %v5032, %v5122
        %v5135 = vmul.f32 %v5032, %v5123
        %v5136 = vmul.f32 %v5032, %v5124
        %v5137 = vmul.f32 %v5032, %v5125
        %v5138 = vmul.f32 %v5032, %v5126
        %v5139 = vmul.f32 %v5032, %v5127
        %v5140 = vmul.f32 %v5032, %v5128
        %v5141 = vmul.f32 %v5032, %v5129
        %v5142 = vmul.f32 %v5130, 1.442695
        %v5143 = vpow.pop %v5142
        %v5144 = vmul.f32 %v5131, 1.442695
        %v5145 = vpow.pop %v5144
        %v5146 = vmul.f32 %v5132, 1.442695
        %v5147 = vpow.pop %v5146
        %v5148 = vmul.f32 %v5133, 1.442695
        %v5149 = vpow.pop %v5148
        %v5150 = vmul.f32 %v5134, 1.442695
        %v5151 = vpow.pop %v5150
        %v5152 = vmul.f32 %v5135, 1.442695
        %v5153 = vpow.pop %v5152
        %v5154 = vmul.f32 %v5136, 1.442695
        %v5155 = vpow.pop %v5154
        %v5156 = vmul.f32 %v5137, 1.442695
        %v5157 = vpow.pop %v5156
        %v5158 = vmul.f32 %v5138, 1.442695
        %v5159 = vpow.pop %v5158
        %v5160 = vmul.f32 %v5139, 1.442695
        %v5161 = vpow.pop %v5160
        %v5162 = vmul.f32 %v5140, 1.442695
        %v5163 = vpow.pop %v5162
        %v5164 = vmul.f32 %v5141, 1.442695
        %v5165 = vpow.pop %v5164
        %v5166 = vperm.slane %v5106, 2
        %v5167 = vperm.slane %v5107, 2
        %v5168 = vperm.slane %v5108, 2
        %v5169 = vperm.slane %v5109, 2
        %v5170 = vperm.slane %v5110, 2
        %v5171 = vperm.slane %v5111, 2
        %v5172 = vperm.slane %v5112, 2
        %v5173 = vperm.slane %v5113, 2
        %v5174 = vperm.slane %v5114, 2
        %v5175 = vperm.slane %v5115, 2
        %v5176 = vperm.slane %v5116, 2
        %v5177 = vperm.slane %v5117, 2
        %v5178 = vmul.f32 %v5166, %v5143
        %v5179 = vmul.f32 %v5167, %v5145
        %v5180 = vmul.f32 %v5168, %v5147
        %v5181 = vmul.f32 %v5169, %v5149
        %v5182 = vmul.f32 %v5170, %v5151
        %v5183 = vmul.f32 %v5171, %v5153
        %v5184 = vmul.f32 %v5172, %v5155
        %v5185 = vmul.f32 %v5173, %v5157
        %v5186 = vmul.f32 %v5174, %v5159
        %v5187 = vmul.f32 %v5175, %v5161
        %v5188 = vmul.f32 %v5176, %v5163
        %v5189 = vmul.f32 %v5177, %v5165
        %v5190 = vadd.f32 %v5094, %v5178
        %v5191 = vadd.f32 %v5095, %v5179
        %v5192 = vadd.f32 %v5096, %v5180
        %v5193 = vadd.f32 %v5097, %v5181
        %v5194 = vadd.f32 %v5098, %v5182
        %v5195 = vadd.f32 %v5099, %v5183
        %v5196 = vadd.f32 %v5100, %v5184
        %v5197 = vadd.f32 %v5101, %v5185
        %v5198 = vadd.f32 %v5102, %v5186
        %v5199 = vadd.f32 %v5103, %v5187
        %v5200 = vadd.f32 %v5104, %v5188
        %v5201 = vadd.f32 %v5105, %v5189
        %v5202 = vperm.slane %v5015, 3
        %v5203 = vperm.slane %v5016, 3
        %v5204 = vperm.slane %v5017, 3
        %v5205 = vperm.slane %v5018, 3
        %v5206 = vperm.slane %v5019, 3
        %v5207 = vperm.slane %v5020, 3
        %v5208 = vperm.slane %v5021, 3
        %v5209 = vperm.slane %v5022, 3
        %v5210 = vperm.slane %v5023, 3
        %v5211 = vperm.slane %v5024, 3
        %v5212 = vperm.slane %v5025, 3
        %v5213 = vperm.slane %v5026, 3
        %v5214 = vmul.f32 %v5202, %v5190
        %v5215 = vmul.f32 %v5203, %v5191
        %v5216 = vmul.f32 %v5204, %v5192
        %v5217 = vmul.f32 %v5205, %v5193
        %v5218 = vmul.f32 %v5206, %v5194
        %v5219 = vmul.f32 %v5207, %v5195
        %v5220 = vmul.f32 %v5208, %v5196
        %v5221 = vmul.f32 %v5209, %v5197
        %v5222 = vmul.f32 %v5210, %v5198
        %v5223 = vmul.f32 %v5211, %v5199
        %v5224 = vmul.f32 %v5212, %v5200
        %v5225 = vmul.f32 %v5213, %v5201
        %5226 = vst [vmem:[%s299] sm:$0xff] %v5214
        %5227 = vst [vmem:[%s299 + $0x8] sm:$0xff] %v5215
        %5228 = vst [vmem:[%s299 + $0x10] sm:$0xff] %v5216
        %5229 = vst [vmem:[%s299 + $0x18] sm:$0xff] %v5217
        %5230 = vst [vmem:[%s299 + $0x20] sm:$0xff] %v5218
        %5231 = vst [vmem:[%s299 + $0x28] sm:$0xff] %v5219
        %5232 = vst [vmem:[%s299 + $0x30] sm:$0xff] %v5220
        %5233 = vst [vmem:[%s299 + $0x38] sm:$0xff] %v5221
        %5234 = vst [vmem:[%s299 + $0x40] sm:$0xff] %v5222
        %5235 = vst [vmem:[%s299 + $0x48] sm:$0xff] %v5223
        %5236 = vst [vmem:[%s299 + $0x50] sm:$0xff] %v5224
        %5237 = vst [vmem:[%s299 + $0x58] sm:$0xff] %v5225
        %v5250 = vrot.slane %v4944, 7
        %v5251 = vrot.slane %v4945, 6
        %v5252 = vrot.slane %v4946, 5
        %v5253 = vrot.slane %v4947, 4
        %v5254 = vrot.slane %v4948, 3
        %v5255 = vrot.slane %v4949, 2
        %v5256 = vrot.slane %v4950, 1
        %v5257 = vrot.slane %v4952, 7
        %v5258 = vrot.slane %v4953, 6
        %v5259 = vrot.slane %v4954, 5
        %vm5260 = vcmask 1040384
        %v5261 = vsel %vm5260, %v4943, %v5250
        %vm5262 = vcmask 1042434
        %v5263 = vsel %vm5262, %v5251, %v5252
        %vm5264 = vcmask 1041408
        %v5265 = vsel %vm5264, %v5261, %v5263
        %vm5266 = vcmask 1044484
        %v5267 = vsel %vm5266, %v5253, %v5254
        %vm5268 = vcmask 1046534
        %v5269 = vsel %vm5268, %v5255, %v5256
        %vm5270 = vcmask 1045508
        %v5271 = vsel %vm5270, %v5267, %v5269
        %vm5272 = vcmask 1043456
        %v5273 = vsel %vm5272, %v5265, %v5271
        %v5274 = vsel %vm5260, %v4951, %v5257
        %v5275 = vsel %vm5262, %v5258, %v5259
        %v5276 = vsel %vm5264, %v5274, %v5275
        %s5279 = scalar_lea.vmem %s299, 96 [#allocation2]
        %5280 = vst [vmem:[%s5279] ss:$8 sm:$0xf] %v5273
        %5281 = vst [vmem:[%s5279] ss:$8 sm:$0xf0] %v5273
        %v5282 = vlaneseq
        %vm5283 = vcmp.ge.s32.totalorder %v5282, 0
        %vm5284 = vcmp.lt.s32.totalorder %v5282, 512
        %vm5285 = vmand %vm5283, %vm5284
        %s5286 = scalar_lea.vmem %s299, 160 [#allocation2]
        %5287 = vst.msk [vmem:[%s5286] ss:$8 sm:$0xf] %vm5285, %v5276
        %5288 = vst.msk [vmem:[%s5286] ss:$8 sm:$0x0] %vm5285, %v5276
        %5301 = vst [vmem:[#allocation1] sm:$0xff] %v4967
        %5302 = vst [vmem:[#allocation1 + $0x9] sm:$0xff] %v4968
        %5303 = vst [vmem:[#allocation1 + $0x12] sm:$0xff] %v4969
        %5304 = vst [vmem:[#allocation1 + $0x1b] sm:$0xff] %v4970
        %5305 = vst [vmem:[#allocation1 + $0x24] sm:$0xff] %v4971
        %5306 = vst [vmem:[#allocation1 + $0x2d] sm:$0xff] %v4972
        %5307 = vst [vmem:[#allocation1 + $0x36] sm:$0xff] %v4973
        %5308 = vst [vmem:[#allocation1 + $0x3f] sm:$0xff] %v4974
        %s5309 = scalar_lea.vmem [#allocation1], 1
        %v5310 = vld [vmem:[%s5309] ss:$9 sm:$0xff]
        %5311 = vst [vmem:[#allocation1] sm:$0xff] %v4975
        %5312 = vst [vmem:[#allocation1 + $0x9] sm:$0xff] %v4976
        %5313 = vst [vmem:[#allocation1 + $0x12] sm:$0xff] %v4977
        %5314 = vst [vmem:[#allocation1 + $0x1b] sm:$0xff] %v4978
        %v5315 = vld [vmem:[%s5309] ss:$9 sm:$0xff]
        %s5318 = scalar_lea.vmem %s299, 97 [#allocation2]
        %5319 = vst [vmem:[%s5318] ss:$8 sm:$0xf] %v5310
        %5320 = vst [vmem:[%s5318] ss:$8 sm:$0xf0] %v5310
        %s5321 = scalar_lea.vmem %s299, 161 [#allocation2]
        %5322 = vst.msk [vmem:[%s5321] ss:$8 sm:$0xf] %vm5285, %v5315
        %5323 = vst.msk [vmem:[%s5321] ss:$8 sm:$0x0] %vm5285, %v5315
        %5336 = vst [vmem:[#allocation1] sm:$0xff] %v4991
        %5337 = vst [vmem:[#allocation1 + $0x9] sm:$0xff] %v4992
        %5338 = vst [vmem:[#allocation1 + $0x12] sm:$0xff] %v4993
        %5339 = vst [vmem:[#allocation1 + $0x1b] sm:$0xff] %v4994
        %5340 = vst [vmem:[#allocation1 + $0x24] sm:$0xff] %v4995
        %5341 = vst [vmem:[#allocation1 + $0x2d] sm:$0xff] %v4996
        %5342 = vst [vmem:[#allocation1 + $0x36] sm:$0xff] %v4997
        %5343 = vst [vmem:[#allocation1 + $0x3f] sm:$0xff] %v4998
        %s5344 = scalar_lea.vmem [#allocation1], 2
        %v5345 = vld [vmem:[%s5344] ss:$9 sm:$0xff]
        %5346 = vst [vmem:[#allocation1] sm:$0xff] %v4999
        %5347 = vst [vmem:[#allocation1 + $0x9] sm:$0xff] %v5000
        %5348 = vst [vmem:[#allocation1 + $0x12] sm:$0xff] %v5001
        %5349 = vst [vmem:[#allocation1 + $0x1b] sm:$0xff] %v5002
        %v5350 = vld [vmem:[%s5344] ss:$9 sm:$0xff]
        %s5353 = scalar_lea.vmem %s299, 98 [#allocation2]
        %5354 = vst [vmem:[%s5353] ss:$8 sm:$0xf] %v5345
        %5355 = vst [vmem:[%s5353] ss:$8 sm:$0xf0] %v5345
        %s5356 = scalar_lea.vmem %s299, 162 [#allocation2]
        %5357 = vst.msk [vmem:[%s5356] ss:$8 sm:$0xf] %vm5285, %v5350
        %5358 = vst.msk [vmem:[%s5356] ss:$8 sm:$0x0] %vm5285, %v5350
        %5371 = vst [vmem:[#allocation1] sm:$0xff] %v5015
        %5372 = vst [vmem:[#allocation1 + $0x9] sm:$0xff] %v5016
        %5373 = vst [vmem:[#allocation1 + $0x12] sm:$0xff] %v5017
        %5374 = vst [vmem:[#allocation1 + $0x1b] sm:$0xff] %v5018
        %5375 = vst [vmem:[#allocation1 + $0x24] sm:$0xff] %v5019
        %5376 = vst [vmem:[#allocation1 + $0x2d] sm:$0xff] %v5020
        %5377 = vst [vmem:[#allocation1 + $0x36] sm:$0xff] %v5021
        %5378 = vst [vmem:[#allocation1 + $0x3f] sm:$0xff] %v5022
        %s5379 = scalar_lea.vmem [#allocation1], 3
        %v5380 = vld [vmem:[%s5379] ss:$9 sm:$0xff]
        %5381 = vst [vmem:[#allocation1] sm:$0xff] %v5023
        %5382 = vst [vmem:[#allocation1 + $0x9] sm:$0xff] %v5024
        %5383 = vst [vmem:[#allocation1 + $0x12] sm:$0xff] %v5025
        %5384 = vst [vmem:[#allocation1 + $0x1b] sm:$0xff] %v5026
        %v5385 = vld [vmem:[%s5379] ss:$9 sm:$0xff]
        %s5388 = scalar_lea.vmem %s299, 99 [#allocation2]
        %5389 = vst [vmem:[%s5388] ss:$8 sm:$0xf] %v5380
        %5390 = vst [vmem:[%s5388] ss:$8 sm:$0xf0] %v5380
        %s5391 = scalar_lea.vmem %s299, 163 [#allocation2]
        %5392 = vst.msk [vmem:[%s5391] ss:$8 sm:$0xf] %vm5285, %v5385
        %5393 = vst.msk [vmem:[%s5391] ss:$8 sm:$0x0] %vm5285, %v5385
        %s5394 = sand.u32 %s203, 1
        %s5395 = scalar_lea.sflag [#allocation3], %s5394
        %s5396 = sand.u32 %s203, 1
        %s5397 = smul.addr %s5396, 192
        %s5398 = scalar_lea.vmem [#allocation2], %s5397
        // Predicated region
        $region53: #{tpu_custom_call.1} parent=51 // pred_check
          %p5399 = pneg %p213
        $region54: #{tpu_custom_call.1} parent=51 // pred_check_branch
          %5401 = sbr.rel (%p5399) target = $region56
        $region55: #{tpu_custom_call.1} parent=51 // pred_region
          %s5402 = smul.u32 12, %s22
          %5404 = vsyncadd %s5395, 0
          %s5405 = smul.addr %s5402, 8
          %s5406 = scalar_lea.hbm %s8, %s5405
          %s5407 = sshll.u32 %s5398, 4
          %s5408 = int_to_ptr.vmem [resolvable:$true] %s5407
          %s5409 = sshll.u32 %s5406, 4
          %s5410 = int_to_ptr.hbm [resolvable:$true] %s5409
          %5415 = dma.vmem_to_hbm [thread:$0]  %s5408, 3072, %s5410, %s5395, 1536, 3072, 96
        $region56: #{tpu_custom_call.1} parent=51 // pred_fallthru
          _
      $region52: #{tpu_custom_call.1} parent=5 // pred_fallthru
        _
      %p5416 = scmp.le.s32.totalorder 2, %s17
      // Predicated region
      $region57: #{tpu_custom_call.1} parent=5 // pred_check
        %p5417 = pneg %p5416
      $region58: #{tpu_custom_call.1} parent=5 // pred_check_branch
        %5419 = sbr.rel (%p5417) target = $region60
      $region59: #{tpu_custom_call.1} parent=5 // pred_region
        %s5420 = ssub.s32 %s17, 2
        // Predicated region
        $region61: #{tpu_custom_call.1} parent=59 // pred_check
          %p5421 = pneg %p219
        $region62: #{tpu_custom_call.1} parent=59 // pred_check_branch
          %5423 = sbr.rel (%p5421) target = $region64
        $region63: #{tpu_custom_call.1} parent=59 // pred_region
          %s5424 = sand.u32 %s204, 1
          %s5425 = scalar_lea.sflag [#allocation3], %s5424
          %s5426 = sand.u32 %s204, 1
          %s5427 = smul.addr %s5426, 192
          %s5428 = scalar_lea.vmem [#allocation2], %s5427
          %5430 = dma.done %s5425, 3072
        $region64: #{tpu_custom_call.1} parent=59 // pred_fallthru
          _
      $region60: #{tpu_custom_call.1} parent=5 // pred_fallthru
        _
    $region6: #{tpu_custom_call.1} parent=1 // loop_footer
      %s21 = sadd.s32 1, %s17
    $region7: #{tpu_custom_call.1} parent=1 // loop_footer_branch
      %16 = sbr.rel target = $region3
    $region8: #{tpu_custom_call.1} parent=1 // loop_exit
      _
    %5431 = vsyncpa [#allocation3], 1
    %s5432 = scalar_lea.sflag [#allocation3], 1
    %5433 = vsyncpa %s5432, 1

</llo_original>
